<compile_context>
chip_gen: v7x
topology: tpu7x:2x2x1
jax: 0.10.0
libtpu: 0.0.40
codegen_flags: <defaults>
</compile_context>

<pallas_src>
import functools
import math

import numpy as np
import jax
import jax.numpy as jnp
from jax import lax
from jax.experimental import pallas as pl
from jax.experimental.pallas import tpu as pltpu

# ----------------------------- config (Diffusion / Inpainter hyper-params) ---------
SIGMA_DATA = 0.5
S_NOISE = 1.0
S_CHURN = 20.0
S_TMIN = 0.0
S_TMAX = float("inf")
SIGMA_MIN = 0.01
SIGMA_MAX = 3.0
RHO = 7.0

NUM_STEPS = 4
NUM_RESAMPLES = 2

B, C, T = 2, 4, 16   # batch, channels, time
H = 32               # hidden width of the synthetic denoiser net

_NS = 16             # width of the per-iteration scalar table (padded)


# ----------------------------- host-side scalar helpers ----------------------------
def _c_skip(s):
    return SIGMA_DATA ** 2 / (s ** 2 + SIGMA_DATA ** 2)


def _c_out(s):
    return s * SIGMA_DATA / math.sqrt(SIGMA_DATA ** 2 + s ** 2)


def _c_in(s):
    return 1.0 / math.sqrt(s ** 2 + SIGMA_DATA ** 2)


def _c_noise(s):
    return math.log(s) * 0.25


def karras_schedule(num_steps):
    """KarrasSchedule: num_steps sigmas (sigma_max -> sigma_min), padded with 0."""
    steps = np.arange(num_steps, dtype=np.float64)
    ri = 1.0 / RHO
    sig = (SIGMA_MAX ** ri + (steps / (num_steps - 1)) * (SIGMA_MIN ** ri - SIGMA_MAX ** ri)) ** RHO
    return np.concatenate([sig, [0.0]])


def _build_scalar_table(num_steps, num_resamples):
    """Precompute all per-iteration scalars for the fused kernel (one host pass)."""
    sigmas = karras_schedule(num_steps)
    gamma_val = min(S_CHURN / num_steps, math.sqrt(2.0) - 1.0)
    num_iters = (num_steps - 1) * num_resamples
    tab = np.zeros((num_iters, _NS), np.float32)
    it = 0
    for i in range(num_steps - 1):
        sigma = float(sigmas[i])
        sigma_next = float(sigmas[i + 1])        # > 0 for all i < num_steps-1 (Karras)
        gamma = gamma_val if (S_TMIN <= sigma <= S_TMAX) else 0.0
        sigma_hat = sigma + gamma * sigma
        for r in range(num_resamples):
            # Faithful to the PyTorch source: renoise = i < num_steps-1 and r < num_resamples
            # (always True inside this loop).
            renoise = (i < num_steps - 1) and (r < num_resamples)
            tab[it, 0] = S_NOISE * math.sqrt(max(sigma_hat ** 2 - sigma ** 2, 0.0))  # churn scale
            tab[it, 1] = 1.0 / sigma_hat                                             # 1/sigma_hat
            tab[it, 2] = sigma_next - sigma_hat                                      # Euler coef
            tab[it, 3] = 1.0 / sigma_next                                            # 1/sigma_next
            tab[it, 4] = 0.5 * (sigma - sigma_hat)   # Heun coef; faithful to source
            tab[it, 5] = (sigma - sigma_next) if renoise else 0.0                    # renoise scale
            tab[it, 6:10] = [_c_in(sigma_hat), _c_skip(sigma_hat),
                             _c_out(sigma_hat), _c_noise(sigma_hat)]
            tab[it, 10:14] = [_c_in(sigma_next), _c_skip(sigma_next),
                              _c_out(sigma_next), _c_noise(sigma_next)]
            it += 1
    return tab, float(sigmas[0]), num_iters


# ----------------------------- fused RePaint kernel --------------------------------
def inpaint_kernel(scal_ref,                                   # SMEM (num_iters, _NS)
                   inpm_ref, keep_ref, x0_ref, eps_ref, reps_ref,
                   w1_ref, wt_ref, bt_ref, w2_ref, b2_ref,
                   out_ref):
    """Single invocation: the entire RePaint loop runs as an unrolled fori_loop.

    x is a register-carried fori_loop value; out_ref is written exactly once at
    the end (finalize fused into that single store)."""
    num_iters = eps_ref.shape[0]                 # static

    # Resident operands (each DMA'd once; total resident set < 10 KB).
    inpm = inpm_ref[...]                         # inpaint * mask
    keep = keep_ref[...]                         # 1 - mask  (== ~inpaint_mask)
    w1 = w1_ref[...]                             # (H, C)
    wt = wt_ref[...]                             # (H, 1)
    bt_ = bt_ref[...]                            # (H, 1)
    w2 = w2_ref[...]                             # (C, H)
    b2 = b2_ref[...]                             # (C, 1)

    cdim = w1.shape[1]                           # static channel count
    use_vpu_mac = cdim <= 8                      # K tiny -> skip the MXU entirely
    w1_cols = [w1[:, c:c + 1] for c in range(cdim)] if use_vpu_mac else None

    def denoise(xv, c_in_v, c_skip_v, c_out_v, c_noise_v):
        """Batch-fused Elucidated denoise on a (C, B*T) slab, clamp=True."""
        xi = c_in_v * xv                                     # (C, BT)   VPU
        t_emb = wt * c_noise_v + bt_                         # (H, 1)    VPU (2 ops)
        if use_vpu_mac:
            # First layer as unrolled broadcast-MACs over the C columns of W1
            # (K = C <= 8): avoids an MXU push + result-FIFO pop on the
            # latency-critical chain.
            h = t_emb
            for c in range(cdim):
                h = h + w1_cols[c] * xi[c:c + 1, :]          # (H,1)*(1,BT) -> (H,BT)
        else:
            h = jnp.dot(w1, xi, preferred_element_type=jnp.float32) + t_emb
        g = jax.nn.gelu(h, approximate=True)                 # EUP
        xp = jnp.dot(w2, g, preferred_element_type=jnp.float32) + b2   # MXU (only one)
        return jnp.clip(c_skip_v * xv + c_out_v * xp, -1.0, 1.0)

    def body(it, xv):
        # Per-iteration scalars from SMEM.
        churn_scale = scal_ref[it, 0]            # s_noise * sqrt(sigma_hat^2 - sigma^2)
        inv_sigma_hat = scal_ref[it, 1]
        euler_coef = scal_ref[it, 2]             # sigma_next - sigma_hat
        inv_sigma_next = scal_ref[it, 3]
        heun_coef = scal_ref[it, 4]              # 0.5 * (sigma - sigma_hat)
        renoise_scale = scal_ref[it, 5]          # sigma - sigma_next

        x_hat = xv * keep + inpm + churn_scale * eps_ref[it]

        # First denoiser evaluation at sigma_hat.
        den = denoise(x_hat, scal_ref[it, 6], scal_ref[it, 7],
                      scal_ref[it, 8], scal_ref[it, 9])
        d = (x_hat - den) * inv_sigma_hat
        x_next = x_hat + euler_coef * d

        # Second-order (Heun) correction.  sigma_next > 0 for every iteration of
        # the RePaint forward loop (Karras schedule, i+1 <= num_steps-1), so this
        # branch is statically always taken -- matching `if sigma_next != 0`.
        den2 = denoise(x_next, scal_ref[it, 10], scal_ref[it, 11],
                       scal_ref[it, 12], scal_ref[it, 13])
        d_prime = (x_next - den2) * inv_sigma_next
        x_next = x_hat + heun_coef * (d + d_prime)

        # Renoise (scale is 0 when renoise would be False).
        return x_next + renoise_scale * reps_ref[it]

    # Whole RePaint loop, fully unrolled, x carried in registers.
    x = lax.fori_loop(0, num_iters, body, x0_ref[...], unroll=True)

    # Single store: fused finalize (clamp + paste known region).
    out_ref[...] = jnp.clip(x, -1.0, 1.0) * keep + inpm


# ----------------------------- pallas_call builder ----------------------------------
@functools.lru_cache(maxsize=None)
def _make_inpaint_fn(c, bt_lanes, h, num_iters):
    const2d = lambda i, s: (0, 0)
    const3d = lambda i, s: (0, 0, 0)

    grid_spec = pltpu.PrefetchScalarGridSpec(
        num_scalar_prefetch=1,                 # scalar table -> SMEM
        grid=(1,),                             # single grid step: loop is in-kernel
        in_specs=[
            pl.BlockSpec((c, bt_lanes), const2d),              # inpaint * mask (resident)
            pl.BlockSpec((c, bt_lanes), const2d),              # 1 - mask       (resident)
            pl.BlockSpec((c, bt_lanes), const2d),              # x0             (resident)
            pl.BlockSpec((num_iters, c, bt_lanes), const3d),   # eps  (all iters, resident)
            pl.BlockSpec((num_iters, c, bt_lanes), const3d),   # reps (all iters, resident)
            pl.BlockSpec((h, c), const2d),                     # W1 (resident)
            pl.BlockSpec((h, 1), const2d),                     # Wt
            pl.BlockSpec((h, 1), const2d),                     # Bt
            pl.BlockSpec((c, h), const2d),                     # W2
            pl.BlockSpec((c, 1), const2d),                     # B2
        ],
        out_specs=pl.BlockSpec((c, bt_lanes), const2d),        # written once
    )
    call = pl.pallas_call(
        inpaint_kernel,
        out_shape=jax.ShapeDtypeStruct((c, bt_lanes), jnp.float32),
        grid_spec=grid_spec,
        compiler_params=pltpu.CompilerParams(
            dimension_semantics=("arbitrary",)),
    )
    return jax.jit(call)


# ----------------------------- DiffusionInpainter.forward ---------------------------
def diffusion_inpainter_forward(inpaint, inpaint_mask, params, key,
                                num_steps=NUM_STEPS, num_resamples=NUM_RESAMPLES):
    """inpaint: (B, C, T) f32, inpaint_mask: (B, C, T) bool."""
    b, c, t = inpaint.shape
    bt = b * t
    tab, sigma0, num_iters = _build_scalar_table(num_steps, num_resamples)

    # Lane-friendly working layout: channels on sublanes, batch*time on lanes.
    # (At larger sizes keep B*T a multiple of 128 and C a multiple of 8.)
    def to_slab(a):
        return jnp.transpose(a, (1, 0, 2)).reshape(c, bt)

    mask_f = inpaint_mask.astype(jnp.float32)
    inpm = to_slab(inpaint * mask_f)         # inpaint * mask  (precomputed once)
    keep = to_slab(1.0 - mask_f)             # ~mask

    # All randomness generated once, up front (no per-step host RNG dispatch).
    key, k0, ke, kr = jax.random.split(key, 4)
    x0 = sigma0 * jax.random.normal(k0, (c, bt), jnp.float32)
    eps = jax.random.normal(ke, (num_iters, c, bt), jnp.float32)
    reps = jax.random.normal(kr, (num_iters, c, bt), jnp.float32)

    fn = _make_inpaint_fn(c, bt, params["w1"].shape[0], num_iters)
    out_slab = fn(jnp.asarray(tab), inpm, keep, x0, eps, reps,
                  params["w1"], params["wt"], params["bt"],
                  params["w2"], params["b2"])

    # Back to (B, C, T).
    return jnp.transpose(out_slab.reshape(c, b, t), (1, 0, 2))


# ----------------------------- main --------------------------------------------------
if __name__ == "__main__":
    key = jax.random.PRNGKey(0)
    kw1, kwt, kbt, kw2, kdata, kloop = jax.random.split(key, 6)

    # Deterministic synthetic denoiser-net parameters.
    params = {
        "w1": (jax.random.normal(kw1, (H, C), jnp.float32) / math.sqrt(C)),
        "wt": (jax.random.normal(kwt, (H, 1), jnp.float32) * 0.5),
        "bt": (jax.random.normal(kbt, (H, 1), jnp.float32) * 0.1),
        "w2": (jax.random.normal(kw2, (C, H), jnp.float32) / math.sqrt(H)),
        "b2": jnp.zeros((C, 1), jnp.float32),
    }

    # Example inputs: audio-like (B, C, T); known region = second half of time axis.
    inpaint = jnp.tanh(jax.random.normal(kdata, (B, C, T), jnp.float32))
    mask_np = np.zeros((B, C, T), dtype=bool)
    mask_np[:, :, T // 2:] = True            # True => keep `inpaint` values there
    inpaint_mask = jnp.asarray(mask_np)

    out = diffusion_inpainter_forward(inpaint, inpaint_mask, params, kloop)
    out = jax.block_until_ready(out)

    assert out.shape == (B, C, T) and out.dtype == jnp.float32
    assert bool(jnp.all(jnp.isfinite(out)))
    # Known (masked) region must equal the inpaint reference exactly.
    assert bool(jnp.allclose(out[:, :, T // 2:], inpaint[:, :, T // 2:]))
    print("KERNEL_OK")
</pallas_src>

<mosaic_0001>
module attributes {stable_mosaic.version = 11 : i64} {
  func.func @inpaint_kernel(%arg0: i32, %arg1: memref<6x16xf32, #tpu.memory_space<smem>>, %arg2: memref<4x32xf32, #tpu.memory_space<vmem>>, %arg3: memref<4x32xf32, #tpu.memory_space<vmem>>, %arg4: memref<4x32xf32, #tpu.memory_space<vmem>>, %arg5: memref<6x4x32xf32, #tpu.memory_space<vmem>>, %arg6: memref<6x4x32xf32, #tpu.memory_space<vmem>>, %arg7: memref<32x4xf32, #tpu.memory_space<vmem>>, %arg8: memref<32x1xf32, #tpu.memory_space<vmem>>, %arg9: memref<32x1xf32, #tpu.memory_space<vmem>>, %arg10: memref<4x32xf32, #tpu.memory_space<vmem>>, %arg11: memref<4x1xf32, #tpu.memory_space<vmem>>, %arg12: memref<4x32xf32, #tpu.memory_space<vmem>>) attributes {dimension_semantics = [#tpu.dimension_semantics<arbitrary>], iteration_bounds = array<i64: 1>, scalar_prefetch = 1 : i64, scratch_operands = 0 : i64, tpu.core_type = #tpu.core_type<tc>, window_params = [{pipeline_mode = #tpu.pipeline_mode<synchronous>, transform_indices = @transform_0, window_bounds = array<i64: 4, 32>}, {pipeline_mode = #tpu.pipeline_mode<synchronous>, transform_indices = @transform_1, window_bounds = array<i64: 4, 32>}, {pipeline_mode = #tpu.pipeline_mode<synchronous>, transform_indices = @transform_2, window_bounds = array<i64: 4, 32>}, {pipeline_mode = #tpu.pipeline_mode<synchronous>, transform_indices = @transform_3, window_bounds = array<i64: 6, 4, 32>}, {pipeline_mode = #tpu.pipeline_mode<synchronous>, transform_indices = @transform_4, window_bounds = array<i64: 6, 4, 32>}, {pipeline_mode = #tpu.pipeline_mode<synchronous>, transform_indices = @transform_5, window_bounds = array<i64: 32, 4>}, {pipeline_mode = #tpu.pipeline_mode<synchronous>, transform_indices = @transform_6, window_bounds = array<i64: 32, 1>}, {pipeline_mode = #tpu.pipeline_mode<synchronous>, transform_indices = @transform_7, window_bounds = array<i64: 32, 1>}, {pipeline_mode = #tpu.pipeline_mode<synchronous>, transform_indices = @transform_8, window_bounds = array<i64: 4, 32>}, {pipeline_mode = #tpu.pipeline_mode<synchronous>, transform_indices = @transform_9, window_bounds = array<i64: 4, 1>}, {pipeline_mode = #tpu.pipeline_mode<synchronous>, transform_indices = @transform_10, window_bounds = array<i64: 4, 32>}]} {
    %c0 = arith.constant 0 : index
    %c0_0 = arith.constant 0 : index
    %0 = vector.load %arg2[%c0, %c0_0] : memref<4x32xf32, #tpu.memory_space<vmem>>, vector<4x32xf32>
    %c0_1 = arith.constant 0 : index
    %c0_2 = arith.constant 0 : index
    %1 = vector.load %arg3[%c0_1, %c0_2] : memref<4x32xf32, #tpu.memory_space<vmem>>, vector<4x32xf32>
    %c0_3 = arith.constant 0 : index
    %c0_4 = arith.constant 0 : index
    %2 = vector.load %arg7[%c0_3, %c0_4] : memref<32x4xf32, #tpu.memory_space<vmem>>, vector<32x4xf32>
    %c0_5 = arith.constant 0 : index
    %c0_6 = arith.constant 0 : index
    %3 = vector.load %arg8[%c0_5, %c0_6] : memref<32x1xf32, #tpu.memory_space<vmem>>, vector<32x1xf32>
    %c0_7 = arith.constant 0 : index
    %c0_8 = arith.constant 0 : index
    %4 = vector.load %arg9[%c0_7, %c0_8] : memref<32x1xf32, #tpu.memory_space<vmem>>, vector<32x1xf32>
    %c0_9 = arith.constant 0 : index
    %c0_10 = arith.constant 0 : index
    %5 = vector.load %arg10[%c0_9, %c0_10] : memref<4x32xf32, #tpu.memory_space<vmem>>, vector<4x32xf32>
    %c0_11 = arith.constant 0 : index
    %c0_12 = arith.constant 0 : index
    %6 = vector.load %arg11[%c0_11, %c0_12] : memref<4x1xf32, #tpu.memory_space<vmem>>, vector<4x1xf32>
    %7 = vector.extract_strided_slice %2 {offsets = [0, 0], sizes = [32, 1], strides = [1, 1]} : vector<32x4xf32> to vector<32x1xf32>
    %8 = vector.extract_strided_slice %2 {offsets = [0, 1], sizes = [32, 1], strides = [1, 1]} : vector<32x4xf32> to vector<32x1xf32>
    %9 = vector.extract_strided_slice %2 {offsets = [0, 2], sizes = [32, 1], strides = [1, 1]} : vector<32x4xf32> to vector<32x1xf32>
    %10 = vector.extract_strided_slice %2 {offsets = [0, 3], sizes = [32, 1], strides = [1, 1]} : vector<32x4xf32> to vector<32x1xf32>
    %c0_13 = arith.constant 0 : index
    %c0_14 = arith.constant 0 : index
    %11 = vector.load %arg4[%c0_13, %c0_14] : memref<4x32xf32, #tpu.memory_space<vmem>>, vector<4x32xf32>
    %c0_i32 = arith.constant 0 : i32
    %12 = arith.index_cast %c0_i32 : i32 to index
    %c0_15 = arith.constant 0 : index
    %13 = memref.load %arg1[%12, %c0_15] : memref<6x16xf32, #tpu.memory_space<smem>>
    %14 = arith.index_cast %c0_i32 : i32 to index
    %c1 = arith.constant 1 : index
    %15 = memref.load %arg1[%14, %c1] : memref<6x16xf32, #tpu.memory_space<smem>>
    %16 = arith.index_cast %c0_i32 : i32 to index
    %c2 = arith.constant 2 : index
    %17 = memref.load %arg1[%16, %c2] : memref<6x16xf32, #tpu.memory_space<smem>>
    %18 = arith.index_cast %c0_i32 : i32 to index
    %c3 = arith.constant 3 : index
    %19 = memref.load %arg1[%18, %c3] : memref<6x16xf32, #tpu.memory_space<smem>>
    %20 = arith.index_cast %c0_i32 : i32 to index
    %c4 = arith.constant 4 : index
    %21 = memref.load %arg1[%20, %c4] : memref<6x16xf32, #tpu.memory_space<smem>>
    %22 = arith.index_cast %c0_i32 : i32 to index
    %c5 = arith.constant 5 : index
    %23 = memref.load %arg1[%22, %c5] : memref<6x16xf32, #tpu.memory_space<smem>>
    %24 = arith.mulf %11, %1 : vector<4x32xf32>
    %25 = arith.addf %24, %0 : vector<4x32xf32>
    %26 = arith.index_cast %c0_i32 : i32 to index
    %c0_16 = arith.constant 0 : index
    %c0_17 = arith.constant 0 : index
    %27 = vector.load %arg5[%26, %c0_16, %c0_17] : memref<6x4x32xf32, #tpu.memory_space<vmem>>, vector<1x4x32xf32>
    %28 = vector.shape_cast %27 : vector<1x4x32xf32> to vector<4x32xf32>
    %29 = vector.broadcast %13 : f32 to vector<4x32xf32>
    %30 = arith.mulf %29, %28 : vector<4x32xf32>
    %31 = arith.addf %25, %30 : vector<4x32xf32>
    %32 = arith.index_cast %c0_i32 : i32 to index
    %c6 = arith.constant 6 : index
    %33 = memref.load %arg1[%32, %c6] : memref<6x16xf32, #tpu.memory_space<smem>>
    %34 = arith.index_cast %c0_i32 : i32 to index
    %c7 = arith.constant 7 : index
    %35 = memref.load %arg1[%34, %c7] : memref<6x16xf32, #tpu.memory_space<smem>>
    %36 = arith.index_cast %c0_i32 : i32 to index
    %c8 = arith.constant 8 : index
    %37 = memref.load %arg1[%36, %c8] : memref<6x16xf32, #tpu.memory_space<smem>>
    %38 = arith.index_cast %c0_i32 : i32 to index
    %c9 = arith.constant 9 : index
    %39 = memref.load %arg1[%38, %c9] : memref<6x16xf32, #tpu.memory_space<smem>>
    %40 = vector.broadcast %33 : f32 to vector<4x32xf32>
    %41 = arith.mulf %40, %31 : vector<4x32xf32>
    %42 = vector.broadcast %39 : f32 to vector<32x1xf32>
    %43 = arith.mulf %3, %42 : vector<32x1xf32>
    %44 = arith.addf %43, %4 : vector<32x1xf32>
    %45 = vector.extract_strided_slice %41 {offsets = [0, 0], sizes = [1, 32], strides = [1, 1]} : vector<4x32xf32> to vector<1x32xf32>
    %46 = vector.broadcast %7 : vector<32x1xf32> to vector<32x32xf32>
    %47 = vector.broadcast %45 : vector<1x32xf32> to vector<32x32xf32>
    %48 = arith.mulf %46, %47 : vector<32x32xf32>
    %49 = vector.broadcast %44 : vector<32x1xf32> to vector<32x32xf32>
    %50 = arith.addf %49, %48 : vector<32x32xf32>
    %51 = vector.extract_strided_slice %41 {offsets = [1, 0], sizes = [1, 32], strides = [1, 1]} : vector<4x32xf32> to vector<1x32xf32>
    %52 = vector.broadcast %8 : vector<32x1xf32> to vector<32x32xf32>
    %53 = vector.broadcast %51 : vector<1x32xf32> to vector<32x32xf32>
    %54 = arith.mulf %52, %53 : vector<32x32xf32>
    %55 = arith.addf %50, %54 : vector<32x32xf32>
    %56 = vector.extract_strided_slice %41 {offsets = [2, 0], sizes = [1, 32], strides = [1, 1]} : vector<4x32xf32> to vector<1x32xf32>
    %57 = vector.broadcast %9 : vector<32x1xf32> to vector<32x32xf32>
    %58 = vector.broadcast %56 : vector<1x32xf32> to vector<32x32xf32>
    %59 = arith.mulf %57, %58 : vector<32x32xf32>
    %60 = arith.addf %55, %59 : vector<32x32xf32>
    %61 = vector.extract_strided_slice %41 {offsets = [3, 0], sizes = [1, 32], strides = [1, 1]} : vector<4x32xf32> to vector<1x32xf32>
    %62 = vector.broadcast %10 : vector<32x1xf32> to vector<32x32xf32>
    %63 = vector.broadcast %61 : vector<1x32xf32> to vector<32x32xf32>
    %64 = arith.mulf %62, %63 : vector<32x32xf32>
    %65 = arith.addf %60, %64 : vector<32x32xf32>
    %66 = arith.mulf %65, %65 : vector<32x32xf32>
    %67 = arith.mulf %65, %66 : vector<32x32xf32>
    %cst = arith.constant 4.471500e-02 : f32
    %68 = vector.broadcast %cst : f32 to vector<32x32xf32>
    %69 = arith.mulf %68, %67 : vector<32x32xf32>
    %70 = arith.addf %65, %69 : vector<32x32xf32>
    %cst_18 = arith.constant 0.797884583 : f32
    %71 = vector.broadcast %cst_18 : f32 to vector<32x32xf32>
    %72 = arith.mulf %71, %70 : vector<32x32xf32>
    %73 = math.tanh %72 : vector<32x32xf32>
    %cst_19 = arith.constant 1.000000e+00 : f32
    %74 = vector.broadcast %cst_19 : f32 to vector<32x32xf32>
    %75 = arith.addf %74, %73 : vector<32x32xf32>
    %cst_20 = arith.constant 5.000000e-01 : f32
    %76 = vector.broadcast %cst_20 : f32 to vector<32x32xf32>
    %77 = arith.mulf %76, %75 : vector<32x32xf32>
    %78 = arith.mulf %65, %77 : vector<32x32xf32>
    %cst_21 = arith.constant dense<0.000000e+00> : vector<4x32xf32>
    %79 = tpu.matmul %5, %78, %cst_21 {dimension_numbers = #tpu.dot_dimension_numbers<[1], [0], [0], [1], [0, 0, 1, 1], [], []>} : vector<4x32xf32>, vector<32x32xf32>, vector<4x32xf32> -> vector<4x32xf32>
    %80 = vector.broadcast %6 : vector<4x1xf32> to vector<4x32xf32>
    %81 = arith.addf %79, %80 : vector<4x32xf32>
    %82 = vector.broadcast %35 : f32 to vector<4x32xf32>
    %83 = arith.mulf %82, %31 : vector<4x32xf32>
    %84 = vector.broadcast %37 : f32 to vector<4x32xf32>
    %85 = arith.mulf %84, %81 : vector<4x32xf32>
    %86 = arith.addf %83, %85 : vector<4x32xf32>
    %cst_22 = arith.constant -1.000000e+00 : f32
    %cst_23 = arith.constant 1.000000e+00 : f32
    %87 = vector.broadcast %cst_22 : f32 to vector<4x32xf32>
    %88 = arith.maximumf %87, %86 : vector<4x32xf32>
    %89 = vector.broadcast %cst_23 : f32 to vector<4x32xf32>
    %90 = arith.minimumf %89, %88 : vector<4x32xf32>
    %91 = arith.subf %31, %90 : vector<4x32xf32>
    %92 = vector.broadcast %15 : f32 to vector<4x32xf32>
    %93 = arith.mulf %91, %92 : vector<4x32xf32>
    %94 = vector.broadcast %17 : f32 to vector<4x32xf32>
    %95 = arith.mulf %94, %93 : vector<4x32xf32>
    %96 = arith.addf %31, %95 : vector<4x32xf32>
    %97 = arith.index_cast %c0_i32 : i32 to index
    %c10 = arith.constant 10 : index
    %98 = memref.load %arg1[%97, %c10] : memref<6x16xf32, #tpu.memory_space<smem>>
    %99 = arith.index_cast %c0_i32 : i32 to index
    %c11 = arith.constant 11 : index
    %100 = memref.load %arg1[%99, %c11] : memref<6x16xf32, #tpu.memory_space<smem>>
    %101 = arith.index_cast %c0_i32 : i32 to index
    %c12 = arith.constant 12 : index
    %102 = memref.load %arg1[%101, %c12] : memref<6x16xf32, #tpu.memory_space<smem>>
    %103 = arith.index_cast %c0_i32 : i32 to index
    %c13 = arith.constant 13 : index
    %104 = memref.load %arg1[%103, %c13] : memref<6x16xf32, #tpu.memory_space<smem>>
    %105 = vector.broadcast %98 : f32 to vector<4x32xf32>
    %106 = arith.mulf %105, %96 : vector<4x32xf32>
    %107 = vector.broadcast %104 : f32 to vector<32x1xf32>
    %108 = arith.mulf %3, %107 : vector<32x1xf32>
    %109 = arith.addf %108, %4 : vector<32x1xf32>
    %110 = vector.extract_strided_slice %106 {offsets = [0, 0], sizes = [1, 32], strides = [1, 1]} : vector<4x32xf32> to vector<1x32xf32>
    %111 = vector.broadcast %7 : vector<32x1xf32> to vector<32x32xf32>
    %112 = vector.broadcast %110 : vector<1x32xf32> to vector<32x32xf32>
    %113 = arith.mulf %111, %112 : vector<32x32xf32>
    %114 = vector.broadcast %109 : vector<32x1xf32> to vector<32x32xf32>
    %115 = arith.addf %114, %113 : vector<32x32xf32>
    %116 = vector.extract_strided_slice %106 {offsets = [1, 0], sizes = [1, 32], strides = [1, 1]} : vector<4x32xf32> to vector<1x32xf32>
    %117 = vector.broadcast %8 : vector<32x1xf32> to vector<32x32xf32>
    %118 = vector.broadcast %116 : vector<1x32xf32> to vector<32x32xf32>
    %119 = arith.mulf %117, %118 : vector<32x32xf32>
    %120 = arith.addf %115, %119 : vector<32x32xf32>
    %121 = vector.extract_strided_slice %106 {offsets = [2, 0], sizes = [1, 32], strides = [1, 1]} : vector<4x32xf32> to vector<1x32xf32>
    %122 = vector.broadcast %9 : vector<32x1xf32> to vector<32x32xf32>
    %123 = vector.broadcast %121 : vector<1x32xf32> to vector<32x32xf32>
    %124 = arith.mulf %122, %123 : vector<32x32xf32>
    %125 = arith.addf %120, %124 : vector<32x32xf32>
    %126 = vector.extract_strided_slice %106 {offsets = [3, 0], sizes = [1, 32], strides = [1, 1]} : vector<4x32xf32> to vector<1x32xf32>
    %127 = vector.broadcast %10 : vector<32x1xf32> to vector<32x32xf32>
    %128 = vector.broadcast %126 : vector<1x32xf32> to vector<32x32xf32>
    %129 = arith.mulf %127, %128 : vector<32x32xf32>
    %130 = arith.addf %125, %129 : vector<32x32xf32>
    %131 = arith.mulf %130, %130 : vector<32x32xf32>
    %132 = arith.mulf %130, %131 : vector<32x32xf32>
    %cst_24 = arith.constant 4.471500e-02 : f32
    %133 = vector.broadcast %cst_24 : f32 to vector<32x32xf32>
    %134 = arith.mulf %133, %132 : vector<32x32xf32>
    %135 = arith.addf %130, %134 : vector<32x32xf32>
    %cst_25 = arith.constant 0.797884583 : f32
    %136 = vector.broadcast %cst_25 : f32 to vector<32x32xf32>
    %137 = arith.mulf %136, %135 : vector<32x32xf32>
    %138 = math.tanh %137 : vector<32x32xf32>
    %cst_26 = arith.constant 1.000000e+00 : f32
    %139 = vector.broadcast %cst_26 : f32 to vector<32x32xf32>
    %140 = arith.addf %139, %138 : vector<32x32xf32>
    %cst_27 = arith.constant 5.000000e-01 : f32
    %141 = vector.broadcast %cst_27 : f32 to vector<32x32xf32>
    %142 = arith.mulf %141, %140 : vector<32x32xf32>
    %143 = arith.mulf %130, %142 : vector<32x32xf32>
    %cst_28 = arith.constant dense<0.000000e+00> : vector<4x32xf32>
    %144 = tpu.matmul %5, %143, %cst_28 {dimension_numbers = #tpu.dot_dimension_numbers<[1], [0], [0], [1], [0, 0, 1, 1], [], []>} : vector<4x32xf32>, vector<32x32xf32>, vector<4x32xf32> -> vector<4x32xf32>
    %145 = vector.broadcast %6 : vector<4x1xf32> to vector<4x32xf32>
    %146 = arith.addf %144, %145 : vector<4x32xf32>
    %147 = vector.broadcast %100 : f32 to vector<4x32xf32>
    %148 = arith.mulf %147, %96 : vector<4x32xf32>
    %149 = vector.broadcast %102 : f32 to vector<4x32xf32>
    %150 = arith.mulf %149, %146 : vector<4x32xf32>
    %151 = arith.addf %148, %150 : vector<4x32xf32>
    %cst_29 = arith.constant -1.000000e+00 : f32
    %cst_30 = arith.constant 1.000000e+00 : f32
    %152 = vector.broadcast %cst_29 : f32 to vector<4x32xf32>
    %153 = arith.maximumf %152, %151 : vector<4x32xf32>
    %154 = vector.broadcast %cst_30 : f32 to vector<4x32xf32>
    %155 = arith.minimumf %154, %153 : vector<4x32xf32>
    %156 = arith.subf %96, %155 : vector<4x32xf32>
    %157 = vector.broadcast %19 : f32 to vector<4x32xf32>
    %158 = arith.mulf %156, %157 : vector<4x32xf32>
    %159 = arith.addf %93, %158 : vector<4x32xf32>
    %160 = vector.broadcast %21 : f32 to vector<4x32xf32>
    %161 = arith.mulf %160, %159 : vector<4x32xf32>
    %162 = arith.addf %31, %161 : vector<4x32xf32>
    %163 = arith.index_cast %c0_i32 : i32 to index
    %c0_31 = arith.constant 0 : index
    %c0_32 = arith.constant 0 : index
    %164 = vector.load %arg6[%163, %c0_31, %c0_32] : memref<6x4x32xf32, #tpu.memory_space<vmem>>, vector<1x4x32xf32>
    %165 = vector.shape_cast %164 : vector<1x4x32xf32> to vector<4x32xf32>
    %166 = vector.broadcast %23 : f32 to vector<4x32xf32>
    %167 = arith.mulf %166, %165 : vector<4x32xf32>
    %168 = arith.addf %162, %167 : vector<4x32xf32>
    %c1_i32 = arith.constant 1 : i32
    %169 = arith.index_cast %c1_i32 : i32 to index
    %c0_33 = arith.constant 0 : index
    %170 = memref.load %arg1[%169, %c0_33] : memref<6x16xf32, #tpu.memory_space<smem>>
    %171 = arith.index_cast %c1_i32 : i32 to index
    %c1_34 = arith.constant 1 : index
    %172 = memref.load %arg1[%171, %c1_34] : memref<6x16xf32, #tpu.memory_space<smem>>
    %173 = arith.index_cast %c1_i32 : i32 to index
    %c2_35 = arith.constant 2 : index
    %174 = memref.load %arg1[%173, %c2_35] : memref<6x16xf32, #tpu.memory_space<smem>>
    %175 = arith.index_cast %c1_i32 : i32 to index
    %c3_36 = arith.constant 3 : index
    %176 = memref.load %arg1[%175, %c3_36] : memref<6x16xf32, #tpu.memory_space<smem>>
    %177 = arith.index_cast %c1_i32 : i32 to index
    %c4_37 = arith.constant 4 : index
    %178 = memref.load %arg1[%177, %c4_37] : memref<6x16xf32, #tpu.memory_space<smem>>
    %179 = arith.index_cast %c1_i32 : i32 to index
    %c5_38 = arith.constant 5 : index
    %180 = memref.load %arg1[%179, %c5_38] : memref<6x16xf32, #tpu.memory_space<smem>>
    %181 = arith.mulf %168, %1 : vector<4x32xf32>
    %182 = arith.addf %181, %0 : vector<4x32xf32>
    %183 = arith.index_cast %c1_i32 : i32 to index
    %c0_39 = arith.constant 0 : index
    %c0_40 = arith.constant 0 : index
    %184 = vector.load %arg5[%183, %c0_39, %c0_40] : memref<6x4x32xf32, #tpu.memory_space<vmem>>, vector<1x4x32xf32>
    %185 = vector.shape_cast %184 : vector<1x4x32xf32> to vector<4x32xf32>
    %186 = vector.broadcast %170 : f32 to vector<4x32xf32>
    %187 = arith.mulf %186, %185 : vector<4x32xf32>
    %188 = arith.addf %182, %187 : vector<4x32xf32>
    %189 = arith.index_cast %c1_i32 : i32 to index
    %c6_41 = arith.constant 6 : index
    %190 = memref.load %arg1[%189, %c6_41] : memref<6x16xf32, #tpu.memory_space<smem>>
    %191 = arith.index_cast %c1_i32 : i32 to index
    %c7_42 = arith.constant 7 : index
    %192 = memref.load %arg1[%191, %c7_42] : memref<6x16xf32, #tpu.memory_space<smem>>
    %193 = arith.index_cast %c1_i32 : i32 to index
    %c8_43 = arith.constant 8 : index
    %194 = memref.load %arg1[%193, %c8_43] : memref<6x16xf32, #tpu.memory_space<smem>>
    %195 = arith.index_cast %c1_i32 : i32 to index
    %c9_44 = arith.constant 9 : index
    %196 = memref.load %arg1[%195, %c9_44] : memref<6x16xf32, #tpu.memory_space<smem>>
    %197 = vector.broadcast %190 : f32 to vector<4x32xf32>
    %198 = arith.mulf %197, %188 : vector<4x32xf32>
    %199 = vector.broadcast %196 : f32 to vector<32x1xf32>
    %200 = arith.mulf %3, %199 : vector<32x1xf32>
    %201 = arith.addf %200, %4 : vector<32x1xf32>
    %202 = vector.extract_strided_slice %198 {offsets = [0, 0], sizes = [1, 32], strides = [1, 1]} : vector<4x32xf32> to vector<1x32xf32>
    %203 = vector.broadcast %7 : vector<32x1xf32> to vector<32x32xf32>
    %204 = vector.broadcast %202 : vector<1x32xf32> to vector<32x32xf32>
    %205 = arith.mulf %203, %204 : vector<32x32xf32>
    %206 = vector.broadcast %201 : vector<32x1xf32> to vector<32x32xf32>
    %207 = arith.addf %206, %205 : vector<32x32xf32>
    %208 = vector.extract_strided_slice %198 {offsets = [1, 0], sizes = [1, 32], strides = [1, 1]} : vector<4x32xf32> to vector<1x32xf32>
    %209 = vector.broadcast %8 : vector<32x1xf32> to vector<32x32xf32>
    %210 = vector.broadcast %208 : vector<1x32xf32> to vector<32x32xf32>
    %211 = arith.mulf %209, %210 : vector<32x32xf32>
    %212 = arith.addf %207, %211 : vector<32x32xf32>
    %213 = vector.extract_strided_slice %198 {offsets = [2, 0], sizes = [1, 32], strides = [1, 1]} : vector<4x32xf32> to vector<1x32xf32>
    %214 = vector.broadcast %9 : vector<32x1xf32> to vector<32x32xf32>
    %215 = vector.broadcast %213 : vector<1x32xf32> to vector<32x32xf32>
    %216 = arith.mulf %214, %215 : vector<32x32xf32>
    %217 = arith.addf %212, %216 : vector<32x32xf32>
    %218 = vector.extract_strided_slice %198 {offsets = [3, 0], sizes = [1, 32], strides = [1, 1]} : vector<4x32xf32> to vector<1x32xf32>
    %219 = vector.broadcast %10 : vector<32x1xf32> to vector<32x32xf32>
    %220 = vector.broadcast %218 : vector<1x32xf32> to vector<32x32xf32>
    %221 = arith.mulf %219, %220 : vector<32x32xf32>
    %222 = arith.addf %217, %221 : vector<32x32xf32>
    %223 = arith.mulf %222, %222 : vector<32x32xf32>
    %224 = arith.mulf %222, %223 : vector<32x32xf32>
    %cst_45 = arith.constant 4.471500e-02 : f32
    %225 = vector.broadcast %cst_45 : f32 to vector<32x32xf32>
    %226 = arith.mulf %225, %224 : vector<32x32xf32>
    %227 = arith.addf %222, %226 : vector<32x32xf32>
    %cst_46 = arith.constant 0.797884583 : f32
    %228 = vector.broadcast %cst_46 : f32 to vector<32x32xf32>
    %229 = arith.mulf %228, %227 : vector<32x32xf32>
    %230 = math.tanh %229 : vector<32x32xf32>
    %cst_47 = arith.constant 1.000000e+00 : f32
    %231 = vector.broadcast %cst_47 : f32 to vector<32x32xf32>
    %232 = arith.addf %231, %230 : vector<32x32xf32>
    %cst_48 = arith.constant 5.000000e-01 : f32
    %233 = vector.broadcast %cst_48 : f32 to vector<32x32xf32>
    %234 = arith.mulf %233, %232 : vector<32x32xf32>
    %235 = arith.mulf %222, %234 : vector<32x32xf32>
    %cst_49 = arith.constant dense<0.000000e+00> : vector<4x32xf32>
    %236 = tpu.matmul %5, %235, %cst_49 {dimension_numbers = #tpu.dot_dimension_numbers<[1], [0], [0], [1], [0, 0, 1, 1], [], []>} : vector<4x32xf32>, vector<32x32xf32>, vector<4x32xf32> -> vector<4x32xf32>
    %237 = vector.broadcast %6 : vector<4x1xf32> to vector<4x32xf32>
    %238 = arith.addf %236, %237 : vector<4x32xf32>
    %239 = vector.broadcast %192 : f32 to vector<4x32xf32>
    %240 = arith.mulf %239, %188 : vector<4x32xf32>
    %241 = vector.broadcast %194 : f32 to vector<4x32xf32>
    %242 = arith.mulf %241, %238 : vector<4x32xf32>
    %243 = arith.addf %240, %242 : vector<4x32xf32>
    %cst_50 = arith.constant -1.000000e+00 : f32
    %cst_51 = arith.constant 1.000000e+00 : f32
    %244 = vector.broadcast %cst_50 : f32 to vector<4x32xf32>
    %245 = arith.maximumf %244, %243 : vector<4x32xf32>
    %246 = vector.broadcast %cst_51 : f32 to vector<4x32xf32>
    %247 = arith.minimumf %246, %245 : vector<4x32xf32>
    %248 = arith.subf %188, %247 : vector<4x32xf32>
    %249 = vector.broadcast %172 : f32 to vector<4x32xf32>
    %250 = arith.mulf %248, %249 : vector<4x32xf32>
    %251 = vector.broadcast %174 : f32 to vector<4x32xf32>
    %252 = arith.mulf %251, %250 : vector<4x32xf32>
    %253 = arith.addf %188, %252 : vector<4x32xf32>
    %254 = arith.index_cast %c1_i32 : i32 to index
    %c10_52 = arith.constant 10 : index
    %255 = memref.load %arg1[%254, %c10_52] : memref<6x16xf32, #tpu.memory_space<smem>>
    %256 = arith.index_cast %c1_i32 : i32 to index
    %c11_53 = arith.constant 11 : index
    %257 = memref.load %arg1[%256, %c11_53] : memref<6x16xf32, #tpu.memory_space<smem>>
    %258 = arith.index_cast %c1_i32 : i32 to index
    %c12_54 = arith.constant 12 : index
    %259 = memref.load %arg1[%258, %c12_54] : memref<6x16xf32, #tpu.memory_space<smem>>
    %260 = arith.index_cast %c1_i32 : i32 to index
    %c13_55 = arith.constant 13 : index
    %261 = memref.load %arg1[%260, %c13_55] : memref<6x16xf32, #tpu.memory_space<smem>>
    %262 = vector.broadcast %255 : f32 to vector<4x32xf32>
    %263 = arith.mulf %262, %253 : vector<4x32xf32>
    %264 = vector.broadcast %261 : f32 to vector<32x1xf32>
    %265 = arith.mulf %3, %264 : vector<32x1xf32>
    %266 = arith.addf %265, %4 : vector<32x1xf32>
    %267 = vector.extract_strided_slice %263 {offsets = [0, 0], sizes = [1, 32], strides = [1, 1]} : vector<4x32xf32> to vector<1x32xf32>
    %268 = vector.broadcast %7 : vector<32x1xf32> to vector<32x32xf32>
    %269 = vector.broadcast %267 : vector<1x32xf32> to vector<32x32xf32>
    %270 = arith.mulf %268, %269 : vector<32x32xf32>
    %271 = vector.broadcast %266 : vector<32x1xf32> to vector<32x32xf32>
    %272 = arith.addf %271, %270 : vector<32x32xf32>
    %273 = vector.extract_strided_slice %263 {offsets = [1, 0], sizes = [1, 32], strides = [1, 1]} : vector<4x32xf32> to vector<1x32xf32>
    %274 = vector.broadcast %8 : vector<32x1xf32> to vector<32x32xf32>
    %275 = vector.broadcast %273 : vector<1x32xf32> to vector<32x32xf32>
    %276 = arith.mulf %274, %275 : vector<32x32xf32>
    %277 = arith.addf %272, %276 : vector<32x32xf32>
    %278 = vector.extract_strided_slice %263 {offsets = [2, 0], sizes = [1, 32], strides = [1, 1]} : vector<4x32xf32> to vector<1x32xf32>
    %279 = vector.broadcast %9 : vector<32x1xf32> to vector<32x32xf32>
    %280 = vector.broadcast %278 : vector<1x32xf32> to vector<32x32xf32>
    %281 = arith.mulf %279, %280 : vector<32x32xf32>
    %282 = arith.addf %277, %281 : vector<32x32xf32>
    %283 = vector.extract_strided_slice %263 {offsets = [3, 0], sizes = [1, 32], strides = [1, 1]} : vector<4x32xf32> to vector<1x32xf32>
    %284 = vector.broadcast %10 : vector<32x1xf32> to vector<32x32xf32>
    %285 = vector.broadcast %283 : vector<1x32xf32> to vector<32x32xf32>
    %286 = arith.mulf %284, %285 : vector<32x32xf32>
    %287 = arith.addf %282, %286 : vector<32x32xf32>
    %288 = arith.mulf %287, %287 : vector<32x32xf32>
    %289 = arith.mulf %287, %288 : vector<32x32xf32>
    %cst_56 = arith.constant 4.471500e-02 : f32
    %290 = vector.broadcast %cst_56 : f32 to vector<32x32xf32>
    %291 = arith.mulf %290, %289 : vector<32x32xf32>
    %292 = arith.addf %287, %291 : vector<32x32xf32>
    %cst_57 = arith.constant 0.797884583 : f32
    %293 = vector.broadcast %cst_57 : f32 to vector<32x32xf32>
    %294 = arith.mulf %293, %292 : vector<32x32xf32>
    %295 = math.tanh %294 : vector<32x32xf32>
    %cst_58 = arith.constant 1.000000e+00 : f32
    %296 = vector.broadcast %cst_58 : f32 to vector<32x32xf32>
    %297 = arith.addf %296, %295 : vector<32x32xf32>
    %cst_59 = arith.constant 5.000000e-01 : f32
    %298 = vector.broadcast %cst_59 : f32 to vector<32x32xf32>
    %299 = arith.mulf %298, %297 : vector<32x32xf32>
    %300 = arith.mulf %287, %299 : vector<32x32xf32>
    %cst_60 = arith.constant dense<0.000000e+00> : vector<4x32xf32>
    %301 = tpu.matmul %5, %300, %cst_60 {dimension_numbers = #tpu.dot_dimension_numbers<[1], [0], [0], [1], [0, 0, 1, 1], [], []>} : vector<4x32xf32>, vector<32x32xf32>, vector<4x32xf32> -> vector<4x32xf32>
    %302 = vector.broadcast %6 : vector<4x1xf32> to vector<4x32xf32>
    %303 = arith.addf %301, %302 : vector<4x32xf32>
    %304 = vector.broadcast %257 : f32 to vector<4x32xf32>
    %305 = arith.mulf %304, %253 : vector<4x32xf32>
    %306 = vector.broadcast %259 : f32 to vector<4x32xf32>
    %307 = arith.mulf %306, %303 : vector<4x32xf32>
    %308 = arith.addf %305, %307 : vector<4x32xf32>
    %cst_61 = arith.constant -1.000000e+00 : f32
    %cst_62 = arith.constant 1.000000e+00 : f32
    %309 = vector.broadcast %cst_61 : f32 to vector<4x32xf32>
    %310 = arith.maximumf %309, %308 : vector<4x32xf32>
    %311 = vector.broadcast %cst_62 : f32 to vector<4x32xf32>
    %312 = arith.minimumf %311, %310 : vector<4x32xf32>
    %313 = arith.subf %253, %312 : vector<4x32xf32>
    %314 = vector.broadcast %176 : f32 to vector<4x32xf32>
    %315 = arith.mulf %313, %314 : vector<4x32xf32>
    %316 = arith.addf %250, %315 : vector<4x32xf32>
    %317 = vector.broadcast %178 : f32 to vector<4x32xf32>
    %318 = arith.mulf %317, %316 : vector<4x32xf32>
    %319 = arith.addf %188, %318 : vector<4x32xf32>
    %320 = arith.index_cast %c1_i32 : i32 to index
    %c0_63 = arith.constant 0 : index
    %c0_64 = arith.constant 0 : index
    %321 = vector.load %arg6[%320, %c0_63, %c0_64] : memref<6x4x32xf32, #tpu.memory_space<vmem>>, vector<1x4x32xf32>
    %322 = vector.shape_cast %321 : vector<1x4x32xf32> to vector<4x32xf32>
    %323 = vector.broadcast %180 : f32 to vector<4x32xf32>
    %324 = arith.mulf %323, %322 : vector<4x32xf32>
    %325 = arith.addf %319, %324 : vector<4x32xf32>
    %c2_i32 = arith.constant 2 : i32
    %326 = arith.index_cast %c2_i32 : i32 to index
    %c0_65 = arith.constant 0 : index
    %327 = memref.load %arg1[%326, %c0_65] : memref<6x16xf32, #tpu.memory_space<smem>>
    %328 = arith.index_cast %c2_i32 : i32 to index
    %c1_66 = arith.constant 1 : index
    %329 = memref.load %arg1[%328, %c1_66] : memref<6x16xf32, #tpu.memory_space<smem>>
    %330 = arith.index_cast %c2_i32 : i32 to index
    %c2_67 = arith.constant 2 : index
    %331 = memref.load %arg1[%330, %c2_67] : memref<6x16xf32, #tpu.memory_space<smem>>
    %332 = arith.index_cast %c2_i32 : i32 to index
    %c3_68 = arith.constant 3 : index
    %333 = memref.load %arg1[%332, %c3_68] : memref<6x16xf32, #tpu.memory_space<smem>>
    %334 = arith.index_cast %c2_i32 : i32 to index
    %c4_69 = arith.constant 4 : index
    %335 = memref.load %arg1[%334, %c4_69] : memref<6x16xf32, #tpu.memory_space<smem>>
    %336 = arith.index_cast %c2_i32 : i32 to index
    %c5_70 = arith.constant 5 : index
    %337 = memref.load %arg1[%336, %c5_70] : memref<6x16xf32, #tpu.memory_space<smem>>
    %338 = arith.mulf %325, %1 : vector<4x32xf32>
    %339 = arith.addf %338, %0 : vector<4x32xf32>
    %340 = arith.index_cast %c2_i32 : i32 to index
    %c0_71 = arith.constant 0 : index
    %c0_72 = arith.constant 0 : index
    %341 = vector.load %arg5[%340, %c0_71, %c0_72] : memref<6x4x32xf32, #tpu.memory_space<vmem>>, vector<1x4x32xf32>
    %342 = vector.shape_cast %341 : vector<1x4x32xf32> to vector<4x32xf32>
    %343 = vector.broadcast %327 : f32 to vector<4x32xf32>
    %344 = arith.mulf %343, %342 : vector<4x32xf32>
    %345 = arith.addf %339, %344 : vector<4x32xf32>
    %346 = arith.index_cast %c2_i32 : i32 to index
    %c6_73 = arith.constant 6 : index
    %347 = memref.load %arg1[%346, %c6_73] : memref<6x16xf32, #tpu.memory_space<smem>>
    %348 = arith.index_cast %c2_i32 : i32 to index
    %c7_74 = arith.constant 7 : index
    %349 = memref.load %arg1[%348, %c7_74] : memref<6x16xf32, #tpu.memory_space<smem>>
    %350 = arith.index_cast %c2_i32 : i32 to index
    %c8_75 = arith.constant 8 : index
    %351 = memref.load %arg1[%350, %c8_75] : memref<6x16xf32, #tpu.memory_space<smem>>
    %352 = arith.index_cast %c2_i32 : i32 to index
    %c9_76 = arith.constant 9 : index
    %353 = memref.load %arg1[%352, %c9_76] : memref<6x16xf32, #tpu.memory_space<smem>>
    %354 = vector.broadcast %347 : f32 to vector<4x32xf32>
    %355 = arith.mulf %354, %345 : vector<4x32xf32>
    %356 = vector.broadcast %353 : f32 to vector<32x1xf32>
    %357 = arith.mulf %3, %356 : vector<32x1xf32>
    %358 = arith.addf %357, %4 : vector<32x1xf32>
    %359 = vector.extract_strided_slice %355 {offsets = [0, 0], sizes = [1, 32], strides = [1, 1]} : vector<4x32xf32> to vector<1x32xf32>
    %360 = vector.broadcast %7 : vector<32x1xf32> to vector<32x32xf32>
    %361 = vector.broadcast %359 : vector<1x32xf32> to vector<32x32xf32>
    %362 = arith.mulf %360, %361 : vector<32x32xf32>
    %363 = vector.broadcast %358 : vector<32x1xf32> to vector<32x32xf32>
    %364 = arith.addf %363, %362 : vector<32x32xf32>
    %365 = vector.extract_strided_slice %355 {offsets = [1, 0], sizes = [1, 32], strides = [1, 1]} : vector<4x32xf32> to vector<1x32xf32>
    %366 = vector.broadcast %8 : vector<32x1xf32> to vector<32x32xf32>
    %367 = vector.broadcast %365 : vector<1x32xf32> to vector<32x32xf32>
    %368 = arith.mulf %366, %367 : vector<32x32xf32>
    %369 = arith.addf %364, %368 : vector<32x32xf32>
    %370 = vector.extract_strided_slice %355 {offsets = [2, 0], sizes = [1, 32], strides = [1, 1]} : vector<4x32xf32> to vector<1x32xf32>
    %371 = vector.broadcast %9 : vector<32x1xf32> to vector<32x32xf32>
    %372 = vector.broadcast %370 : vector<1x32xf32> to vector<32x32xf32>
    %373 = arith.mulf %371, %372 : vector<32x32xf32>
    %374 = arith.addf %369, %373 : vector<32x32xf32>
    %375 = vector.extract_strided_slice %355 {offsets = [3, 0], sizes = [1, 32], strides = [1, 1]} : vector<4x32xf32> to vector<1x32xf32>
    %376 = vector.broadcast %10 : vector<32x1xf32> to vector<32x32xf32>
    %377 = vector.broadcast %375 : vector<1x32xf32> to vector<32x32xf32>
    %378 = arith.mulf %376, %377 : vector<32x32xf32>
    %379 = arith.addf %374, %378 : vector<32x32xf32>
    %380 = arith.mulf %379, %379 : vector<32x32xf32>
    %381 = arith.mulf %379, %380 : vector<32x32xf32>
    %cst_77 = arith.constant 4.471500e-02 : f32
    %382 = vector.broadcast %cst_77 : f32 to vector<32x32xf32>
    %383 = arith.mulf %382, %381 : vector<32x32xf32>
    %384 = arith.addf %379, %383 : vector<32x32xf32>
    %cst_78 = arith.constant 0.797884583 : f32
    %385 = vector.broadcast %cst_78 : f32 to vector<32x32xf32>
    %386 = arith.mulf %385, %384 : vector<32x32xf32>
    %387 = math.tanh %386 : vector<32x32xf32>
    %cst_79 = arith.constant 1.000000e+00 : f32
    %388 = vector.broadcast %cst_79 : f32 to vector<32x32xf32>
    %389 = arith.addf %388, %387 : vector<32x32xf32>
    %cst_80 = arith.constant 5.000000e-01 : f32
    %390 = vector.broadcast %cst_80 : f32 to vector<32x32xf32>
    %391 = arith.mulf %390, %389 : vector<32x32xf32>
    %392 = arith.mulf %379, %391 : vector<32x32xf32>
    %cst_81 = arith.constant dense<0.000000e+00> : vector<4x32xf32>
    %393 = tpu.matmul %5, %392, %cst_81 {dimension_numbers = #tpu.dot_dimension_numbers<[1], [0], [0], [1], [0, 0, 1, 1], [], []>} : vector<4x32xf32>, vector<32x32xf32>, vector<4x32xf32> -> vector<4x32xf32>
    %394 = vector.broadcast %6 : vector<4x1xf32> to vector<4x32xf32>
    %395 = arith.addf %393, %394 : vector<4x32xf32>
    %396 = vector.broadcast %349 : f32 to vector<4x32xf32>
    %397 = arith.mulf %396, %345 : vector<4x32xf32>
    %398 = vector.broadcast %351 : f32 to vector<4x32xf32>
    %399 = arith.mulf %398, %395 : vector<4x32xf32>
    %400 = arith.addf %397, %399 : vector<4x32xf32>
    %cst_82 = arith.constant -1.000000e+00 : f32
    %cst_83 = arith.constant 1.000000e+00 : f32
    %401 = vector.broadcast %cst_82 : f32 to vector<4x32xf32>
    %402 = arith.maximumf %401, %400 : vector<4x32xf32>
    %403 = vector.broadcast %cst_83 : f32 to vector<4x32xf32>
    %404 = arith.minimumf %403, %402 : vector<4x32xf32>
    %405 = arith.subf %345, %404 : vector<4x32xf32>
    %406 = vector.broadcast %329 : f32 to vector<4x32xf32>
    %407 = arith.mulf %405, %406 : vector<4x32xf32>
    %408 = vector.broadcast %331 : f32 to vector<4x32xf32>
    %409 = arith.mulf %408, %407 : vector<4x32xf32>
    %410 = arith.addf %345, %409 : vector<4x32xf32>
    %411 = arith.index_cast %c2_i32 : i32 to index
    %c10_84 = arith.constant 10 : index
    %412 = memref.load %arg1[%411, %c10_84] : memref<6x16xf32, #tpu.memory_space<smem>>
    %413 = arith.index_cast %c2_i32 : i32 to index
    %c11_85 = arith.constant 11 : index
    %414 = memref.load %arg1[%413, %c11_85] : memref<6x16xf32, #tpu.memory_space<smem>>
    %415 = arith.index_cast %c2_i32 : i32 to index
    %c12_86 = arith.constant 12 : index
    %416 = memref.load %arg1[%415, %c12_86] : memref<6x16xf32, #tpu.memory_space<smem>>
    %417 = arith.index_cast %c2_i32 : i32 to index
    %c13_87 = arith.constant 13 : index
    %418 = memref.load %arg1[%417, %c13_87] : memref<6x16xf32, #tpu.memory_space<smem>>
    %419 = vector.broadcast %412 : f32 to vector<4x32xf32>
    %420 = arith.mulf %419, %410 : vector<4x32xf32>
    %421 = vector.broadcast %418 : f32 to vector<32x1xf32>
    %422 = arith.mulf %3, %421 : vector<32x1xf32>
    %423 = arith.addf %422, %4 : vector<32x1xf32>
    %424 = vector.extract_strided_slice %420 {offsets = [0, 0], sizes = [1, 32], strides = [1, 1]} : vector<4x32xf32> to vector<1x32xf32>
    %425 = vector.broadcast %7 : vector<32x1xf32> to vector<32x32xf32>
    %426 = vector.broadcast %424 : vector<1x32xf32> to vector<32x32xf32>
    %427 = arith.mulf %425, %426 : vector<32x32xf32>
    %428 = vector.broadcast %423 : vector<32x1xf32> to vector<32x32xf32>
    %429 = arith.addf %428, %427 : vector<32x32xf32>
    %430 = vector.extract_strided_slice %420 {offsets = [1, 0], sizes = [1, 32], strides = [1, 1]} : vector<4x32xf32> to vector<1x32xf32>
    %431 = vector.broadcast %8 : vector<32x1xf32> to vector<32x32xf32>
    %432 = vector.broadcast %430 : vector<1x32xf32> to vector<32x32xf32>
    %433 = arith.mulf %431, %432 : vector<32x32xf32>
    %434 = arith.addf %429, %433 : vector<32x32xf32>
    %435 = vector.extract_strided_slice %420 {offsets = [2, 0], sizes = [1, 32], strides = [1, 1]} : vector<4x32xf32> to vector<1x32xf32>
    %436 = vector.broadcast %9 : vector<32x1xf32> to vector<32x32xf32>
    %437 = vector.broadcast %435 : vector<1x32xf32> to vector<32x32xf32>
    %438 = arith.mulf %436, %437 : vector<32x32xf32>
    %439 = arith.addf %434, %438 : vector<32x32xf32>
    %440 = vector.extract_strided_slice %420 {offsets = [3, 0], sizes = [1, 32], strides = [1, 1]} : vector<4x32xf32> to vector<1x32xf32>
    %441 = vector.broadcast %10 : vector<32x1xf32> to vector<32x32xf32>
    %442 = vector.broadcast %440 : vector<1x32xf32> to vector<32x32xf32>
    %443 = arith.mulf %441, %442 : vector<32x32xf32>
    %444 = arith.addf %439, %443 : vector<32x32xf32>
    %445 = arith.mulf %444, %444 : vector<32x32xf32>
    %446 = arith.mulf %444, %445 : vector<32x32xf32>
    %cst_88 = arith.constant 4.471500e-02 : f32
    %447 = vector.broadcast %cst_88 : f32 to vector<32x32xf32>
    %448 = arith.mulf %447, %446 : vector<32x32xf32>
    %449 = arith.addf %444, %448 : vector<32x32xf32>
    %cst_89 = arith.constant 0.797884583 : f32
    %450 = vector.broadcast %cst_89 : f32 to vector<32x32xf32>
    %451 = arith.mulf %450, %449 : vector<32x32xf32>
    %452 = math.tanh %451 : vector<32x32xf32>
    %cst_90 = arith.constant 1.000000e+00 : f32
    %453 = vector.broadcast %cst_90 : f32 to vector<32x32xf32>
    %454 = arith.addf %453, %452 : vector<32x32xf32>
    %cst_91 = arith.constant 5.000000e-01 : f32
    %455 = vector.broadcast %cst_91 : f32 to vector<32x32xf32>
    %456 = arith.mulf %455, %454 : vector<32x32xf32>
    %457 = arith.mulf %444, %456 : vector<32x32xf32>
    %cst_92 = arith.constant dense<0.000000e+00> : vector<4x32xf32>
    %458 = tpu.matmul %5, %457, %cst_92 {dimension_numbers = #tpu.dot_dimension_numbers<[1], [0], [0], [1], [0, 0, 1, 1], [], []>} : vector<4x32xf32>, vector<32x32xf32>, vector<4x32xf32> -> vector<4x32xf32>
    %459 = vector.broadcast %6 : vector<4x1xf32> to vector<4x32xf32>
    %460 = arith.addf %458, %459 : vector<4x32xf32>
    %461 = vector.broadcast %414 : f32 to vector<4x32xf32>
    %462 = arith.mulf %461, %410 : vector<4x32xf32>
    %463 = vector.broadcast %416 : f32 to vector<4x32xf32>
    %464 = arith.mulf %463, %460 : vector<4x32xf32>
    %465 = arith.addf %462, %464 : vector<4x32xf32>
    %cst_93 = arith.constant -1.000000e+00 : f32
    %cst_94 = arith.constant 1.000000e+00 : f32
    %466 = vector.broadcast %cst_93 : f32 to vector<4x32xf32>
    %467 = arith.maximumf %466, %465 : vector<4x32xf32>
    %468 = vector.broadcast %cst_94 : f32 to vector<4x32xf32>
    %469 = arith.minimumf %468, %467 : vector<4x32xf32>
    %470 = arith.subf %410, %469 : vector<4x32xf32>
    %471 = vector.broadcast %333 : f32 to vector<4x32xf32>
    %472 = arith.mulf %470, %471 : vector<4x32xf32>
    %473 = arith.addf %407, %472 : vector<4x32xf32>
    %474 = vector.broadcast %335 : f32 to vector<4x32xf32>
    %475 = arith.mulf %474, %473 : vector<4x32xf32>
    %476 = arith.addf %345, %475 : vector<4x32xf32>
    %477 = arith.index_cast %c2_i32 : i32 to index
    %c0_95 = arith.constant 0 : index
    %c0_96 = arith.constant 0 : index
    %478 = vector.load %arg6[%477, %c0_95, %c0_96] : memref<6x4x32xf32, #tpu.memory_space<vmem>>, vector<1x4x32xf32>
    %479 = vector.shape_cast %478 : vector<1x4x32xf32> to vector<4x32xf32>
    %480 = vector.broadcast %337 : f32 to vector<4x32xf32>
    %481 = arith.mulf %480, %479 : vector<4x32xf32>
    %482 = arith.addf %476, %481 : vector<4x32xf32>
    %c3_i32 = arith.constant 3 : i32
    %483 = arith.index_cast %c3_i32 : i32 to index
    %c0_97 = arith.constant 0 : index
    %484 = memref.load %arg1[%483, %c0_97] : memref<6x16xf32, #tpu.memory_space<smem>>
    %485 = arith.index_cast %c3_i32 : i32 to index
    %c1_98 = arith.constant 1 : index
    %486 = memref.load %arg1[%485, %c1_98] : memref<6x16xf32, #tpu.memory_space<smem>>
    %487 = arith.index_cast %c3_i32 : i32 to index
    %c2_99 = arith.constant 2 : index
    %488 = memref.load %arg1[%487, %c2_99] : memref<6x16xf32, #tpu.memory_space<smem>>
    %489 = arith.index_cast %c3_i32 : i32 to index
    %c3_100 = arith.constant 3 : index
    %490 = memref.load %arg1[%489, %c3_100] : memref<6x16xf32, #tpu.memory_space<smem>>
    %491 = arith.index_cast %c3_i32 : i32 to index
    %c4_101 = arith.constant 4 : index
    %492 = memref.load %arg1[%491, %c4_101] : memref<6x16xf32, #tpu.memory_space<smem>>
    %493 = arith.index_cast %c3_i32 : i32 to index
    %c5_102 = arith.constant 5 : index
    %494 = memref.load %arg1[%493, %c5_102] : memref<6x16xf32, #tpu.memory_space<smem>>
    %495 = arith.mulf %482, %1 : vector<4x32xf32>
    %496 = arith.addf %495, %0 : vector<4x32xf32>
    %497 = arith.index_cast %c3_i32 : i32 to index
    %c0_103 = arith.constant 0 : index
    %c0_104 = arith.constant 0 : index
    %498 = vector.load %arg5[%497, %c0_103, %c0_104] : memref<6x4x32xf32, #tpu.memory_space<vmem>>, vector<1x4x32xf32>
    %499 = vector.shape_cast %498 : vector<1x4x32xf32> to vector<4x32xf32>
    %500 = vector.broadcast %484 : f32 to vector<4x32xf32>
    %501 = arith.mulf %500, %499 : vector<4x32xf32>
    %502 = arith.addf %496, %501 : vector<4x32xf32>
    %503 = arith.index_cast %c3_i32 : i32 to index
    %c6_105 = arith.constant 6 : index
    %504 = memref.load %arg1[%503, %c6_105] : memref<6x16xf32, #tpu.memory_space<smem>>
    %505 = arith.index_cast %c3_i32 : i32 to index
    %c7_106 = arith.constant 7 : index
    %506 = memref.load %arg1[%505, %c7_106] : memref<6x16xf32, #tpu.memory_space<smem>>
    %507 = arith.index_cast %c3_i32 : i32 to index
    %c8_107 = arith.constant 8 : index
    %508 = memref.load %arg1[%507, %c8_107] : memref<6x16xf32, #tpu.memory_space<smem>>
    %509 = arith.index_cast %c3_i32 : i32 to index
    %c9_108 = arith.constant 9 : index
    %510 = memref.load %arg1[%509, %c9_108] : memref<6x16xf32, #tpu.memory_space<smem>>
    %511 = vector.broadcast %504 : f32 to vector<4x32xf32>
    %512 = arith.mulf %511, %502 : vector<4x32xf32>
    %513 = vector.broadcast %510 : f32 to vector<32x1xf32>
    %514 = arith.mulf %3, %513 : vector<32x1xf32>
    %515 = arith.addf %514, %4 : vector<32x1xf32>
    %516 = vector.extract_strided_slice %512 {offsets = [0, 0], sizes = [1, 32], strides = [1, 1]} : vector<4x32xf32> to vector<1x32xf32>
    %517 = vector.broadcast %7 : vector<32x1xf32> to vector<32x32xf32>
    %518 = vector.broadcast %516 : vector<1x32xf32> to vector<32x32xf32>
    %519 = arith.mulf %517, %518 : vector<32x32xf32>
    %520 = vector.broadcast %515 : vector<32x1xf32> to vector<32x32xf32>
    %521 = arith.addf %520, %519 : vector<32x32xf32>
    %522 = vector.extract_strided_slice %512 {offsets = [1, 0], sizes = [1, 32], strides = [1, 1]} : vector<4x32xf32> to vector<1x32xf32>
    %523 = vector.broadcast %8 : vector<32x1xf32> to vector<32x32xf32>
    %524 = vector.broadcast %522 : vector<1x32xf32> to vector<32x32xf32>
    %525 = arith.mulf %523, %524 : vector<32x32xf32>
    %526 = arith.addf %521, %525 : vector<32x32xf32>
    %527 = vector.extract_strided_slice %512 {offsets = [2, 0], sizes = [1, 32], strides = [1, 1]} : vector<4x32xf32> to vector<1x32xf32>
    %528 = vector.broadcast %9 : vector<32x1xf32> to vector<32x32xf32>
    %529 = vector.broadcast %527 : vector<1x32xf32> to vector<32x32xf32>
    %530 = arith.mulf %528, %529 : vector<32x32xf32>
    %531 = arith.addf %526, %530 : vector<32x32xf32>
    %532 = vector.extract_strided_slice %512 {offsets = [3, 0], sizes = [1, 32], strides = [1, 1]} : vector<4x32xf32> to vector<1x32xf32>
    %533 = vector.broadcast %10 : vector<32x1xf32> to vector<32x32xf32>
    %534 = vector.broadcast %532 : vector<1x32xf32> to vector<32x32xf32>
    %535 = arith.mulf %533, %534 : vector<32x32xf32>
    %536 = arith.addf %531, %535 : vector<32x32xf32>
    %537 = arith.mulf %536, %536 : vector<32x32xf32>
    %538 = arith.mulf %536, %537 : vector<32x32xf32>
    %cst_109 = arith.constant 4.471500e-02 : f32
    %539 = vector.broadcast %cst_109 : f32 to vector<32x32xf32>
    %540 = arith.mulf %539, %538 : vector<32x32xf32>
    %541 = arith.addf %536, %540 : vector<32x32xf32>
    %cst_110 = arith.constant 0.797884583 : f32
    %542 = vector.broadcast %cst_110 : f32 to vector<32x32xf32>
    %543 = arith.mulf %542, %541 : vector<32x32xf32>
    %544 = math.tanh %543 : vector<32x32xf32>
    %cst_111 = arith.constant 1.000000e+00 : f32
    %545 = vector.broadcast %cst_111 : f32 to vector<32x32xf32>
    %546 = arith.addf %545, %544 : vector<32x32xf32>
    %cst_112 = arith.constant 5.000000e-01 : f32
    %547 = vector.broadcast %cst_112 : f32 to vector<32x32xf32>
    %548 = arith.mulf %547, %546 : vector<32x32xf32>
    %549 = arith.mulf %536, %548 : vector<32x32xf32>
    %cst_113 = arith.constant dense<0.000000e+00> : vector<4x32xf32>
    %550 = tpu.matmul %5, %549, %cst_113 {dimension_numbers = #tpu.dot_dimension_numbers<[1], [0], [0], [1], [0, 0, 1, 1], [], []>} : vector<4x32xf32>, vector<32x32xf32>, vector<4x32xf32> -> vector<4x32xf32>
    %551 = vector.broadcast %6 : vector<4x1xf32> to vector<4x32xf32>
    %552 = arith.addf %550, %551 : vector<4x32xf32>
    %553 = vector.broadcast %506 : f32 to vector<4x32xf32>
    %554 = arith.mulf %553, %502 : vector<4x32xf32>
    %555 = vector.broadcast %508 : f32 to vector<4x32xf32>
    %556 = arith.mulf %555, %552 : vector<4x32xf32>
    %557 = arith.addf %554, %556 : vector<4x32xf32>
    %cst_114 = arith.constant -1.000000e+00 : f32
    %cst_115 = arith.constant 1.000000e+00 : f32
    %558 = vector.broadcast %cst_114 : f32 to vector<4x32xf32>
    %559 = arith.maximumf %558, %557 : vector<4x32xf32>
    %560 = vector.broadcast %cst_115 : f32 to vector<4x32xf32>
    %561 = arith.minimumf %560, %559 : vector<4x32xf32>
    %562 = arith.subf %502, %561 : vector<4x32xf32>
    %563 = vector.broadcast %486 : f32 to vector<4x32xf32>
    %564 = arith.mulf %562, %563 : vector<4x32xf32>
    %565 = vector.broadcast %488 : f32 to vector<4x32xf32>
    %566 = arith.mulf %565, %564 : vector<4x32xf32>
    %567 = arith.addf %502, %566 : vector<4x32xf32>
    %568 = arith.index_cast %c3_i32 : i32 to index
    %c10_116 = arith.constant 10 : index
    %569 = memref.load %arg1[%568, %c10_116] : memref<6x16xf32, #tpu.memory_space<smem>>
    %570 = arith.index_cast %c3_i32 : i32 to index
    %c11_117 = arith.constant 11 : index
    %571 = memref.load %arg1[%570, %c11_117] : memref<6x16xf32, #tpu.memory_space<smem>>
    %572 = arith.index_cast %c3_i32 : i32 to index
    %c12_118 = arith.constant 12 : index
    %573 = memref.load %arg1[%572, %c12_118] : memref<6x16xf32, #tpu.memory_space<smem>>
    %574 = arith.index_cast %c3_i32 : i32 to index
    %c13_119 = arith.constant 13 : index
    %575 = memref.load %arg1[%574, %c13_119] : memref<6x16xf32, #tpu.memory_space<smem>>
    %576 = vector.broadcast %569 : f32 to vector<4x32xf32>
    %577 = arith.mulf %576, %567 : vector<4x32xf32>
    %578 = vector.broadcast %575 : f32 to vector<32x1xf32>
    %579 = arith.mulf %3, %578 : vector<32x1xf32>
    %580 = arith.addf %579, %4 : vector<32x1xf32>
    %581 = vector.extract_strided_slice %577 {offsets = [0, 0], sizes = [1, 32], strides = [1, 1]} : vector<4x32xf32> to vector<1x32xf32>
    %582 = vector.broadcast %7 : vector<32x1xf32> to vector<32x32xf32>
    %583 = vector.broadcast %581 : vector<1x32xf32> to vector<32x32xf32>
    %584 = arith.mulf %582, %583 : vector<32x32xf32>
    %585 = vector.broadcast %580 : vector<32x1xf32> to vector<32x32xf32>
    %586 = arith.addf %585, %584 : vector<32x32xf32>
    %587 = vector.extract_strided_slice %577 {offsets = [1, 0], sizes = [1, 32], strides = [1, 1]} : vector<4x32xf32> to vector<1x32xf32>
    %588 = vector.broadcast %8 : vector<32x1xf32> to vector<32x32xf32>
    %589 = vector.broadcast %587 : vector<1x32xf32> to vector<32x32xf32>
    %590 = arith.mulf %588, %589 : vector<32x32xf32>
    %591 = arith.addf %586, %590 : vector<32x32xf32>
    %592 = vector.extract_strided_slice %577 {offsets = [2, 0], sizes = [1, 32], strides = [1, 1]} : vector<4x32xf32> to vector<1x32xf32>
    %593 = vector.broadcast %9 : vector<32x1xf32> to vector<32x32xf32>
    %594 = vector.broadcast %592 : vector<1x32xf32> to vector<32x32xf32>
    %595 = arith.mulf %593, %594 : vector<32x32xf32>
    %596 = arith.addf %591, %595 : vector<32x32xf32>
    %597 = vector.extract_strided_slice %577 {offsets = [3, 0], sizes = [1, 32], strides = [1, 1]} : vector<4x32xf32> to vector<1x32xf32>
    %598 = vector.broadcast %10 : vector<32x1xf32> to vector<32x32xf32>
    %599 = vector.broadcast %597 : vector<1x32xf32> to vector<32x32xf32>
    %600 = arith.mulf %598, %599 : vector<32x32xf32>
    %601 = arith.addf %596, %600 : vector<32x32xf32>
    %602 = arith.mulf %601, %601 : vector<32x32xf32>
    %603 = arith.mulf %601, %602 : vector<32x32xf32>
    %cst_120 = arith.constant 4.471500e-02 : f32
    %604 = vector.broadcast %cst_120 : f32 to vector<32x32xf32>
    %605 = arith.mulf %604, %603 : vector<32x32xf32>
    %606 = arith.addf %601, %605 : vector<32x32xf32>
    %cst_121 = arith.constant 0.797884583 : f32
    %607 = vector.broadcast %cst_121 : f32 to vector<32x32xf32>
    %608 = arith.mulf %607, %606 : vector<32x32xf32>
    %609 = math.tanh %608 : vector<32x32xf32>
    %cst_122 = arith.constant 1.000000e+00 : f32
    %610 = vector.broadcast %cst_122 : f32 to vector<32x32xf32>
    %611 = arith.addf %610, %609 : vector<32x32xf32>
    %cst_123 = arith.constant 5.000000e-01 : f32
    %612 = vector.broadcast %cst_123 : f32 to vector<32x32xf32>
    %613 = arith.mulf %612, %611 : vector<32x32xf32>
    %614 = arith.mulf %601, %613 : vector<32x32xf32>
    %cst_124 = arith.constant dense<0.000000e+00> : vector<4x32xf32>
    %615 = tpu.matmul %5, %614, %cst_124 {dimension_numbers = #tpu.dot_dimension_numbers<[1], [0], [0], [1], [0, 0, 1, 1], [], []>} : vector<4x32xf32>, vector<32x32xf32>, vector<4x32xf32> -> vector<4x32xf32>
    %616 = vector.broadcast %6 : vector<4x1xf32> to vector<4x32xf32>
    %617 = arith.addf %615, %616 : vector<4x32xf32>
    %618 = vector.broadcast %571 : f32 to vector<4x32xf32>
    %619 = arith.mulf %618, %567 : vector<4x32xf32>
    %620 = vector.broadcast %573 : f32 to vector<4x32xf32>
    %621 = arith.mulf %620, %617 : vector<4x32xf32>
    %622 = arith.addf %619, %621 : vector<4x32xf32>
    %cst_125 = arith.constant -1.000000e+00 : f32
    %cst_126 = arith.constant 1.000000e+00 : f32
    %623 = vector.broadcast %cst_125 : f32 to vector<4x32xf32>
    %624 = arith.maximumf %623, %622 : vector<4x32xf32>
    %625 = vector.broadcast %cst_126 : f32 to vector<4x32xf32>
    %626 = arith.minimumf %625, %624 : vector<4x32xf32>
    %627 = arith.subf %567, %626 : vector<4x32xf32>
    %628 = vector.broadcast %490 : f32 to vector<4x32xf32>
    %629 = arith.mulf %627, %628 : vector<4x32xf32>
    %630 = arith.addf %564, %629 : vector<4x32xf32>
    %631 = vector.broadcast %492 : f32 to vector<4x32xf32>
    %632 = arith.mulf %631, %630 : vector<4x32xf32>
    %633 = arith.addf %502, %632 : vector<4x32xf32>
    %634 = arith.index_cast %c3_i32 : i32 to index
    %c0_127 = arith.constant 0 : index
    %c0_128 = arith.constant 0 : index
    %635 = vector.load %arg6[%634, %c0_127, %c0_128] : memref<6x4x32xf32, #tpu.memory_space<vmem>>, vector<1x4x32xf32>
    %636 = vector.shape_cast %635 : vector<1x4x32xf32> to vector<4x32xf32>
    %637 = vector.broadcast %494 : f32 to vector<4x32xf32>
    %638 = arith.mulf %637, %636 : vector<4x32xf32>
    %639 = arith.addf %633, %638 : vector<4x32xf32>
    %c4_i32 = arith.constant 4 : i32
    %640 = arith.index_cast %c4_i32 : i32 to index
    %c0_129 = arith.constant 0 : index
    %641 = memref.load %arg1[%640, %c0_129] : memref<6x16xf32, #tpu.memory_space<smem>>
    %642 = arith.index_cast %c4_i32 : i32 to index
    %c1_130 = arith.constant 1 : index
    %643 = memref.load %arg1[%642, %c1_130] : memref<6x16xf32, #tpu.memory_space<smem>>
    %644 = arith.index_cast %c4_i32 : i32 to index
    %c2_131 = arith.constant 2 : index
    %645 = memref.load %arg1[%644, %c2_131] : memref<6x16xf32, #tpu.memory_space<smem>>
    %646 = arith.index_cast %c4_i32 : i32 to index
    %c3_132 = arith.constant 3 : index
    %647 = memref.load %arg1[%646, %c3_132] : memref<6x16xf32, #tpu.memory_space<smem>>
    %648 = arith.index_cast %c4_i32 : i32 to index
    %c4_133 = arith.constant 4 : index
    %649 = memref.load %arg1[%648, %c4_133] : memref<6x16xf32, #tpu.memory_space<smem>>
    %650 = arith.index_cast %c4_i32 : i32 to index
    %c5_134 = arith.constant 5 : index
    %651 = memref.load %arg1[%650, %c5_134] : memref<6x16xf32, #tpu.memory_space<smem>>
    %652 = arith.mulf %639, %1 : vector<4x32xf32>
    %653 = arith.addf %652, %0 : vector<4x32xf32>
    %654 = arith.index_cast %c4_i32 : i32 to index
    %c0_135 = arith.constant 0 : index
    %c0_136 = arith.constant 0 : index
    %655 = vector.load %arg5[%654, %c0_135, %c0_136] : memref<6x4x32xf32, #tpu.memory_space<vmem>>, vector<1x4x32xf32>
    %656 = vector.shape_cast %655 : vector<1x4x32xf32> to vector<4x32xf32>
    %657 = vector.broadcast %641 : f32 to vector<4x32xf32>
    %658 = arith.mulf %657, %656 : vector<4x32xf32>
    %659 = arith.addf %653, %658 : vector<4x32xf32>
    %660 = arith.index_cast %c4_i32 : i32 to index
    %c6_137 = arith.constant 6 : index
    %661 = memref.load %arg1[%660, %c6_137] : memref<6x16xf32, #tpu.memory_space<smem>>
    %662 = arith.index_cast %c4_i32 : i32 to index
    %c7_138 = arith.constant 7 : index
    %663 = memref.load %arg1[%662, %c7_138] : memref<6x16xf32, #tpu.memory_space<smem>>
    %664 = arith.index_cast %c4_i32 : i32 to index
    %c8_139 = arith.constant 8 : index
    %665 = memref.load %arg1[%664, %c8_139] : memref<6x16xf32, #tpu.memory_space<smem>>
    %666 = arith.index_cast %c4_i32 : i32 to index
    %c9_140 = arith.constant 9 : index
    %667 = memref.load %arg1[%666, %c9_140] : memref<6x16xf32, #tpu.memory_space<smem>>
    %668 = vector.broadcast %661 : f32 to vector<4x32xf32>
    %669 = arith.mulf %668, %659 : vector<4x32xf32>
    %670 = vector.broadcast %667 : f32 to vector<32x1xf32>
    %671 = arith.mulf %3, %670 : vector<32x1xf32>
    %672 = arith.addf %671, %4 : vector<32x1xf32>
    %673 = vector.extract_strided_slice %669 {offsets = [0, 0], sizes = [1, 32], strides = [1, 1]} : vector<4x32xf32> to vector<1x32xf32>
    %674 = vector.broadcast %7 : vector<32x1xf32> to vector<32x32xf32>
    %675 = vector.broadcast %673 : vector<1x32xf32> to vector<32x32xf32>
    %676 = arith.mulf %674, %675 : vector<32x32xf32>
    %677 = vector.broadcast %672 : vector<32x1xf32> to vector<32x32xf32>
    %678 = arith.addf %677, %676 : vector<32x32xf32>
    %679 = vector.extract_strided_slice %669 {offsets = [1, 0], sizes = [1, 32], strides = [1, 1]} : vector<4x32xf32> to vector<1x32xf32>
    %680 = vector.broadcast %8 : vector<32x1xf32> to vector<32x32xf32>
    %681 = vector.broadcast %679 : vector<1x32xf32> to vector<32x32xf32>
    %682 = arith.mulf %680, %681 : vector<32x32xf32>
    %683 = arith.addf %678, %682 : vector<32x32xf32>
    %684 = vector.extract_strided_slice %669 {offsets = [2, 0], sizes = [1, 32], strides = [1, 1]} : vector<4x32xf32> to vector<1x32xf32>
    %685 = vector.broadcast %9 : vector<32x1xf32> to vector<32x32xf32>
    %686 = vector.broadcast %684 : vector<1x32xf32> to vector<32x32xf32>
    %687 = arith.mulf %685, %686 : vector<32x32xf32>
    %688 = arith.addf %683, %687 : vector<32x32xf32>
    %689 = vector.extract_strided_slice %669 {offsets = [3, 0], sizes = [1, 32], strides = [1, 1]} : vector<4x32xf32> to vector<1x32xf32>
    %690 = vector.broadcast %10 : vector<32x1xf32> to vector<32x32xf32>
    %691 = vector.broadcast %689 : vector<1x32xf32> to vector<32x32xf32>
    %692 = arith.mulf %690, %691 : vector<32x32xf32>
    %693 = arith.addf %688, %692 : vector<32x32xf32>
    %694 = arith.mulf %693, %693 : vector<32x32xf32>
    %695 = arith.mulf %693, %694 : vector<32x32xf32>
    %cst_141 = arith.constant 4.471500e-02 : f32
    %696 = vector.broadcast %cst_141 : f32 to vector<32x32xf32>
    %697 = arith.mulf %696, %695 : vector<32x32xf32>
    %698 = arith.addf %693, %697 : vector<32x32xf32>
    %cst_142 = arith.constant 0.797884583 : f32
    %699 = vector.broadcast %cst_142 : f32 to vector<32x32xf32>
    %700 = arith.mulf %699, %698 : vector<32x32xf32>
    %701 = math.tanh %700 : vector<32x32xf32>
    %cst_143 = arith.constant 1.000000e+00 : f32
    %702 = vector.broadcast %cst_143 : f32 to vector<32x32xf32>
    %703 = arith.addf %702, %701 : vector<32x32xf32>
    %cst_144 = arith.constant 5.000000e-01 : f32
    %704 = vector.broadcast %cst_144 : f32 to vector<32x32xf32>
    %705 = arith.mulf %704, %703 : vector<32x32xf32>
    %706 = arith.mulf %693, %705 : vector<32x32xf32>
    %cst_145 = arith.constant dense<0.000000e+00> : vector<4x32xf32>
    %707 = tpu.matmul %5, %706, %cst_145 {dimension_numbers = #tpu.dot_dimension_numbers<[1], [0], [0], [1], [0, 0, 1, 1], [], []>} : vector<4x32xf32>, vector<32x32xf32>, vector<4x32xf32> -> vector<4x32xf32>
    %708 = vector.broadcast %6 : vector<4x1xf32> to vector<4x32xf32>
    %709 = arith.addf %707, %708 : vector<4x32xf32>
    %710 = vector.broadcast %663 : f32 to vector<4x32xf32>
    %711 = arith.mulf %710, %659 : vector<4x32xf32>
    %712 = vector.broadcast %665 : f32 to vector<4x32xf32>
    %713 = arith.mulf %712, %709 : vector<4x32xf32>
    %714 = arith.addf %711, %713 : vector<4x32xf32>
    %cst_146 = arith.constant -1.000000e+00 : f32
    %cst_147 = arith.constant 1.000000e+00 : f32
    %715 = vector.broadcast %cst_146 : f32 to vector<4x32xf32>
    %716 = arith.maximumf %715, %714 : vector<4x32xf32>
    %717 = vector.broadcast %cst_147 : f32 to vector<4x32xf32>
    %718 = arith.minimumf %717, %716 : vector<4x32xf32>
    %719 = arith.subf %659, %718 : vector<4x32xf32>
    %720 = vector.broadcast %643 : f32 to vector<4x32xf32>
    %721 = arith.mulf %719, %720 : vector<4x32xf32>
    %722 = vector.broadcast %645 : f32 to vector<4x32xf32>
    %723 = arith.mulf %722, %721 : vector<4x32xf32>
    %724 = arith.addf %659, %723 : vector<4x32xf32>
    %725 = arith.index_cast %c4_i32 : i32 to index
    %c10_148 = arith.constant 10 : index
    %726 = memref.load %arg1[%725, %c10_148] : memref<6x16xf32, #tpu.memory_space<smem>>
    %727 = arith.index_cast %c4_i32 : i32 to index
    %c11_149 = arith.constant 11 : index
    %728 = memref.load %arg1[%727, %c11_149] : memref<6x16xf32, #tpu.memory_space<smem>>
    %729 = arith.index_cast %c4_i32 : i32 to index
    %c12_150 = arith.constant 12 : index
    %730 = memref.load %arg1[%729, %c12_150] : memref<6x16xf32, #tpu.memory_space<smem>>
    %731 = arith.index_cast %c4_i32 : i32 to index
    %c13_151 = arith.constant 13 : index
    %732 = memref.load %arg1[%731, %c13_151] : memref<6x16xf32, #tpu.memory_space<smem>>
    %733 = vector.broadcast %726 : f32 to vector<4x32xf32>
    %734 = arith.mulf %733, %724 : vector<4x32xf32>
    %735 = vector.broadcast %732 : f32 to vector<32x1xf32>
    %736 = arith.mulf %3, %735 : vector<32x1xf32>
    %737 = arith.addf %736, %4 : vector<32x1xf32>
    %738 = vector.extract_strided_slice %734 {offsets = [0, 0], sizes = [1, 32], strides = [1, 1]} : vector<4x32xf32> to vector<1x32xf32>
    %739 = vector.broadcast %7 : vector<32x1xf32> to vector<32x32xf32>
    %740 = vector.broadcast %738 : vector<1x32xf32> to vector<32x32xf32>
    %741 = arith.mulf %739, %740 : vector<32x32xf32>
    %742 = vector.broadcast %737 : vector<32x1xf32> to vector<32x32xf32>
    %743 = arith.addf %742, %741 : vector<32x32xf32>
    %744 = vector.extract_strided_slice %734 {offsets = [1, 0], sizes = [1, 32], strides = [1, 1]} : vector<4x32xf32> to vector<1x32xf32>
    %745 = vector.broadcast %8 : vector<32x1xf32> to vector<32x32xf32>
    %746 = vector.broadcast %744 : vector<1x32xf32> to vector<32x32xf32>
    %747 = arith.mulf %745, %746 : vector<32x32xf32>
    %748 = arith.addf %743, %747 : vector<32x32xf32>
    %749 = vector.extract_strided_slice %734 {offsets = [2, 0], sizes = [1, 32], strides = [1, 1]} : vector<4x32xf32> to vector<1x32xf32>
    %750 = vector.broadcast %9 : vector<32x1xf32> to vector<32x32xf32>
    %751 = vector.broadcast %749 : vector<1x32xf32> to vector<32x32xf32>
    %752 = arith.mulf %750, %751 : vector<32x32xf32>
    %753 = arith.addf %748, %752 : vector<32x32xf32>
    %754 = vector.extract_strided_slice %734 {offsets = [3, 0], sizes = [1, 32], strides = [1, 1]} : vector<4x32xf32> to vector<1x32xf32>
    %755 = vector.broadcast %10 : vector<32x1xf32> to vector<32x32xf32>
    %756 = vector.broadcast %754 : vector<1x32xf32> to vector<32x32xf32>
    %757 = arith.mulf %755, %756 : vector<32x32xf32>
    %758 = arith.addf %753, %757 : vector<32x32xf32>
    %759 = arith.mulf %758, %758 : vector<32x32xf32>
    %760 = arith.mulf %758, %759 : vector<32x32xf32>
    %cst_152 = arith.constant 4.471500e-02 : f32
    %761 = vector.broadcast %cst_152 : f32 to vector<32x32xf32>
    %762 = arith.mulf %761, %760 : vector<32x32xf32>
    %763 = arith.addf %758, %762 : vector<32x32xf32>
    %cst_153 = arith.constant 0.797884583 : f32
    %764 = vector.broadcast %cst_153 : f32 to vector<32x32xf32>
    %765 = arith.mulf %764, %763 : vector<32x32xf32>
    %766 = math.tanh %765 : vector<32x32xf32>
    %cst_154 = arith.constant 1.000000e+00 : f32
    %767 = vector.broadcast %cst_154 : f32 to vector<32x32xf32>
    %768 = arith.addf %767, %766 : vector<32x32xf32>
    %cst_155 = arith.constant 5.000000e-01 : f32
    %769 = vector.broadcast %cst_155 : f32 to vector<32x32xf32>
    %770 = arith.mulf %769, %768 : vector<32x32xf32>
    %771 = arith.mulf %758, %770 : vector<32x32xf32>
    %cst_156 = arith.constant dense<0.000000e+00> : vector<4x32xf32>
    %772 = tpu.matmul %5, %771, %cst_156 {dimension_numbers = #tpu.dot_dimension_numbers<[1], [0], [0], [1], [0, 0, 1, 1], [], []>} : vector<4x32xf32>, vector<32x32xf32>, vector<4x32xf32> -> vector<4x32xf32>
    %773 = vector.broadcast %6 : vector<4x1xf32> to vector<4x32xf32>
    %774 = arith.addf %772, %773 : vector<4x32xf32>
    %775 = vector.broadcast %728 : f32 to vector<4x32xf32>
    %776 = arith.mulf %775, %724 : vector<4x32xf32>
    %777 = vector.broadcast %730 : f32 to vector<4x32xf32>
    %778 = arith.mulf %777, %774 : vector<4x32xf32>
    %779 = arith.addf %776, %778 : vector<4x32xf32>
    %cst_157 = arith.constant -1.000000e+00 : f32
    %cst_158 = arith.constant 1.000000e+00 : f32
    %780 = vector.broadcast %cst_157 : f32 to vector<4x32xf32>
    %781 = arith.maximumf %780, %779 : vector<4x32xf32>
    %782 = vector.broadcast %cst_158 : f32 to vector<4x32xf32>
    %783 = arith.minimumf %782, %781 : vector<4x32xf32>
    %784 = arith.subf %724, %783 : vector<4x32xf32>
    %785 = vector.broadcast %647 : f32 to vector<4x32xf32>
    %786 = arith.mulf %784, %785 : vector<4x32xf32>
    %787 = arith.addf %721, %786 : vector<4x32xf32>
    %788 = vector.broadcast %649 : f32 to vector<4x32xf32>
    %789 = arith.mulf %788, %787 : vector<4x32xf32>
    %790 = arith.addf %659, %789 : vector<4x32xf32>
    %791 = arith.index_cast %c4_i32 : i32 to index
    %c0_159 = arith.constant 0 : index
    %c0_160 = arith.constant 0 : index
    %792 = vector.load %arg6[%791, %c0_159, %c0_160] : memref<6x4x32xf32, #tpu.memory_space<vmem>>, vector<1x4x32xf32>
    %793 = vector.shape_cast %792 : vector<1x4x32xf32> to vector<4x32xf32>
    %794 = vector.broadcast %651 : f32 to vector<4x32xf32>
    %795 = arith.mulf %794, %793 : vector<4x32xf32>
    %796 = arith.addf %790, %795 : vector<4x32xf32>
    %c5_i32 = arith.constant 5 : i32
    %797 = arith.index_cast %c5_i32 : i32 to index
    %c0_161 = arith.constant 0 : index
    %798 = memref.load %arg1[%797, %c0_161] : memref<6x16xf32, #tpu.memory_space<smem>>
    %799 = arith.index_cast %c5_i32 : i32 to index
    %c1_162 = arith.constant 1 : index
    %800 = memref.load %arg1[%799, %c1_162] : memref<6x16xf32, #tpu.memory_space<smem>>
    %801 = arith.index_cast %c5_i32 : i32 to index
    %c2_163 = arith.constant 2 : index
    %802 = memref.load %arg1[%801, %c2_163] : memref<6x16xf32, #tpu.memory_space<smem>>
    %803 = arith.index_cast %c5_i32 : i32 to index
    %c3_164 = arith.constant 3 : index
    %804 = memref.load %arg1[%803, %c3_164] : memref<6x16xf32, #tpu.memory_space<smem>>
    %805 = arith.index_cast %c5_i32 : i32 to index
    %c4_165 = arith.constant 4 : index
    %806 = memref.load %arg1[%805, %c4_165] : memref<6x16xf32, #tpu.memory_space<smem>>
    %807 = arith.index_cast %c5_i32 : i32 to index
    %c5_166 = arith.constant 5 : index
    %808 = memref.load %arg1[%807, %c5_166] : memref<6x16xf32, #tpu.memory_space<smem>>
    %809 = arith.mulf %796, %1 : vector<4x32xf32>
    %810 = arith.addf %809, %0 : vector<4x32xf32>
    %811 = arith.index_cast %c5_i32 : i32 to index
    %c0_167 = arith.constant 0 : index
    %c0_168 = arith.constant 0 : index
    %812 = vector.load %arg5[%811, %c0_167, %c0_168] : memref<6x4x32xf32, #tpu.memory_space<vmem>>, vector<1x4x32xf32>
    %813 = vector.shape_cast %812 : vector<1x4x32xf32> to vector<4x32xf32>
    %814 = vector.broadcast %798 : f32 to vector<4x32xf32>
    %815 = arith.mulf %814, %813 : vector<4x32xf32>
    %816 = arith.addf %810, %815 : vector<4x32xf32>
    %817 = arith.index_cast %c5_i32 : i32 to index
    %c6_169 = arith.constant 6 : index
    %818 = memref.load %arg1[%817, %c6_169] : memref<6x16xf32, #tpu.memory_space<smem>>
    %819 = arith.index_cast %c5_i32 : i32 to index
    %c7_170 = arith.constant 7 : index
    %820 = memref.load %arg1[%819, %c7_170] : memref<6x16xf32, #tpu.memory_space<smem>>
    %821 = arith.index_cast %c5_i32 : i32 to index
    %c8_171 = arith.constant 8 : index
    %822 = memref.load %arg1[%821, %c8_171] : memref<6x16xf32, #tpu.memory_space<smem>>
    %823 = arith.index_cast %c5_i32 : i32 to index
    %c9_172 = arith.constant 9 : index
    %824 = memref.load %arg1[%823, %c9_172] : memref<6x16xf32, #tpu.memory_space<smem>>
    %825 = vector.broadcast %818 : f32 to vector<4x32xf32>
    %826 = arith.mulf %825, %816 : vector<4x32xf32>
    %827 = vector.broadcast %824 : f32 to vector<32x1xf32>
    %828 = arith.mulf %3, %827 : vector<32x1xf32>
    %829 = arith.addf %828, %4 : vector<32x1xf32>
    %830 = vector.extract_strided_slice %826 {offsets = [0, 0], sizes = [1, 32], strides = [1, 1]} : vector<4x32xf32> to vector<1x32xf32>
    %831 = vector.broadcast %7 : vector<32x1xf32> to vector<32x32xf32>
    %832 = vector.broadcast %830 : vector<1x32xf32> to vector<32x32xf32>
    %833 = arith.mulf %831, %832 : vector<32x32xf32>
    %834 = vector.broadcast %829 : vector<32x1xf32> to vector<32x32xf32>
    %835 = arith.addf %834, %833 : vector<32x32xf32>
    %836 = vector.extract_strided_slice %826 {offsets = [1, 0], sizes = [1, 32], strides = [1, 1]} : vector<4x32xf32> to vector<1x32xf32>
    %837 = vector.broadcast %8 : vector<32x1xf32> to vector<32x32xf32>
    %838 = vector.broadcast %836 : vector<1x32xf32> to vector<32x32xf32>
    %839 = arith.mulf %837, %838 : vector<32x32xf32>
    %840 = arith.addf %835, %839 : vector<32x32xf32>
    %841 = vector.extract_strided_slice %826 {offsets = [2, 0], sizes = [1, 32], strides = [1, 1]} : vector<4x32xf32> to vector<1x32xf32>
    %842 = vector.broadcast %9 : vector<32x1xf32> to vector<32x32xf32>
    %843 = vector.broadcast %841 : vector<1x32xf32> to vector<32x32xf32>
    %844 = arith.mulf %842, %843 : vector<32x32xf32>
    %845 = arith.addf %840, %844 : vector<32x32xf32>
    %846 = vector.extract_strided_slice %826 {offsets = [3, 0], sizes = [1, 32], strides = [1, 1]} : vector<4x32xf32> to vector<1x32xf32>
    %847 = vector.broadcast %10 : vector<32x1xf32> to vector<32x32xf32>
    %848 = vector.broadcast %846 : vector<1x32xf32> to vector<32x32xf32>
    %849 = arith.mulf %847, %848 : vector<32x32xf32>
    %850 = arith.addf %845, %849 : vector<32x32xf32>
    %851 = arith.mulf %850, %850 : vector<32x32xf32>
    %852 = arith.mulf %850, %851 : vector<32x32xf32>
    %cst_173 = arith.constant 4.471500e-02 : f32
    %853 = vector.broadcast %cst_173 : f32 to vector<32x32xf32>
    %854 = arith.mulf %853, %852 : vector<32x32xf32>
    %855 = arith.addf %850, %854 : vector<32x32xf32>
    %cst_174 = arith.constant 0.797884583 : f32
    %856 = vector.broadcast %cst_174 : f32 to vector<32x32xf32>
    %857 = arith.mulf %856, %855 : vector<32x32xf32>
    %858 = math.tanh %857 : vector<32x32xf32>
    %cst_175 = arith.constant 1.000000e+00 : f32
    %859 = vector.broadcast %cst_175 : f32 to vector<32x32xf32>
    %860 = arith.addf %859, %858 : vector<32x32xf32>
    %cst_176 = arith.constant 5.000000e-01 : f32
    %861 = vector.broadcast %cst_176 : f32 to vector<32x32xf32>
    %862 = arith.mulf %861, %860 : vector<32x32xf32>
    %863 = arith.mulf %850, %862 : vector<32x32xf32>
    %cst_177 = arith.constant dense<0.000000e+00> : vector<4x32xf32>
    %864 = tpu.matmul %5, %863, %cst_177 {dimension_numbers = #tpu.dot_dimension_numbers<[1], [0], [0], [1], [0, 0, 1, 1], [], []>} : vector<4x32xf32>, vector<32x32xf32>, vector<4x32xf32> -> vector<4x32xf32>
    %865 = vector.broadcast %6 : vector<4x1xf32> to vector<4x32xf32>
    %866 = arith.addf %864, %865 : vector<4x32xf32>
    %867 = vector.broadcast %820 : f32 to vector<4x32xf32>
    %868 = arith.mulf %867, %816 : vector<4x32xf32>
    %869 = vector.broadcast %822 : f32 to vector<4x32xf32>
    %870 = arith.mulf %869, %866 : vector<4x32xf32>
    %871 = arith.addf %868, %870 : vector<4x32xf32>
    %cst_178 = arith.constant -1.000000e+00 : f32
    %cst_179 = arith.constant 1.000000e+00 : f32
    %872 = vector.broadcast %cst_178 : f32 to vector<4x32xf32>
    %873 = arith.maximumf %872, %871 : vector<4x32xf32>
    %874 = vector.broadcast %cst_179 : f32 to vector<4x32xf32>
    %875 = arith.minimumf %874, %873 : vector<4x32xf32>
    %876 = arith.subf %816, %875 : vector<4x32xf32>
    %877 = vector.broadcast %800 : f32 to vector<4x32xf32>
    %878 = arith.mulf %876, %877 : vector<4x32xf32>
    %879 = vector.broadcast %802 : f32 to vector<4x32xf32>
    %880 = arith.mulf %879, %878 : vector<4x32xf32>
    %881 = arith.addf %816, %880 : vector<4x32xf32>
    %882 = arith.index_cast %c5_i32 : i32 to index
    %c10_180 = arith.constant 10 : index
    %883 = memref.load %arg1[%882, %c10_180] : memref<6x16xf32, #tpu.memory_space<smem>>
    %884 = arith.index_cast %c5_i32 : i32 to index
    %c11_181 = arith.constant 11 : index
    %885 = memref.load %arg1[%884, %c11_181] : memref<6x16xf32, #tpu.memory_space<smem>>
    %886 = arith.index_cast %c5_i32 : i32 to index
    %c12_182 = arith.constant 12 : index
    %887 = memref.load %arg1[%886, %c12_182] : memref<6x16xf32, #tpu.memory_space<smem>>
    %888 = arith.index_cast %c5_i32 : i32 to index
    %c13_183 = arith.constant 13 : index
    %889 = memref.load %arg1[%888, %c13_183] : memref<6x16xf32, #tpu.memory_space<smem>>
    %890 = vector.broadcast %883 : f32 to vector<4x32xf32>
    %891 = arith.mulf %890, %881 : vector<4x32xf32>
    %892 = vector.broadcast %889 : f32 to vector<32x1xf32>
    %893 = arith.mulf %3, %892 : vector<32x1xf32>
    %894 = arith.addf %893, %4 : vector<32x1xf32>
    %895 = vector.extract_strided_slice %891 {offsets = [0, 0], sizes = [1, 32], strides = [1, 1]} : vector<4x32xf32> to vector<1x32xf32>
    %896 = vector.broadcast %7 : vector<32x1xf32> to vector<32x32xf32>
    %897 = vector.broadcast %895 : vector<1x32xf32> to vector<32x32xf32>
    %898 = arith.mulf %896, %897 : vector<32x32xf32>
    %899 = vector.broadcast %894 : vector<32x1xf32> to vector<32x32xf32>
    %900 = arith.addf %899, %898 : vector<32x32xf32>
    %901 = vector.extract_strided_slice %891 {offsets = [1, 0], sizes = [1, 32], strides = [1, 1]} : vector<4x32xf32> to vector<1x32xf32>
    %902 = vector.broadcast %8 : vector<32x1xf32> to vector<32x32xf32>
    %903 = vector.broadcast %901 : vector<1x32xf32> to vector<32x32xf32>
    %904 = arith.mulf %902, %903 : vector<32x32xf32>
    %905 = arith.addf %900, %904 : vector<32x32xf32>
    %906 = vector.extract_strided_slice %891 {offsets = [2, 0], sizes = [1, 32], strides = [1, 1]} : vector<4x32xf32> to vector<1x32xf32>
    %907 = vector.broadcast %9 : vector<32x1xf32> to vector<32x32xf32>
    %908 = vector.broadcast %906 : vector<1x32xf32> to vector<32x32xf32>
    %909 = arith.mulf %907, %908 : vector<32x32xf32>
    %910 = arith.addf %905, %909 : vector<32x32xf32>
    %911 = vector.extract_strided_slice %891 {offsets = [3, 0], sizes = [1, 32], strides = [1, 1]} : vector<4x32xf32> to vector<1x32xf32>
    %912 = vector.broadcast %10 : vector<32x1xf32> to vector<32x32xf32>
    %913 = vector.broadcast %911 : vector<1x32xf32> to vector<32x32xf32>
    %914 = arith.mulf %912, %913 : vector<32x32xf32>
    %915 = arith.addf %910, %914 : vector<32x32xf32>
    %916 = arith.mulf %915, %915 : vector<32x32xf32>
    %917 = arith.mulf %915, %916 : vector<32x32xf32>
    %cst_184 = arith.constant 4.471500e-02 : f32
    %918 = vector.broadcast %cst_184 : f32 to vector<32x32xf32>
    %919 = arith.mulf %918, %917 : vector<32x32xf32>
    %920 = arith.addf %915, %919 : vector<32x32xf32>
    %cst_185 = arith.constant 0.797884583 : f32
    %921 = vector.broadcast %cst_185 : f32 to vector<32x32xf32>
    %922 = arith.mulf %921, %920 : vector<32x32xf32>
    %923 = math.tanh %922 : vector<32x32xf32>
    %cst_186 = arith.constant 1.000000e+00 : f32
    %924 = vector.broadcast %cst_186 : f32 to vector<32x32xf32>
    %925 = arith.addf %924, %923 : vector<32x32xf32>
    %cst_187 = arith.constant 5.000000e-01 : f32
    %926 = vector.broadcast %cst_187 : f32 to vector<32x32xf32>
    %927 = arith.mulf %926, %925 : vector<32x32xf32>
    %928 = arith.mulf %915, %927 : vector<32x32xf32>
    %cst_188 = arith.constant dense<0.000000e+00> : vector<4x32xf32>
    %929 = tpu.matmul %5, %928, %cst_188 {dimension_numbers = #tpu.dot_dimension_numbers<[1], [0], [0], [1], [0, 0, 1, 1], [], []>} : vector<4x32xf32>, vector<32x32xf32>, vector<4x32xf32> -> vector<4x32xf32>
    %930 = vector.broadcast %6 : vector<4x1xf32> to vector<4x32xf32>
    %931 = arith.addf %929, %930 : vector<4x32xf32>
    %932 = vector.broadcast %885 : f32 to vector<4x32xf32>
    %933 = arith.mulf %932, %881 : vector<4x32xf32>
    %934 = vector.broadcast %887 : f32 to vector<4x32xf32>
    %935 = arith.mulf %934, %931 : vector<4x32xf32>
    %936 = arith.addf %933, %935 : vector<4x32xf32>
    %cst_189 = arith.constant -1.000000e+00 : f32
    %cst_190 = arith.constant 1.000000e+00 : f32
    %937 = vector.broadcast %cst_189 : f32 to vector<4x32xf32>
    %938 = arith.maximumf %937, %936 : vector<4x32xf32>
    %939 = vector.broadcast %cst_190 : f32 to vector<4x32xf32>
    %940 = arith.minimumf %939, %938 : vector<4x32xf32>
    %941 = arith.subf %881, %940 : vector<4x32xf32>
    %942 = vector.broadcast %804 : f32 to vector<4x32xf32>
    %943 = arith.mulf %941, %942 : vector<4x32xf32>
    %944 = arith.addf %878, %943 : vector<4x32xf32>
    %945 = vector.broadcast %806 : f32 to vector<4x32xf32>
    %946 = arith.mulf %945, %944 : vector<4x32xf32>
    %947 = arith.addf %816, %946 : vector<4x32xf32>
    %948 = arith.index_cast %c5_i32 : i32 to index
    %c0_191 = arith.constant 0 : index
    %c0_192 = arith.constant 0 : index
    %949 = vector.load %arg6[%948, %c0_191, %c0_192] : memref<6x4x32xf32, #tpu.memory_space<vmem>>, vector<1x4x32xf32>
    %950 = vector.shape_cast %949 : vector<1x4x32xf32> to vector<4x32xf32>
    %951 = vector.broadcast %808 : f32 to vector<4x32xf32>
    %952 = arith.mulf %951, %950 : vector<4x32xf32>
    %953 = arith.addf %947, %952 : vector<4x32xf32>
    %c6_i32 = arith.constant 6 : i32
    %cst_193 = arith.constant -1.000000e+00 : f32
    %cst_194 = arith.constant 1.000000e+00 : f32
    %954 = vector.broadcast %cst_193 : f32 to vector<4x32xf32>
    %955 = arith.maximumf %954, %953 : vector<4x32xf32>
    %956 = vector.broadcast %cst_194 : f32 to vector<4x32xf32>
    %957 = arith.minimumf %956, %955 : vector<4x32xf32>
    %958 = arith.mulf %957, %1 : vector<4x32xf32>
    %959 = arith.addf %958, %0 : vector<4x32xf32>
    %c0_195 = arith.constant 0 : index
    %c0_196 = arith.constant 0 : index
    %960 = vector.load %arg12[%c0_195, %c0_196] : memref<4x32xf32, #tpu.memory_space<vmem>>, vector<4x32xf32>
    tpu.vector_store %arg12[%c0_195, %c0_196], %959 {strides = array<i32>} : memref<4x32xf32, #tpu.memory_space<vmem>>, vector<4x32xf32>,
    return
  }
  func.func @transform_0(%arg0: i32, %arg1: memref<6x16xf32, #tpu.memory_space<smem>>) -> (i32, i32) {
    %c0_i32 = arith.constant 0 : i32
    %c0_i32_0 = arith.constant 0 : i32
    %c0_i32_1 = arith.constant 0 : i32
    return %c0_i32, %c0_i32_0 : i32, i32
  }
  func.func @transform_1(%arg0: i32, %arg1: memref<6x16xf32, #tpu.memory_space<smem>>) -> (i32, i32) {
    %c0_i32 = arith.constant 0 : i32
    %c0_i32_0 = arith.constant 0 : i32
    %c0_i32_1 = arith.constant 0 : i32
    return %c0_i32, %c0_i32_0 : i32, i32
  }
  func.func @transform_2(%arg0: i32, %arg1: memref<6x16xf32, #tpu.memory_space<smem>>) -> (i32, i32) {
    %c0_i32 = arith.constant 0 : i32
    %c0_i32_0 = arith.constant 0 : i32
    %c0_i32_1 = arith.constant 0 : i32
    return %c0_i32, %c0_i32_0 : i32, i32
  }
  func.func @transform_3(%arg0: i32, %arg1: memref<6x16xf32, #tpu.memory_space<smem>>) -> (i32, i32, i32) {
    %c0_i32 = arith.constant 0 : i32
    %c0_i32_0 = arith.constant 0 : i32
    %c0_i32_1 = arith.constant 0 : i32
    %c0_i32_2 = arith.constant 0 : i32
    return %c0_i32, %c0_i32_0, %c0_i32_1 : i32, i32, i32
  }
  func.func @transform_4(%arg0: i32, %arg1: memref<6x16xf32, #tpu.memory_space<smem>>) -> (i32, i32, i32) {
    %c0_i32 = arith.constant 0 : i32
    %c0_i32_0 = arith.constant 0 : i32
    %c0_i32_1 = arith.constant 0 : i32
    %c0_i32_2 = arith.constant 0 : i32
    return %c0_i32, %c0_i32_0, %c0_i32_1 : i32, i32, i32
  }
  func.func @transform_5(%arg0: i32, %arg1: memref<6x16xf32, #tpu.memory_space<smem>>) -> (i32, i32) {
    %c0_i32 = arith.constant 0 : i32
    %c0_i32_0 = arith.constant 0 : i32
    %c0_i32_1 = arith.constant 0 : i32
    return %c0_i32, %c0_i32_0 : i32, i32
  }
  func.func @transform_6(%arg0: i32, %arg1: memref<6x16xf32, #tpu.memory_space<smem>>) -> (i32, i32) {
    %c0_i32 = arith.constant 0 : i32
    %c0_i32_0 = arith.constant 0 : i32
    %c0_i32_1 = arith.constant 0 : i32
    return %c0_i32, %c0_i32_0 : i32, i32
  }
  func.func @transform_7(%arg0: i32, %arg1: memref<6x16xf32, #tpu.memory_space<smem>>) -> (i32, i32) {
    %c0_i32 = arith.constant 0 : i32
    %c0_i32_0 = arith.constant 0 : i32
    %c0_i32_1 = arith.constant 0 : i32
    return %c0_i32, %c0_i32_0 : i32, i32
  }
  func.func @transform_8(%arg0: i32, %arg1: memref<6x16xf32, #tpu.memory_space<smem>>) -> (i32, i32) {
    %c0_i32 = arith.constant 0 : i32
    %c0_i32_0 = arith.constant 0 : i32
    %c0_i32_1 = arith.constant 0 : i32
    return %c0_i32, %c0_i32_0 : i32, i32
  }
  func.func @transform_9(%arg0: i32, %arg1: memref<6x16xf32, #tpu.memory_space<smem>>) -> (i32, i32) {
    %c0_i32 = arith.constant 0 : i32
    %c0_i32_0 = arith.constant 0 : i32
    %c0_i32_1 = arith.constant 0 : i32
    return %c0_i32, %c0_i32_0 : i32, i32
  }
  func.func @transform_10(%arg0: i32, %arg1: memref<6x16xf32, #tpu.memory_space<smem>>) -> (i32, i32) {
    %c0_i32 = arith.constant 0 : i32
    %c0_i32_0 = arith.constant 0 : i32
    %c0_i32_1 = arith.constant 0 : i32
    return %c0_i32, %c0_i32_0 : i32, i32
  }
}

</mosaic_0001>

<llo_original>
// kernel: tpu_custom_call.1
$region0: #{tpu_custom_call.1}
  #allocation0 [shape = 'u32[]', space=smem, size = 0x4, offset = 0x4, fixed_abs, tag = 'smem constant byte address 0x4 - core index']
  #allocation1 [shape = 'u32[144,128]{1,0:T(1,128)}', space=vmem, size = 0x12000, scoped, tag = 'internal scratch']
  #allocation2 [shape = 's32[1]{0}', space=sflag, size = 0x4, scoped, tag = 'scoped memory for tpu_custom_call.1']
  #allocation3 [shape = 'u8[4096]{0}', space=smem, size = 0x1000, scoped, tag = 'prefetched SMEM operand 0']
  %s0 = inlined_call_operand.vmem [shape: f32[6,16], index: 0, kind: input, shape index: {}]
  %s1 = inlined_call_operand.vmem [shape: f32[4,32], index: 1, kind: input, shape index: {}]
  %s2 = inlined_call_operand.vmem [shape: f32[4,32], index: 2, kind: input, shape index: {}]
  %s3 = inlined_call_operand.vmem [shape: f32[4,32], index: 3, kind: input, shape index: {}]
  %s4 = inlined_call_operand.vmem [shape: f32[6,4,32], index: 4, kind: input, shape index: {}]
  %s5 = inlined_call_operand.vmem [shape: f32[6,4,32], index: 5, kind: input, shape index: {}]
  %s6 = inlined_call_operand.vmem [shape: f32[32,4], index: 6, kind: input, shape index: {}]
  %s7 = inlined_call_operand.vmem [shape: f32[32,1], index: 7, kind: input, shape index: {}]
  %s8 = inlined_call_operand.vmem [shape: f32[32,1], index: 8, kind: input, shape index: {}]
  %s9 = inlined_call_operand.vmem [shape: f32[4,32], index: 9, kind: input, shape index: {}]
  %s10 = inlined_call_operand.vmem [shape: f32[4,1], index: 10, kind: input, shape index: {}]
  %s11 = inlined_call_operand.hbm [shape: f32[4,32], index: 11, kind: output, shape index: {}]
  %s12 = sld [smem:[#allocation0]]
  $region50: #{tpu_custom_call.1} parent=0
    _
  %s14 = ssub.s32 1, %s12
  %s15 = scalar_select 0, %s14, %s12
  %s16 = sshll.u32 %s0, 4
  %s17 = int_to_ptr.vmem [resolvable:$true] %s16
  %19 = dma.vmem_to_smem %s17, 128, [#allocation3], [#allocation2]
  %20 = dma.done [#allocation2], 128
  %21 = sfence
  $region1: #{tpu_custom_call.1} parent=0
    #allocation4 [shape = 'u8[2048]{0}', space=vmem, size = 0x800, scoped, tag = 'output window, operand 0, single buffered']
    #allocation5 [shape = 's32[1]{0}', space=sflag, size = 0x4, scoped, tag = 'scoped memory for tpu_custom_call.1']
    %22 = vsyncpa [#allocation5], 0
    // Predicated region
    $region2: #{tpu_custom_call.1} parent=1 // pred_check
      _
    $region3: #{tpu_custom_call.1} parent=1 // pred_check_branch
      %24 = sbr.rel (0) target = $region5
    $region4: #{tpu_custom_call.1} parent=1 // pred_region
      _
    $region5: #{tpu_custom_call.1} parent=1 // pred_fallthru
      _
    // Predicated region
    $region6: #{tpu_custom_call.1} parent=1 // pred_check
      _
    $region7: #{tpu_custom_call.1} parent=1 // pred_check_branch
      %26 = sbr.rel (0) target = $region9
    $region8: #{tpu_custom_call.1} parent=1 // pred_region
      _
    $region9: #{tpu_custom_call.1} parent=1 // pred_fallthru
      _
    // Predicated region
    $region10: #{tpu_custom_call.1} parent=1 // pred_check
      _
    $region11: #{tpu_custom_call.1} parent=1 // pred_check_branch
      %28 = sbr.rel (0) target = $region13
    $region12: #{tpu_custom_call.1} parent=1 // pred_region
      _
    $region13: #{tpu_custom_call.1} parent=1 // pred_fallthru
      _
    // Predicated region
    $region14: #{tpu_custom_call.1} parent=1 // pred_check
      _
    $region15: #{tpu_custom_call.1} parent=1 // pred_check_branch
      %30 = sbr.rel (0) target = $region17
    $region16: #{tpu_custom_call.1} parent=1 // pred_region
      _
    $region17: #{tpu_custom_call.1} parent=1 // pred_fallthru
      _
    // Predicated region
    $region18: #{tpu_custom_call.1} parent=1 // pred_check
      _
    $region19: #{tpu_custom_call.1} parent=1 // pred_check_branch
      %32 = sbr.rel (0) target = $region21
    $region20: #{tpu_custom_call.1} parent=1 // pred_region
      _
    $region21: #{tpu_custom_call.1} parent=1 // pred_fallthru
      _
    // Predicated region
    $region22: #{tpu_custom_call.1} parent=1 // pred_check
      _
    $region23: #{tpu_custom_call.1} parent=1 // pred_check_branch
      %34 = sbr.rel (0) target = $region25
    $region24: #{tpu_custom_call.1} parent=1 // pred_region
      _
    $region25: #{tpu_custom_call.1} parent=1 // pred_fallthru
      _
    // Predicated region
    $region26: #{tpu_custom_call.1} parent=1 // pred_check
      _
    $region27: #{tpu_custom_call.1} parent=1 // pred_check_branch
      %36 = sbr.rel (0) target = $region29
    $region28: #{tpu_custom_call.1} parent=1 // pred_region
      _
    $region29: #{tpu_custom_call.1} parent=1 // pred_fallthru
      _
    // Predicated region
    $region30: #{tpu_custom_call.1} parent=1 // pred_check
      _
    $region31: #{tpu_custom_call.1} parent=1 // pred_check_branch
      %38 = sbr.rel (0) target = $region33
    $region32: #{tpu_custom_call.1} parent=1 // pred_region
      _
    $region33: #{tpu_custom_call.1} parent=1 // pred_fallthru
      _
    // Predicated region
    $region34: #{tpu_custom_call.1} parent=1 // pred_check
      _
    $region35: #{tpu_custom_call.1} parent=1 // pred_check_branch
      %40 = sbr.rel (0) target = $region37
    $region36: #{tpu_custom_call.1} parent=1 // pred_region
      _
    $region37: #{tpu_custom_call.1} parent=1 // pred_fallthru
      _
    // Predicated region
    $region38: #{tpu_custom_call.1} parent=1 // pred_check
      _
    $region39: #{tpu_custom_call.1} parent=1 // pred_check_branch
      %42 = sbr.rel (0) target = $region41
    $region40: #{tpu_custom_call.1} parent=1 // pred_region
      _
    $region41: #{tpu_custom_call.1} parent=1 // pred_fallthru
      _
    %v43 = vld [vmem:[%s1] sm:$0xf]
    %v44 = vld [vmem:[%s2] sm:$0xf]
    %v45 = vld [vmem:[%s6] sm:$0xff]
    %v46 = vld [vmem:[%s6 + $0x8] sm:$0xff]
    %v47 = vld [vmem:[%s6 + $0x10] sm:$0xff]
    %v48 = vld [vmem:[%s6 + $0x18] sm:$0xff]
    %v49 = vld [vmem:[%s7] sm:$0xff]
    %v50 = vld [vmem:[%s7 + $0x8] sm:$0xff]
    %v51 = vld [vmem:[%s7 + $0x10] sm:$0xff]
    %v52 = vld [vmem:[%s7 + $0x18] sm:$0xff]
    %v53 = vld [vmem:[%s8] sm:$0xff]
    %v54 = vld [vmem:[%s8 + $0x8] sm:$0xff]
    %v55 = vld [vmem:[%s8 + $0x10] sm:$0xff]
    %v56 = vld [vmem:[%s8 + $0x18] sm:$0xff]
    %v57 = vld [vmem:[%s9] sm:$0xf]
    %v58 = vld [vmem:[%s10] sm:$0xf]
    %v59 = vld [vmem:[%s3] sm:$0xf]
    %s60 = sld [smem:[#allocation3]]
    %s61 = sld [smem:[#allocation3 + $0x1]]
    %s62 = sld [smem:[#allocation3 + $0x2]]
    %s63 = sld [smem:[#allocation3 + $0x3]]
    %s64 = sld [smem:[#allocation3 + $0x4]]
    %s65 = sld [smem:[#allocation3 + $0x5]]
    %v66 = vmul.f32 %v59, %v44
    %v67 = vadd.f32 %v66, %v43
    %v68 = vld [vmem:[%s4] sm:$0xf]
    %v69 = vstv %s60
    %v70 = vmul.f32 %v69, %v68
    %v71 = vadd.f32 %v67, %v70
    %s72 = sld [smem:[#allocation3 + $0x6]]
    %s73 = sld [smem:[#allocation3 + $0x7]]
    %s74 = sld [smem:[#allocation3 + $0x8]]
    %s75 = sld [smem:[#allocation3 + $0x9]]
    %v76 = vstv %s72
    %v77 = vmul.f32 %v76, %v71
    %v78 = vstv %s75
    %v79 = vmul.f32 %v49, %v78
    %v80 = vmul.f32 %v50, %v78
    %v81 = vmul.f32 %v51, %v78
    %v82 = vmul.f32 %v52, %v78
    %v83 = vadd.f32 %v79, %v53
    %v84 = vadd.f32 %v80, %v54
    %v85 = vadd.f32 %v81, %v55
    %v86 = vadd.f32 %v82, %v56
    %88 = vset.pattern.permute.xlu0 0
    %89 = vperm.xlu0 %88, %v45
    %v90 = vpop.permute.xlu0 %89
    %93 = vset.pattern.permute.xlu0 0
    %94 = vperm.xlu0 %93, %v46
    %v95 = vpop.permute.xlu0 %94
    %98 = vset.pattern.permute.xlu0 0
    %99 = vperm.xlu0 %98, %v47
    %v100 = vpop.permute.xlu0 %99
    %103 = vset.pattern.permute.xlu0 0
    %104 = vperm.xlu0 %103, %v48
    %v105 = vpop.permute.xlu0 %104
    %v107 = vlaneseq
    %v108 = vshrl.u32 %v107, 7
    %v109 = vsub.s32 0, %v108
    %v110 = vrot.slane %v77, %v109
    %v111 = vmul.f32 %v90, %v110
    %v112 = vmul.f32 %v95, %v110
    %v113 = vmul.f32 %v100, %v110
    %v114 = vmul.f32 %v105, %v110
    %116 = vset.pattern.permute.xlu0 0
    %117 = vperm.xlu0 %116, %v83
    %v118 = vpop.permute.xlu0 %117
    %121 = vset.pattern.permute.xlu0 0
    %122 = vperm.xlu0 %121, %v84
    %v123 = vpop.permute.xlu0 %122
    %126 = vset.pattern.permute.xlu0 0
    %127 = vperm.xlu0 %126, %v85
    %v128 = vpop.permute.xlu0 %127
    %131 = vset.pattern.permute.xlu0 0
    %132 = vperm.xlu0 %131, %v86
    %v133 = vpop.permute.xlu0 %132
    %v135 = vadd.f32 %v118, %v111
    %v136 = vadd.f32 %v123, %v112
    %v137 = vadd.f32 %v128, %v113
    %v138 = vadd.f32 %v133, %v114
    %139 = vset.pattern.permute.xlu0 1
    %140 = vperm.xlu0 %139, %v45
    %v141 = vpop.permute.xlu0 %140
    %143 = vset.pattern.permute.xlu0 1
    %144 = vperm.xlu0 %143, %v46
    %v145 = vpop.permute.xlu0 %144
    %147 = vset.pattern.permute.xlu0 1
    %148 = vperm.xlu0 %147, %v47
    %v149 = vpop.permute.xlu0 %148
    %151 = vset.pattern.permute.xlu0 1
    %152 = vperm.xlu0 %151, %v48
    %v153 = vpop.permute.xlu0 %152
    %v155 = vlaneseq
    %v156 = vshrl.u32 %v155, 7
    %v157 = vsub.s32 1, %v156
    %v158 = vrot.slane %v77, %v157
    %v159 = vmul.f32 %v141, %v158
    %v160 = vmul.f32 %v145, %v158
    %v161 = vmul.f32 %v149, %v158
    %v162 = vmul.f32 %v153, %v158
    %v163 = vadd.f32 %v135, %v159
    %v164 = vadd.f32 %v136, %v160
    %v165 = vadd.f32 %v137, %v161
    %v166 = vadd.f32 %v138, %v162
    %167 = vset.pattern.permute.xlu0 2
    %168 = vperm.xlu0 %167, %v45
    %v169 = vpop.permute.xlu0 %168
    %171 = vset.pattern.permute.xlu0 2
    %172 = vperm.xlu0 %171, %v46
    %v173 = vpop.permute.xlu0 %172
    %175 = vset.pattern.permute.xlu0 2
    %176 = vperm.xlu0 %175, %v47
    %v177 = vpop.permute.xlu0 %176
    %179 = vset.pattern.permute.xlu0 2
    %180 = vperm.xlu0 %179, %v48
    %v181 = vpop.permute.xlu0 %180
    %v183 = vlaneseq
    %v184 = vshrl.u32 %v183, 7
    %v185 = vsub.s32 2, %v184
    %v186 = vrot.slane %v77, %v185
    %v187 = vmul.f32 %v169, %v186
    %v188 = vmul.f32 %v173, %v186
    %v189 = vmul.f32 %v177, %v186
    %v190 = vmul.f32 %v181, %v186
    %v191 = vadd.f32 %v163, %v187
    %v192 = vadd.f32 %v164, %v188
    %v193 = vadd.f32 %v165, %v189
    %v194 = vadd.f32 %v166, %v190
    %195 = vset.pattern.permute.xlu0 3
    %196 = vperm.xlu0 %195, %v45
    %v197 = vpop.permute.xlu0 %196
    %199 = vset.pattern.permute.xlu0 3
    %200 = vperm.xlu0 %199, %v46
    %v201 = vpop.permute.xlu0 %200
    %203 = vset.pattern.permute.xlu0 3
    %204 = vperm.xlu0 %203, %v47
    %v205 = vpop.permute.xlu0 %204
    %207 = vset.pattern.permute.xlu0 3
    %208 = vperm.xlu0 %207, %v48
    %v209 = vpop.permute.xlu0 %208
    %v211 = vlaneseq
    %v212 = vshrl.u32 %v211, 7
    %v213 = vsub.s32 3, %v212
    %v214 = vrot.slane %v77, %v213
    %v215 = vmul.f32 %v197, %v214
    %v216 = vmul.f32 %v201, %v214
    %v217 = vmul.f32 %v205, %v214
    %v218 = vmul.f32 %v209, %v214
    %v219 = vadd.f32 %v191, %v215
    %v220 = vadd.f32 %v192, %v216
    %v221 = vadd.f32 %v193, %v217
    %v222 = vadd.f32 %v194, %v218
    %v223 = vmul.f32 %v219, %v219
    %v224 = vmul.f32 %v220, %v220
    %v225 = vmul.f32 %v221, %v221
    %v226 = vmul.f32 %v222, %v222
    %v227 = vmul.f32 %v219, %v223
    %v228 = vmul.f32 %v220, %v224
    %v229 = vmul.f32 %v221, %v225
    %v230 = vmul.f32 %v222, %v226
    %v231 = vmul.f32 %v227, 0.044715
    %v232 = vmul.f32 %v228, 0.044715
    %v233 = vmul.f32 %v229, 0.044715
    %v234 = vmul.f32 %v230, 0.044715
    %v235 = vadd.f32 %v219, %v231
    %v236 = vadd.f32 %v220, %v232
    %v237 = vadd.f32 %v221, %v233
    %v238 = vadd.f32 %v222, %v234
    %v239 = vmul.f32 %v235, 0.7978846
    %v240 = vmul.f32 %v236, 0.7978846
    %v241 = vmul.f32 %v237, 0.7978846
    %v242 = vmul.f32 %v238, 0.7978846
    %v243 = vtanh.pop %v239
    %v244 = vtanh.pop %v240
    %v245 = vtanh.pop %v241
    %v246 = vtanh.pop %v242
    %v247 = vadd.f32 %v243, 1.0
    %v248 = vadd.f32 %v244, 1.0
    %v249 = vadd.f32 %v245, 1.0
    %v250 = vadd.f32 %v246, 1.0
    %v251 = vmul.f32 %v247, 0.5
    %v252 = vmul.f32 %v248, 0.5
    %v253 = vmul.f32 %v249, 0.5
    %v254 = vmul.f32 %v250, 0.5
    %v255 = vmul.f32 %v219, %v251
    %v256 = vmul.f32 %v220, %v252
    %v257 = vmul.f32 %v221, %v253
    %v258 = vmul.f32 %v222, %v254
    %260 = vset.pattern.permute.xlu0 0
    %261 = vperm.xlu0 %260, %v58
    %v262 = vpop.permute.xlu0 %261
    %vm264 = vcmask 261120
    %v266 = vsel %vm264, %v57, 0
    %268 = vmatprep.subr.mxu0 0.0
    %269 = vmatpush1.msra.mxu0 %v255
    %270 = vmatprep.subr.mxu0 0.0
    %271 = vmatpush1.msra.mxu0 %v256
    %272 = vmatprep.subr.mxu0 0.0
    %273 = vmatpush1.msra.mxu0 %v257
    %274 = vmatprep.subr.mxu0 0.0
    %275 = vmatpush1.msra.mxu0 %v258
    %276 = vmatprep.subr.mxu0 0.0
    %277 = vmatpush1.msra.mxu0 0.0
    %278 = vmatprep.subr.mxu0 0.0
    %279 = vmatpush1.msra.mxu0 0.0
    %280 = vmatprep.subr.mxu0 0.0
    %281 = vmatpush1.msra.mxu0 0.0
    %282 = vmatprep.subr.mxu0 0.0
    %283 = vmatpush1.msra.mxu0 0.0
    %284 = vmatprep.subr.mxu0 0.0
    %285 = vmatpush1.msra.mxu0 0.0
    %286 = vmatprep.subr.mxu0 0.0
    %287 = vmatpush1.msra.mxu0 0.0
    %288 = vmatprep.subr.mxu0 0.0
    %289 = vmatpush1.msra.mxu0 0.0
    %290 = vmatprep.subr.mxu0 0.0
    %291 = vmatpush1.msra.mxu0 0.0
    %292 = vmatprep.subr.mxu0 0.0
    %293 = vmatpush1.msra.mxu0 0.0
    %294 = vmatprep.subr.mxu0 0.0
    %295 = vmatpush1.msra.mxu0 0.0
    %296 = vmatprep.subr.mxu0 0.0
    %297 = vmatpush1.msra.mxu0 0.0
    %298 = vmatprep.subr.mxu0 0.0
    %299 = vmatpush1.msra.mxu0 0.0
    %300 = vmatprep.subr.mxu0 0.0
    %301 = vmatpush1.msra.mxu0 0.0
    %302 = vmatprep.subr.mxu0 0.0
    %303 = vmatpush1.msra.mxu0 0.0
    %304 = vmatprep.subr.mxu0 0.0
    %305 = vmatpush1.msra.mxu0 0.0
    %306 = vmatprep.subr.mxu0 0.0
    %307 = vmatpush1.msra.mxu0 0.0
    %308 = vmatprep.subr.mxu0 0.0
    %309 = vmatpush1.msra.mxu0 0.0
    %310 = vmatprep.subr.mxu0 0.0
    %311 = vmatpush1.msra.mxu0 0.0
    %312 = vmatprep.subr.mxu0 0.0
    %313 = vmatpush1.msra.mxu0 0.0
    %314 = vmatprep.subr.mxu0 0.0
    %315 = vmatpush1.msra.mxu0 0.0
    %316 = vmatprep.subr.mxu0 0.0
    %317 = vmatpush1.msra.mxu0 0.0
    %318 = vmatprep.subr.mxu0 0.0
    %319 = vmatpush1.msra.mxu0 0.0
    %320 = vmatprep.subr.mxu0 0.0
    %321 = vmatpush1.msra.mxu0 0.0
    %322 = vmatprep.subr.mxu0 0.0
    %323 = vmatpush1.msra.mxu0 0.0
    %324 = vmatprep.subr.mxu0 0.0
    %325 = vmatpush1.msra.mxu0 0.0
    %326 = vmatprep.subr.mxu0 0.0
    %327 = vmatpush1.msra.mxu0 0.0
    %328 = vmatprep.subr.mxu0 0.0
    %329 = vmatpush1.msra.mxu0 0.0
    %330 = vmatprep.subr.mxu0 0.0
    %331 = vmatpush1.msra.mxu0 0.0
    %332 = vmatprep.mubr.f32.mxu0 0.0
    %333 = vmatmul.mubr.f32.gmra.mrb[0].mxu0 %v266
    %v334 = vpop.f32.mrb[0].mxu0
    %v335 = vadd.f32 %v262, %v334
    %v336 = vpop.f32.mrb[0].mxu0
    %337 = vdwg.mxu0
    %v338 = vstv %s73
    %v339 = vmul.f32 %v338, %v71
    %v340 = vstv %s74
    %v341 = vmul.f32 %v340, %v335
    %v342 = vadd.f32 %v339, %v341
    %v343 = vmax.f32 %v342, -1.0
    %v344 = vmin.f32 %v343, 1.0
    %v345 = vsub.f32 %v71, %v344
    %v346 = vstv %s61
    %v347 = vmul.f32 %v345, %v346
    %v348 = vstv %s62
    %v349 = vmul.f32 %v348, %v347
    %v350 = vadd.f32 %v71, %v349
    %s351 = sld [smem:[#allocation3 + $0xa]]
    %s352 = sld [smem:[#allocation3 + $0xb]]
    %s353 = sld [smem:[#allocation3 + $0xc]]
    %s354 = sld [smem:[#allocation3 + $0xd]]
    %v355 = vstv %s351
    %v356 = vmul.f32 %v355, %v350
    %v357 = vstv %s354
    %v358 = vmul.f32 %v49, %v357
    %v359 = vmul.f32 %v50, %v357
    %v360 = vmul.f32 %v51, %v357
    %v361 = vmul.f32 %v52, %v357
    %v362 = vadd.f32 %v358, %v53
    %v363 = vadd.f32 %v359, %v54
    %v364 = vadd.f32 %v360, %v55
    %v365 = vadd.f32 %v361, %v56
    %v366 = vlaneseq
    %v367 = vshrl.u32 %v366, 7
    %v368 = vsub.s32 0, %v367
    %v369 = vrot.slane %v356, %v368
    %v370 = vmul.f32 %v90, %v369
    %v371 = vmul.f32 %v95, %v369
    %v372 = vmul.f32 %v100, %v369
    %v373 = vmul.f32 %v105, %v369
    %375 = vset.pattern.permute.xlu0 0
    %376 = vperm.xlu0 %375, %v362
    %v377 = vpop.permute.xlu0 %376
    %380 = vset.pattern.permute.xlu0 0
    %381 = vperm.xlu0 %380, %v363
    %v382 = vpop.permute.xlu0 %381
    %385 = vset.pattern.permute.xlu0 0
    %386 = vperm.xlu0 %385, %v364
    %v387 = vpop.permute.xlu0 %386
    %390 = vset.pattern.permute.xlu0 0
    %391 = vperm.xlu0 %390, %v365
    %v392 = vpop.permute.xlu0 %391
    %v394 = vadd.f32 %v377, %v370
    %v395 = vadd.f32 %v382, %v371
    %v396 = vadd.f32 %v387, %v372
    %v397 = vadd.f32 %v392, %v373
    %v398 = vlaneseq
    %v399 = vshrl.u32 %v398, 7
    %v400 = vsub.s32 1, %v399
    %v401 = vrot.slane %v356, %v400
    %v402 = vmul.f32 %v141, %v401
    %v403 = vmul.f32 %v145, %v401
    %v404 = vmul.f32 %v149, %v401
    %v405 = vmul.f32 %v153, %v401
    %v406 = vadd.f32 %v394, %v402
    %v407 = vadd.f32 %v395, %v403
    %v408 = vadd.f32 %v396, %v404
    %v409 = vadd.f32 %v397, %v405
    %v410 = vlaneseq
    %v411 = vshrl.u32 %v410, 7
    %v412 = vsub.s32 2, %v411
    %v413 = vrot.slane %v356, %v412
    %v414 = vmul.f32 %v169, %v413
    %v415 = vmul.f32 %v173, %v413
    %v416 = vmul.f32 %v177, %v413
    %v417 = vmul.f32 %v181, %v413
    %v418 = vadd.f32 %v406, %v414
    %v419 = vadd.f32 %v407, %v415
    %v420 = vadd.f32 %v408, %v416
    %v421 = vadd.f32 %v409, %v417
    %v422 = vlaneseq
    %v423 = vshrl.u32 %v422, 7
    %v424 = vsub.s32 3, %v423
    %v425 = vrot.slane %v356, %v424
    %v426 = vmul.f32 %v197, %v425
    %v427 = vmul.f32 %v201, %v425
    %v428 = vmul.f32 %v205, %v425
    %v429 = vmul.f32 %v209, %v425
    %v430 = vadd.f32 %v418, %v426
    %v431 = vadd.f32 %v419, %v427
    %v432 = vadd.f32 %v420, %v428
    %v433 = vadd.f32 %v421, %v429
    %v434 = vmul.f32 %v430, %v430
    %v435 = vmul.f32 %v431, %v431
    %v436 = vmul.f32 %v432, %v432
    %v437 = vmul.f32 %v433, %v433
    %v438 = vmul.f32 %v430, %v434
    %v439 = vmul.f32 %v431, %v435
    %v440 = vmul.f32 %v432, %v436
    %v441 = vmul.f32 %v433, %v437
    %v442 = vmul.f32 %v438, 0.044715
    %v443 = vmul.f32 %v439, 0.044715
    %v444 = vmul.f32 %v440, 0.044715
    %v445 = vmul.f32 %v441, 0.044715
    %v446 = vadd.f32 %v430, %v442
    %v447 = vadd.f32 %v431, %v443
    %v448 = vadd.f32 %v432, %v444
    %v449 = vadd.f32 %v433, %v445
    %v450 = vmul.f32 %v446, 0.7978846
    %v451 = vmul.f32 %v447, 0.7978846
    %v452 = vmul.f32 %v448, 0.7978846
    %v453 = vmul.f32 %v449, 0.7978846
    %v454 = vtanh.pop %v450
    %v455 = vtanh.pop %v451
    %v456 = vtanh.pop %v452
    %v457 = vtanh.pop %v453
    %v458 = vadd.f32 %v454, 1.0
    %v459 = vadd.f32 %v455, 1.0
    %v460 = vadd.f32 %v456, 1.0
    %v461 = vadd.f32 %v457, 1.0
    %v462 = vmul.f32 %v458, 0.5
    %v463 = vmul.f32 %v459, 0.5
    %v464 = vmul.f32 %v460, 0.5
    %v465 = vmul.f32 %v461, 0.5
    %v466 = vmul.f32 %v430, %v462
    %v467 = vmul.f32 %v431, %v463
    %v468 = vmul.f32 %v432, %v464
    %v469 = vmul.f32 %v433, %v465
    %470 = vmatprep.subr.mxu0 0.0
    %471 = vmatpush1.msra.mxu0 %v466
    %472 = vmatprep.subr.mxu0 0.0
    %473 = vmatpush1.msra.mxu0 %v467
    %474 = vmatprep.subr.mxu0 0.0
    %475 = vmatpush1.msra.mxu0 %v468
    %476 = vmatprep.subr.mxu0 0.0
    %477 = vmatpush1.msra.mxu0 %v469
    %478 = vmatprep.subr.mxu0 0.0
    %479 = vmatpush1.msra.mxu0 0.0
    %480 = vmatprep.subr.mxu0 0.0
    %481 = vmatpush1.msra.mxu0 0.0
    %482 = vmatprep.subr.mxu0 0.0
    %483 = vmatpush1.msra.mxu0 0.0
    %484 = vmatprep.subr.mxu0 0.0
    %485 = vmatpush1.msra.mxu0 0.0
    %486 = vmatprep.subr.mxu0 0.0
    %487 = vmatpush1.msra.mxu0 0.0
    %488 = vmatprep.subr.mxu0 0.0
    %489 = vmatpush1.msra.mxu0 0.0
    %490 = vmatprep.subr.mxu0 0.0
    %491 = vmatpush1.msra.mxu0 0.0
    %492 = vmatprep.subr.mxu0 0.0
    %493 = vmatpush1.msra.mxu0 0.0
    %494 = vmatprep.subr.mxu0 0.0
    %495 = vmatpush1.msra.mxu0 0.0
    %496 = vmatprep.subr.mxu0 0.0
    %497 = vmatpush1.msra.mxu0 0.0
    %498 = vmatprep.subr.mxu0 0.0
    %499 = vmatpush1.msra.mxu0 0.0
    %500 = vmatprep.subr.mxu0 0.0
    %501 = vmatpush1.msra.mxu0 0.0
    %502 = vmatprep.subr.mxu0 0.0
    %503 = vmatpush1.msra.mxu0 0.0
    %504 = vmatprep.subr.mxu0 0.0
    %505 = vmatpush1.msra.mxu0 0.0
    %506 = vmatprep.subr.mxu0 0.0
    %507 = vmatpush1.msra.mxu0 0.0
    %508 = vmatprep.subr.mxu0 0.0
    %509 = vmatpush1.msra.mxu0 0.0
    %510 = vmatprep.subr.mxu0 0.0
    %511 = vmatpush1.msra.mxu0 0.0
    %512 = vmatprep.subr.mxu0 0.0
    %513 = vmatpush1.msra.mxu0 0.0
    %514 = vmatprep.subr.mxu0 0.0
    %515 = vmatpush1.msra.mxu0 0.0
    %516 = vmatprep.subr.mxu0 0.0
    %517 = vmatpush1.msra.mxu0 0.0
    %518 = vmatprep.subr.mxu0 0.0
    %519 = vmatpush1.msra.mxu0 0.0
    %520 = vmatprep.subr.mxu0 0.0
    %521 = vmatpush1.msra.mxu0 0.0
    %522 = vmatprep.subr.mxu0 0.0
    %523 = vmatpush1.msra.mxu0 0.0
    %524 = vmatprep.subr.mxu0 0.0
    %525 = vmatpush1.msra.mxu0 0.0
    %526 = vmatprep.subr.mxu0 0.0
    %527 = vmatpush1.msra.mxu0 0.0
    %528 = vmatprep.subr.mxu0 0.0
    %529 = vmatpush1.msra.mxu0 0.0
    %530 = vmatprep.subr.mxu0 0.0
    %531 = vmatpush1.msra.mxu0 0.0
    %532 = vmatprep.subr.mxu0 0.0
    %533 = vmatpush1.msra.mxu0 0.0
    %534 = vmatprep.mubr.f32.mxu0 0.0
    %535 = vmatmul.mubr.f32.gmra.mrb[0].mxu0 %v266
    %v536 = vpop.f32.mrb[0].mxu0
    %v537 = vadd.f32 %v262, %v536
    %v538 = vpop.f32.mrb[0].mxu0
    %539 = vdwg.mxu0
    %v540 = vstv %s352
    %v541 = vmul.f32 %v540, %v350
    %v542 = vstv %s353
    %v543 = vmul.f32 %v542, %v537
    %v544 = vadd.f32 %v541, %v543
    %v545 = vmax.f32 %v544, -1.0
    %v546 = vmin.f32 %v545, 1.0
    %v547 = vsub.f32 %v350, %v546
    %v548 = vstv %s63
    %v549 = vmul.f32 %v547, %v548
    %v550 = vadd.f32 %v347, %v549
    %v551 = vstv %s64
    %v552 = vmul.f32 %v551, %v550
    %v553 = vadd.f32 %v71, %v552
    %v554 = vld [vmem:[%s5] sm:$0xf]
    %v555 = vstv %s65
    %v556 = vmul.f32 %v555, %v554
    %v557 = vadd.f32 %v553, %v556
    %s558 = sld [smem:[#allocation3 + $0x80]]
    %s559 = sld [smem:[#allocation3 + $0x81]]
    %s560 = sld [smem:[#allocation3 + $0x82]]
    %s561 = sld [smem:[#allocation3 + $0x83]]
    %s562 = sld [smem:[#allocation3 + $0x84]]
    %s563 = sld [smem:[#allocation3 + $0x85]]
    %v564 = vmul.f32 %v557, %v44
    %v565 = vadd.f32 %v564, %v43
    %s566 = scalar_lea.vmem %s4, 4
    %v567 = vld [vmem:[%s566] sm:$0xf]
    %v568 = vstv %s558
    %v569 = vmul.f32 %v568, %v567
    %v570 = vadd.f32 %v565, %v569
    %s571 = sld [smem:[#allocation3 + $0x86]]
    %s572 = sld [smem:[#allocation3 + $0x87]]
    %s573 = sld [smem:[#allocation3 + $0x88]]
    %s574 = sld [smem:[#allocation3 + $0x89]]
    %v575 = vstv %s571
    %v576 = vmul.f32 %v575, %v570
    %v577 = vstv %s574
    %v578 = vmul.f32 %v49, %v577
    %v579 = vmul.f32 %v50, %v577
    %v580 = vmul.f32 %v51, %v577
    %v581 = vmul.f32 %v52, %v577
    %v582 = vadd.f32 %v578, %v53
    %v583 = vadd.f32 %v579, %v54
    %v584 = vadd.f32 %v580, %v55
    %v585 = vadd.f32 %v581, %v56
    %v586 = vlaneseq
    %v587 = vshrl.u32 %v586, 7
    %v588 = vsub.s32 0, %v587
    %v589 = vrot.slane %v576, %v588
    %v590 = vmul.f32 %v90, %v589
    %v591 = vmul.f32 %v95, %v589
    %v592 = vmul.f32 %v100, %v589
    %v593 = vmul.f32 %v105, %v589
    %595 = vset.pattern.permute.xlu0 0
    %596 = vperm.xlu0 %595, %v582
    %v597 = vpop.permute.xlu0 %596
    %600 = vset.pattern.permute.xlu0 0
    %601 = vperm.xlu0 %600, %v583
    %v602 = vpop.permute.xlu0 %601
    %605 = vset.pattern.permute.xlu0 0
    %606 = vperm.xlu0 %605, %v584
    %v607 = vpop.permute.xlu0 %606
    %610 = vset.pattern.permute.xlu0 0
    %611 = vperm.xlu0 %610, %v585
    %v612 = vpop.permute.xlu0 %611
    %v614 = vadd.f32 %v597, %v590
    %v615 = vadd.f32 %v602, %v591
    %v616 = vadd.f32 %v607, %v592
    %v617 = vadd.f32 %v612, %v593
    %v618 = vlaneseq
    %v619 = vshrl.u32 %v618, 7
    %v620 = vsub.s32 1, %v619
    %v621 = vrot.slane %v576, %v620
    %v622 = vmul.f32 %v141, %v621
    %v623 = vmul.f32 %v145, %v621
    %v624 = vmul.f32 %v149, %v621
    %v625 = vmul.f32 %v153, %v621
    %v626 = vadd.f32 %v614, %v622
    %v627 = vadd.f32 %v615, %v623
    %v628 = vadd.f32 %v616, %v624
    %v629 = vadd.f32 %v617, %v625
    %v630 = vlaneseq
    %v631 = vshrl.u32 %v630, 7
    %v632 = vsub.s32 2, %v631
    %v633 = vrot.slane %v576, %v632
    %v634 = vmul.f32 %v169, %v633
    %v635 = vmul.f32 %v173, %v633
    %v636 = vmul.f32 %v177, %v633
    %v637 = vmul.f32 %v181, %v633
    %v638 = vadd.f32 %v626, %v634
    %v639 = vadd.f32 %v627, %v635
    %v640 = vadd.f32 %v628, %v636
    %v641 = vadd.f32 %v629, %v637
    %v642 = vlaneseq
    %v643 = vshrl.u32 %v642, 7
    %v644 = vsub.s32 3, %v643
    %v645 = vrot.slane %v576, %v644
    %v646 = vmul.f32 %v197, %v645
    %v647 = vmul.f32 %v201, %v645
    %v648 = vmul.f32 %v205, %v645
    %v649 = vmul.f32 %v209, %v645
    %v650 = vadd.f32 %v638, %v646
    %v651 = vadd.f32 %v639, %v647
    %v652 = vadd.f32 %v640, %v648
    %v653 = vadd.f32 %v641, %v649
    %v654 = vmul.f32 %v650, %v650
    %v655 = vmul.f32 %v651, %v651
    %v656 = vmul.f32 %v652, %v652
    %v657 = vmul.f32 %v653, %v653
    %v658 = vmul.f32 %v650, %v654
    %v659 = vmul.f32 %v651, %v655
    %v660 = vmul.f32 %v652, %v656
    %v661 = vmul.f32 %v653, %v657
    %v662 = vmul.f32 %v658, 0.044715
    %v663 = vmul.f32 %v659, 0.044715
    %v664 = vmul.f32 %v660, 0.044715
    %v665 = vmul.f32 %v661, 0.044715
    %v666 = vadd.f32 %v650, %v662
    %v667 = vadd.f32 %v651, %v663
    %v668 = vadd.f32 %v652, %v664
    %v669 = vadd.f32 %v653, %v665
    %v670 = vmul.f32 %v666, 0.7978846
    %v671 = vmul.f32 %v667, 0.7978846
    %v672 = vmul.f32 %v668, 0.7978846
    %v673 = vmul.f32 %v669, 0.7978846
    %v674 = vtanh.pop %v670
    %v675 = vtanh.pop %v671
    %v676 = vtanh.pop %v672
    %v677 = vtanh.pop %v673
    %v678 = vadd.f32 %v674, 1.0
    %v679 = vadd.f32 %v675, 1.0
    %v680 = vadd.f32 %v676, 1.0
    %v681 = vadd.f32 %v677, 1.0
    %v682 = vmul.f32 %v678, 0.5
    %v683 = vmul.f32 %v679, 0.5
    %v684 = vmul.f32 %v680, 0.5
    %v685 = vmul.f32 %v681, 0.5
    %v686 = vmul.f32 %v650, %v682
    %v687 = vmul.f32 %v651, %v683
    %v688 = vmul.f32 %v652, %v684
    %v689 = vmul.f32 %v653, %v685
    %690 = vmatprep.subr.mxu0 0.0
    %691 = vmatpush1.msra.mxu0 %v686
    %692 = vmatprep.subr.mxu0 0.0
    %693 = vmatpush1.msra.mxu0 %v687
    %694 = vmatprep.subr.mxu0 0.0
    %695 = vmatpush1.msra.mxu0 %v688
    %696 = vmatprep.subr.mxu0 0.0
    %697 = vmatpush1.msra.mxu0 %v689
    %698 = vmatprep.subr.mxu0 0.0
    %699 = vmatpush1.msra.mxu0 0.0
    %700 = vmatprep.subr.mxu0 0.0
    %701 = vmatpush1.msra.mxu0 0.0
    %702 = vmatprep.subr.mxu0 0.0
    %703 = vmatpush1.msra.mxu0 0.0
    %704 = vmatprep.subr.mxu0 0.0
    %705 = vmatpush1.msra.mxu0 0.0
    %706 = vmatprep.subr.mxu0 0.0
    %707 = vmatpush1.msra.mxu0 0.0
    %708 = vmatprep.subr.mxu0 0.0
    %709 = vmatpush1.msra.mxu0 0.0
    %710 = vmatprep.subr.mxu0 0.0
    %711 = vmatpush1.msra.mxu0 0.0
    %712 = vmatprep.subr.mxu0 0.0
    %713 = vmatpush1.msra.mxu0 0.0
    %714 = vmatprep.subr.mxu0 0.0
    %715 = vmatpush1.msra.mxu0 0.0
    %716 = vmatprep.subr.mxu0 0.0
    %717 = vmatpush1.msra.mxu0 0.0
    %718 = vmatprep.subr.mxu0 0.0
    %719 = vmatpush1.msra.mxu0 0.0
    %720 = vmatprep.subr.mxu0 0.0
    %721 = vmatpush1.msra.mxu0 0.0
    %722 = vmatprep.subr.mxu0 0.0
    %723 = vmatpush1.msra.mxu0 0.0
    %724 = vmatprep.subr.mxu0 0.0
    %725 = vmatpush1.msra.mxu0 0.0
    %726 = vmatprep.subr.mxu0 0.0
    %727 = vmatpush1.msra.mxu0 0.0
    %728 = vmatprep.subr.mxu0 0.0
    %729 = vmatpush1.msra.mxu0 0.0
    %730 = vmatprep.subr.mxu0 0.0
    %731 = vmatpush1.msra.mxu0 0.0
    %732 = vmatprep.subr.mxu0 0.0
    %733 = vmatpush1.msra.mxu0 0.0
    %734 = vmatprep.subr.mxu0 0.0
    %735 = vmatpush1.msra.mxu0 0.0
    %736 = vmatprep.subr.mxu0 0.0
    %737 = vmatpush1.msra.mxu0 0.0
    %738 = vmatprep.subr.mxu0 0.0
    %739 = vmatpush1.msra.mxu0 0.0
    %740 = vmatprep.subr.mxu0 0.0
    %741 = vmatpush1.msra.mxu0 0.0
    %742 = vmatprep.subr.mxu0 0.0
    %743 = vmatpush1.msra.mxu0 0.0
    %744 = vmatprep.subr.mxu0 0.0
    %745 = vmatpush1.msra.mxu0 0.0
    %746 = vmatprep.subr.mxu0 0.0
    %747 = vmatpush1.msra.mxu0 0.0
    %748 = vmatprep.subr.mxu0 0.0
    %749 = vmatpush1.msra.mxu0 0.0
    %750 = vmatprep.subr.mxu0 0.0
    %751 = vmatpush1.msra.mxu0 0.0
    %752 = vmatprep.subr.mxu0 0.0
    %753 = vmatpush1.msra.mxu0 0.0
    %754 = vmatprep.mubr.f32.mxu0 0.0
    %755 = vmatmul.mubr.f32.gmra.mrb[0].mxu0 %v266
    %v756 = vpop.f32.mrb[0].mxu0
    %v757 = vadd.f32 %v262, %v756
    %v758 = vpop.f32.mrb[0].mxu0
    %759 = vdwg.mxu0
    %v760 = vstv %s572
    %v761 = vmul.f32 %v760, %v570
    %v762 = vstv %s573
    %v763 = vmul.f32 %v762, %v757
    %v764 = vadd.f32 %v761, %v763
    %v765 = vmax.f32 %v764, -1.0
    %v766 = vmin.f32 %v765, 1.0
    %v767 = vsub.f32 %v570, %v766
    %v768 = vstv %s559
    %v769 = vmul.f32 %v767, %v768
    %v770 = vstv %s560
    %v771 = vmul.f32 %v770, %v769
    %v772 = vadd.f32 %v570, %v771
    %s773 = sld [smem:[#allocation3 + $0x8a]]
    %s774 = sld [smem:[#allocation3 + $0x8b]]
    %s775 = sld [smem:[#allocation3 + $0x8c]]
    %s776 = sld [smem:[#allocation3 + $0x8d]]
    %v777 = vstv %s773
    %v778 = vmul.f32 %v777, %v772
    %v779 = vstv %s776
    %v780 = vmul.f32 %v49, %v779
    %v781 = vmul.f32 %v50, %v779
    %v782 = vmul.f32 %v51, %v779
    %v783 = vmul.f32 %v52, %v779
    %v784 = vadd.f32 %v780, %v53
    %v785 = vadd.f32 %v781, %v54
    %v786 = vadd.f32 %v782, %v55
    %v787 = vadd.f32 %v783, %v56
    %v788 = vlaneseq
    %v789 = vshrl.u32 %v788, 7
    %v790 = vsub.s32 0, %v789
    %v791 = vrot.slane %v778, %v790
    %v792 = vmul.f32 %v90, %v791
    %v793 = vmul.f32 %v95, %v791
    %v794 = vmul.f32 %v100, %v791
    %v795 = vmul.f32 %v105, %v791
    %797 = vset.pattern.permute.xlu0 0
    %798 = vperm.xlu0 %797, %v784
    %v799 = vpop.permute.xlu0 %798
    %802 = vset.pattern.permute.xlu0 0
    %803 = vperm.xlu0 %802, %v785
    %v804 = vpop.permute.xlu0 %803
    %807 = vset.pattern.permute.xlu0 0
    %808 = vperm.xlu0 %807, %v786
    %v809 = vpop.permute.xlu0 %808
    %812 = vset.pattern.permute.xlu0 0
    %813 = vperm.xlu0 %812, %v787
    %v814 = vpop.permute.xlu0 %813
    %v816 = vadd.f32 %v799, %v792
    %v817 = vadd.f32 %v804, %v793
    %v818 = vadd.f32 %v809, %v794
    %v819 = vadd.f32 %v814, %v795
    %v820 = vlaneseq
    %v821 = vshrl.u32 %v820, 7
    %v822 = vsub.s32 1, %v821
    %v823 = vrot.slane %v778, %v822
    %v824 = vmul.f32 %v141, %v823
    %v825 = vmul.f32 %v145, %v823
    %v826 = vmul.f32 %v149, %v823
    %v827 = vmul.f32 %v153, %v823
    %v828 = vadd.f32 %v816, %v824
    %v829 = vadd.f32 %v817, %v825
    %v830 = vadd.f32 %v818, %v826
    %v831 = vadd.f32 %v819, %v827
    %v832 = vlaneseq
    %v833 = vshrl.u32 %v832, 7
    %v834 = vsub.s32 2, %v833
    %v835 = vrot.slane %v778, %v834
    %v836 = vmul.f32 %v169, %v835
    %v837 = vmul.f32 %v173, %v835
    %v838 = vmul.f32 %v177, %v835
    %v839 = vmul.f32 %v181, %v835
    %v840 = vadd.f32 %v828, %v836
    %v841 = vadd.f32 %v829, %v837
    %v842 = vadd.f32 %v830, %v838
    %v843 = vadd.f32 %v831, %v839
    %v844 = vlaneseq
    %v845 = vshrl.u32 %v844, 7
    %v846 = vsub.s32 3, %v845
    %v847 = vrot.slane %v778, %v846
    %v848 = vmul.f32 %v197, %v847
    %v849 = vmul.f32 %v201, %v847
    %v850 = vmul.f32 %v205, %v847
    %v851 = vmul.f32 %v209, %v847
    %v852 = vadd.f32 %v840, %v848
    %v853 = vadd.f32 %v841, %v849
    %v854 = vadd.f32 %v842, %v850
    %v855 = vadd.f32 %v843, %v851
    %v856 = vmul.f32 %v852, %v852
    %v857 = vmul.f32 %v853, %v853
    %v858 = vmul.f32 %v854, %v854
    %v859 = vmul.f32 %v855, %v855
    %v860 = vmul.f32 %v852, %v856
    %v861 = vmul.f32 %v853, %v857
    %v862 = vmul.f32 %v854, %v858
    %v863 = vmul.f32 %v855, %v859
    %v864 = vmul.f32 %v860, 0.044715
    %v865 = vmul.f32 %v861, 0.044715
    %v866 = vmul.f32 %v862, 0.044715
    %v867 = vmul.f32 %v863, 0.044715
    %v868 = vadd.f32 %v852, %v864
    %v869 = vadd.f32 %v853, %v865
    %v870 = vadd.f32 %v854, %v866
    %v871 = vadd.f32 %v855, %v867
    %v872 = vmul.f32 %v868, 0.7978846
    %v873 = vmul.f32 %v869, 0.7978846
    %v874 = vmul.f32 %v870, 0.7978846
    %v875 = vmul.f32 %v871, 0.7978846
    %v876 = vtanh.pop %v872
    %v877 = vtanh.pop %v873
    %v878 = vtanh.pop %v874
    %v879 = vtanh.pop %v875
    %v880 = vadd.f32 %v876, 1.0
    %v881 = vadd.f32 %v877, 1.0
    %v882 = vadd.f32 %v878, 1.0
    %v883 = vadd.f32 %v879, 1.0
    %v884 = vmul.f32 %v880, 0.5
    %v885 = vmul.f32 %v881, 0.5
    %v886 = vmul.f32 %v882, 0.5
    %v887 = vmul.f32 %v883, 0.5
    %v888 = vmul.f32 %v852, %v884
    %v889 = vmul.f32 %v853, %v885
    %v890 = vmul.f32 %v854, %v886
    %v891 = vmul.f32 %v855, %v887
    %892 = vmatprep.subr.mxu0 0.0
    %893 = vmatpush1.msra.mxu0 %v888
    %894 = vmatprep.subr.mxu0 0.0
    %895 = vmatpush1.msra.mxu0 %v889
    %896 = vmatprep.subr.mxu0 0.0
    %897 = vmatpush1.msra.mxu0 %v890
    %898 = vmatprep.subr.mxu0 0.0
    %899 = vmatpush1.msra.mxu0 %v891
    %900 = vmatprep.subr.mxu0 0.0
    %901 = vmatpush1.msra.mxu0 0.0
    %902 = vmatprep.subr.mxu0 0.0
    %903 = vmatpush1.msra.mxu0 0.0
    %904 = vmatprep.subr.mxu0 0.0
    %905 = vmatpush1.msra.mxu0 0.0
    %906 = vmatprep.subr.mxu0 0.0
    %907 = vmatpush1.msra.mxu0 0.0
    %908 = vmatprep.subr.mxu0 0.0
    %909 = vmatpush1.msra.mxu0 0.0
    %910 = vmatprep.subr.mxu0 0.0
    %911 = vmatpush1.msra.mxu0 0.0
    %912 = vmatprep.subr.mxu0 0.0
    %913 = vmatpush1.msra.mxu0 0.0
    %914 = vmatprep.subr.mxu0 0.0
    %915 = vmatpush1.msra.mxu0 0.0
    %916 = vmatprep.subr.mxu0 0.0
    %917 = vmatpush1.msra.mxu0 0.0
    %918 = vmatprep.subr.mxu0 0.0
    %919 = vmatpush1.msra.mxu0 0.0
    %920 = vmatprep.subr.mxu0 0.0
    %921 = vmatpush1.msra.mxu0 0.0
    %922 = vmatprep.subr.mxu0 0.0
    %923 = vmatpush1.msra.mxu0 0.0
    %924 = vmatprep.subr.mxu0 0.0
    %925 = vmatpush1.msra.mxu0 0.0
    %926 = vmatprep.subr.mxu0 0.0
    %927 = vmatpush1.msra.mxu0 0.0
    %928 = vmatprep.subr.mxu0 0.0
    %929 = vmatpush1.msra.mxu0 0.0
    %930 = vmatprep.subr.mxu0 0.0
    %931 = vmatpush1.msra.mxu0 0.0
    %932 = vmatprep.subr.mxu0 0.0
    %933 = vmatpush1.msra.mxu0 0.0
    %934 = vmatprep.subr.mxu0 0.0
    %935 = vmatpush1.msra.mxu0 0.0
    %936 = vmatprep.subr.mxu0 0.0
    %937 = vmatpush1.msra.mxu0 0.0
    %938 = vmatprep.subr.mxu0 0.0
    %939 = vmatpush1.msra.mxu0 0.0
    %940 = vmatprep.subr.mxu0 0.0
    %941 = vmatpush1.msra.mxu0 0.0
    %942 = vmatprep.subr.mxu0 0.0
    %943 = vmatpush1.msra.mxu0 0.0
    %944 = vmatprep.subr.mxu0 0.0
    %945 = vmatpush1.msra.mxu0 0.0
    %946 = vmatprep.subr.mxu0 0.0
    %947 = vmatpush1.msra.mxu0 0.0
    %948 = vmatprep.subr.mxu0 0.0
    %949 = vmatpush1.msra.mxu0 0.0
    %950 = vmatprep.subr.mxu0 0.0
    %951 = vmatpush1.msra.mxu0 0.0
    %952 = vmatprep.subr.mxu0 0.0
    %953 = vmatpush1.msra.mxu0 0.0
    %954 = vmatprep.subr.mxu0 0.0
    %955 = vmatpush1.msra.mxu0 0.0
    %956 = vmatprep.mubr.f32.mxu0 0.0
    %957 = vmatmul.mubr.f32.gmra.mrb[0].mxu0 %v266
    %v958 = vpop.f32.mrb[0].mxu0
    %v959 = vadd.f32 %v262, %v958
    %v960 = vpop.f32.mrb[0].mxu0
    %961 = vdwg.mxu0
    %v962 = vstv %s774
    %v963 = vmul.f32 %v962, %v772
    %v964 = vstv %s775
    %v965 = vmul.f32 %v964, %v959
    %v966 = vadd.f32 %v963, %v965
    %v967 = vmax.f32 %v966, -1.0
    %v968 = vmin.f32 %v967, 1.0
    %v969 = vsub.f32 %v772, %v968
    %v970 = vstv %s561
    %v971 = vmul.f32 %v969, %v970
    %v972 = vadd.f32 %v769, %v971
    %v973 = vstv %s562
    %v974 = vmul.f32 %v973, %v972
    %v975 = vadd.f32 %v570, %v974
    %s976 = scalar_lea.vmem %s5, 4
    %v977 = vld [vmem:[%s976] sm:$0xf]
    %v978 = vstv %s563
    %v979 = vmul.f32 %v978, %v977
    %v980 = vadd.f32 %v975, %v979
    %s981 = sld [smem:[#allocation3 + $0x100]]
    %s982 = sld [smem:[#allocation3 + $0x101]]
    %s983 = sld [smem:[#allocation3 + $0x102]]
    %s984 = sld [smem:[#allocation3 + $0x103]]
    %s985 = sld [smem:[#allocation3 + $0x104]]
    %s986 = sld [smem:[#allocation3 + $0x105]]
    %v987 = vmul.f32 %v980, %v44
    %v988 = vadd.f32 %v987, %v43
    %s989 = scalar_lea.vmem %s4, 8
    %v990 = vld [vmem:[%s989] sm:$0xf]
    %v991 = vstv %s981
    %v992 = vmul.f32 %v991, %v990
    %v993 = vadd.f32 %v988, %v992
    %s994 = sld [smem:[#allocation3 + $0x106]]
    %s995 = sld [smem:[#allocation3 + $0x107]]
    %s996 = sld [smem:[#allocation3 + $0x108]]
    %s997 = sld [smem:[#allocation3 + $0x109]]
    %v998 = vstv %s994
    %v999 = vmul.f32 %v998, %v993
    %v1000 = vstv %s997
    %v1001 = vmul.f32 %v49, %v1000
    %v1002 = vmul.f32 %v50, %v1000
    %v1003 = vmul.f32 %v51, %v1000
    %v1004 = vmul.f32 %v52, %v1000
    %v1005 = vadd.f32 %v1001, %v53
    %v1006 = vadd.f32 %v1002, %v54
    %v1007 = vadd.f32 %v1003, %v55
    %v1008 = vadd.f32 %v1004, %v56
    %v1009 = vlaneseq
    %v1010 = vshrl.u32 %v1009, 7
    %v1011 = vsub.s32 0, %v1010
    %v1012 = vrot.slane %v999, %v1011
    %v1013 = vmul.f32 %v90, %v1012
    %v1014 = vmul.f32 %v95, %v1012
    %v1015 = vmul.f32 %v100, %v1012
    %v1016 = vmul.f32 %v105, %v1012
    %1018 = vset.pattern.permute.xlu0 0
    %1019 = vperm.xlu0 %1018, %v1005
    %v1020 = vpop.permute.xlu0 %1019
    %1023 = vset.pattern.permute.xlu0 0
    %1024 = vperm.xlu0 %1023, %v1006
    %v1025 = vpop.permute.xlu0 %1024
    %1028 = vset.pattern.permute.xlu0 0
    %1029 = vperm.xlu0 %1028, %v1007
    %v1030 = vpop.permute.xlu0 %1029
    %1033 = vset.pattern.permute.xlu0 0
    %1034 = vperm.xlu0 %1033, %v1008
    %v1035 = vpop.permute.xlu0 %1034
    %v1037 = vadd.f32 %v1020, %v1013
    %v1038 = vadd.f32 %v1025, %v1014
    %v1039 = vadd.f32 %v1030, %v1015
    %v1040 = vadd.f32 %v1035, %v1016
    %v1041 = vlaneseq
    %v1042 = vshrl.u32 %v1041, 7
    %v1043 = vsub.s32 1, %v1042
    %v1044 = vrot.slane %v999, %v1043
    %v1045 = vmul.f32 %v141, %v1044
    %v1046 = vmul.f32 %v145, %v1044
    %v1047 = vmul.f32 %v149, %v1044
    %v1048 = vmul.f32 %v153, %v1044
    %v1049 = vadd.f32 %v1037, %v1045
    %v1050 = vadd.f32 %v1038, %v1046
    %v1051 = vadd.f32 %v1039, %v1047
    %v1052 = vadd.f32 %v1040, %v1048
    %v1053 = vlaneseq
    %v1054 = vshrl.u32 %v1053, 7
    %v1055 = vsub.s32 2, %v1054
    %v1056 = vrot.slane %v999, %v1055
    %v1057 = vmul.f32 %v169, %v1056
    %v1058 = vmul.f32 %v173, %v1056
    %v1059 = vmul.f32 %v177, %v1056
    %v1060 = vmul.f32 %v181, %v1056
    %v1061 = vadd.f32 %v1049, %v1057
    %v1062 = vadd.f32 %v1050, %v1058
    %v1063 = vadd.f32 %v1051, %v1059
    %v1064 = vadd.f32 %v1052, %v1060
    %v1065 = vlaneseq
    %v1066 = vshrl.u32 %v1065, 7
    %v1067 = vsub.s32 3, %v1066
    %v1068 = vrot.slane %v999, %v1067
    %v1069 = vmul.f32 %v197, %v1068
    %v1070 = vmul.f32 %v201, %v1068
    %v1071 = vmul.f32 %v205, %v1068
    %v1072 = vmul.f32 %v209, %v1068
    %v1073 = vadd.f32 %v1061, %v1069
    %v1074 = vadd.f32 %v1062, %v1070
    %v1075 = vadd.f32 %v1063, %v1071
    %v1076 = vadd.f32 %v1064, %v1072
    %v1077 = vmul.f32 %v1073, %v1073
    %v1078 = vmul.f32 %v1074, %v1074
    %v1079 = vmul.f32 %v1075, %v1075
    %v1080 = vmul.f32 %v1076, %v1076
    %v1081 = vmul.f32 %v1073, %v1077
    %v1082 = vmul.f32 %v1074, %v1078
    %v1083 = vmul.f32 %v1075, %v1079
    %v1084 = vmul.f32 %v1076, %v1080
    %v1085 = vmul.f32 %v1081, 0.044715
    %v1086 = vmul.f32 %v1082, 0.044715
    %v1087 = vmul.f32 %v1083, 0.044715
    %v1088 = vmul.f32 %v1084, 0.044715
    %v1089 = vadd.f32 %v1073, %v1085
    %v1090 = vadd.f32 %v1074, %v1086
    %v1091 = vadd.f32 %v1075, %v1087
    %v1092 = vadd.f32 %v1076, %v1088
    %v1093 = vmul.f32 %v1089, 0.7978846
    %v1094 = vmul.f32 %v1090, 0.7978846
    %v1095 = vmul.f32 %v1091, 0.7978846
    %v1096 = vmul.f32 %v1092, 0.7978846
    %v1097 = vtanh.pop %v1093
    %v1098 = vtanh.pop %v1094
    %v1099 = vtanh.pop %v1095
    %v1100 = vtanh.pop %v1096
    %v1101 = vadd.f32 %v1097, 1.0
    %v1102 = vadd.f32 %v1098, 1.0
    %v1103 = vadd.f32 %v1099, 1.0
    %v1104 = vadd.f32 %v1100, 1.0
    %v1105 = vmul.f32 %v1101, 0.5
    %v1106 = vmul.f32 %v1102, 0.5
    %v1107 = vmul.f32 %v1103, 0.5
    %v1108 = vmul.f32 %v1104, 0.5
    %v1109 = vmul.f32 %v1073, %v1105
    %v1110 = vmul.f32 %v1074, %v1106
    %v1111 = vmul.f32 %v1075, %v1107
    %v1112 = vmul.f32 %v1076, %v1108
    %1113 = vmatprep.subr.mxu0 0.0
    %1114 = vmatpush1.msra.mxu0 %v1109
    %1115 = vmatprep.subr.mxu0 0.0
    %1116 = vmatpush1.msra.mxu0 %v1110
    %1117 = vmatprep.subr.mxu0 0.0
    %1118 = vmatpush1.msra.mxu0 %v1111
    %1119 = vmatprep.subr.mxu0 0.0
    %1120 = vmatpush1.msra.mxu0 %v1112
    %1121 = vmatprep.subr.mxu0 0.0
    %1122 = vmatpush1.msra.mxu0 0.0
    %1123 = vmatprep.subr.mxu0 0.0
    %1124 = vmatpush1.msra.mxu0 0.0
    %1125 = vmatprep.subr.mxu0 0.0
    %1126 = vmatpush1.msra.mxu0 0.0
    %1127 = vmatprep.subr.mxu0 0.0
    %1128 = vmatpush1.msra.mxu0 0.0
    %1129 = vmatprep.subr.mxu0 0.0
    %1130 = vmatpush1.msra.mxu0 0.0
    %1131 = vmatprep.subr.mxu0 0.0
    %1132 = vmatpush1.msra.mxu0 0.0
    %1133 = vmatprep.subr.mxu0 0.0
    %1134 = vmatpush1.msra.mxu0 0.0
    %1135 = vmatprep.subr.mxu0 0.0
    %1136 = vmatpush1.msra.mxu0 0.0
    %1137 = vmatprep.subr.mxu0 0.0
    %1138 = vmatpush1.msra.mxu0 0.0
    %1139 = vmatprep.subr.mxu0 0.0
    %1140 = vmatpush1.msra.mxu0 0.0
    %1141 = vmatprep.subr.mxu0 0.0
    %1142 = vmatpush1.msra.mxu0 0.0
    %1143 = vmatprep.subr.mxu0 0.0
    %1144 = vmatpush1.msra.mxu0 0.0
    %1145 = vmatprep.subr.mxu0 0.0
    %1146 = vmatpush1.msra.mxu0 0.0
    %1147 = vmatprep.subr.mxu0 0.0
    %1148 = vmatpush1.msra.mxu0 0.0
    %1149 = vmatprep.subr.mxu0 0.0
    %1150 = vmatpush1.msra.mxu0 0.0
    %1151 = vmatprep.subr.mxu0 0.0
    %1152 = vmatpush1.msra.mxu0 0.0
    %1153 = vmatprep.subr.mxu0 0.0
    %1154 = vmatpush1.msra.mxu0 0.0
    %1155 = vmatprep.subr.mxu0 0.0
    %1156 = vmatpush1.msra.mxu0 0.0
    %1157 = vmatprep.subr.mxu0 0.0
    %1158 = vmatpush1.msra.mxu0 0.0
    %1159 = vmatprep.subr.mxu0 0.0
    %1160 = vmatpush1.msra.mxu0 0.0
    %1161 = vmatprep.subr.mxu0 0.0
    %1162 = vmatpush1.msra.mxu0 0.0
    %1163 = vmatprep.subr.mxu0 0.0
    %1164 = vmatpush1.msra.mxu0 0.0
    %1165 = vmatprep.subr.mxu0 0.0
    %1166 = vmatpush1.msra.mxu0 0.0
    %1167 = vmatprep.subr.mxu0 0.0
    %1168 = vmatpush1.msra.mxu0 0.0
    %1169 = vmatprep.subr.mxu0 0.0
    %1170 = vmatpush1.msra.mxu0 0.0
    %1171 = vmatprep.subr.mxu0 0.0
    %1172 = vmatpush1.msra.mxu0 0.0
    %1173 = vmatprep.subr.mxu0 0.0
    %1174 = vmatpush1.msra.mxu0 0.0
    %1175 = vmatprep.subr.mxu0 0.0
    %1176 = vmatpush1.msra.mxu0 0.0
    %1177 = vmatprep.mubr.f32.mxu0 0.0
    %1178 = vmatmul.mubr.f32.gmra.mrb[0].mxu0 %v266
    %v1179 = vpop.f32.mrb[0].mxu0
    %v1180 = vadd.f32 %v262, %v1179
    %v1181 = vpop.f32.mrb[0].mxu0
    %1182 = vdwg.mxu0
    %v1183 = vstv %s995
    %v1184 = vmul.f32 %v1183, %v993
    %v1185 = vstv %s996
    %v1186 = vmul.f32 %v1185, %v1180
    %v1187 = vadd.f32 %v1184, %v1186
    %v1188 = vmax.f32 %v1187, -1.0
    %v1189 = vmin.f32 %v1188, 1.0
    %v1190 = vsub.f32 %v993, %v1189
    %v1191 = vstv %s982
    %v1192 = vmul.f32 %v1190, %v1191
    %v1193 = vstv %s983
    %v1194 = vmul.f32 %v1193, %v1192
    %v1195 = vadd.f32 %v993, %v1194
    %s1196 = sld [smem:[#allocation3 + $0x10a]]
    %s1197 = sld [smem:[#allocation3 + $0x10b]]
    %s1198 = sld [smem:[#allocation3 + $0x10c]]
    %s1199 = sld [smem:[#allocation3 + $0x10d]]
    %v1200 = vstv %s1196
    %v1201 = vmul.f32 %v1200, %v1195
    %v1202 = vstv %s1199
    %v1203 = vmul.f32 %v49, %v1202
    %v1204 = vmul.f32 %v50, %v1202
    %v1205 = vmul.f32 %v51, %v1202
    %v1206 = vmul.f32 %v52, %v1202
    %v1207 = vadd.f32 %v1203, %v53
    %v1208 = vadd.f32 %v1204, %v54
    %v1209 = vadd.f32 %v1205, %v55
    %v1210 = vadd.f32 %v1206, %v56
    %v1211 = vlaneseq
    %v1212 = vshrl.u32 %v1211, 7
    %v1213 = vsub.s32 0, %v1212
    %v1214 = vrot.slane %v1201, %v1213
    %v1215 = vmul.f32 %v90, %v1214
    %v1216 = vmul.f32 %v95, %v1214
    %v1217 = vmul.f32 %v100, %v1214
    %v1218 = vmul.f32 %v105, %v1214
    %1220 = vset.pattern.permute.xlu0 0
    %1221 = vperm.xlu0 %1220, %v1207
    %v1222 = vpop.permute.xlu0 %1221
    %1225 = vset.pattern.permute.xlu0 0
    %1226 = vperm.xlu0 %1225, %v1208
    %v1227 = vpop.permute.xlu0 %1226
    %1230 = vset.pattern.permute.xlu0 0
    %1231 = vperm.xlu0 %1230, %v1209
    %v1232 = vpop.permute.xlu0 %1231
    %1235 = vset.pattern.permute.xlu0 0
    %1236 = vperm.xlu0 %1235, %v1210
    %v1237 = vpop.permute.xlu0 %1236
    %v1239 = vadd.f32 %v1222, %v1215
    %v1240 = vadd.f32 %v1227, %v1216
    %v1241 = vadd.f32 %v1232, %v1217
    %v1242 = vadd.f32 %v1237, %v1218
    %v1243 = vlaneseq
    %v1244 = vshrl.u32 %v1243, 7
    %v1245 = vsub.s32 1, %v1244
    %v1246 = vrot.slane %v1201, %v1245
    %v1247 = vmul.f32 %v141, %v1246
    %v1248 = vmul.f32 %v145, %v1246
    %v1249 = vmul.f32 %v149, %v1246
    %v1250 = vmul.f32 %v153, %v1246
    %v1251 = vadd.f32 %v1239, %v1247
    %v1252 = vadd.f32 %v1240, %v1248
    %v1253 = vadd.f32 %v1241, %v1249
    %v1254 = vadd.f32 %v1242, %v1250
    %v1255 = vlaneseq
    %v1256 = vshrl.u32 %v1255, 7
    %v1257 = vsub.s32 2, %v1256
    %v1258 = vrot.slane %v1201, %v1257
    %v1259 = vmul.f32 %v169, %v1258
    %v1260 = vmul.f32 %v173, %v1258
    %v1261 = vmul.f32 %v177, %v1258
    %v1262 = vmul.f32 %v181, %v1258
    %v1263 = vadd.f32 %v1251, %v1259
    %v1264 = vadd.f32 %v1252, %v1260
    %v1265 = vadd.f32 %v1253, %v1261
    %v1266 = vadd.f32 %v1254, %v1262
    %v1267 = vlaneseq
    %v1268 = vshrl.u32 %v1267, 7
    %v1269 = vsub.s32 3, %v1268
    %v1270 = vrot.slane %v1201, %v1269
    %v1271 = vmul.f32 %v197, %v1270
    %v1272 = vmul.f32 %v201, %v1270
    %v1273 = vmul.f32 %v205, %v1270
    %v1274 = vmul.f32 %v209, %v1270
    %v1275 = vadd.f32 %v1263, %v1271
    %v1276 = vadd.f32 %v1264, %v1272
    %v1277 = vadd.f32 %v1265, %v1273
    %v1278 = vadd.f32 %v1266, %v1274
    %v1279 = vmul.f32 %v1275, %v1275
    %v1280 = vmul.f32 %v1276, %v1276
    %v1281 = vmul.f32 %v1277, %v1277
    %v1282 = vmul.f32 %v1278, %v1278
    %v1283 = vmul.f32 %v1275, %v1279
    %v1284 = vmul.f32 %v1276, %v1280
    %v1285 = vmul.f32 %v1277, %v1281
    %v1286 = vmul.f32 %v1278, %v1282
    %v1287 = vmul.f32 %v1283, 0.044715
    %v1288 = vmul.f32 %v1284, 0.044715
    %v1289 = vmul.f32 %v1285, 0.044715
    %v1290 = vmul.f32 %v1286, 0.044715
    %v1291 = vadd.f32 %v1275, %v1287
    %v1292 = vadd.f32 %v1276, %v1288
    %v1293 = vadd.f32 %v1277, %v1289
    %v1294 = vadd.f32 %v1278, %v1290
    %v1295 = vmul.f32 %v1291, 0.7978846
    %v1296 = vmul.f32 %v1292, 0.7978846
    %v1297 = vmul.f32 %v1293, 0.7978846
    %v1298 = vmul.f32 %v1294, 0.7978846
    %v1299 = vtanh.pop %v1295
    %v1300 = vtanh.pop %v1296
    %v1301 = vtanh.pop %v1297
    %v1302 = vtanh.pop %v1298
    %v1303 = vadd.f32 %v1299, 1.0
    %v1304 = vadd.f32 %v1300, 1.0
    %v1305 = vadd.f32 %v1301, 1.0
    %v1306 = vadd.f32 %v1302, 1.0
    %v1307 = vmul.f32 %v1303, 0.5
    %v1308 = vmul.f32 %v1304, 0.5
    %v1309 = vmul.f32 %v1305, 0.5
    %v1310 = vmul.f32 %v1306, 0.5
    %v1311 = vmul.f32 %v1275, %v1307
    %v1312 = vmul.f32 %v1276, %v1308
    %v1313 = vmul.f32 %v1277, %v1309
    %v1314 = vmul.f32 %v1278, %v1310
    %1315 = vmatprep.subr.mxu0 0.0
    %1316 = vmatpush1.msra.mxu0 %v1311
    %1317 = vmatprep.subr.mxu0 0.0
    %1318 = vmatpush1.msra.mxu0 %v1312
    %1319 = vmatprep.subr.mxu0 0.0
    %1320 = vmatpush1.msra.mxu0 %v1313
    %1321 = vmatprep.subr.mxu0 0.0
    %1322 = vmatpush1.msra.mxu0 %v1314
    %1323 = vmatprep.subr.mxu0 0.0
    %1324 = vmatpush1.msra.mxu0 0.0
    %1325 = vmatprep.subr.mxu0 0.0
    %1326 = vmatpush1.msra.mxu0 0.0
    %1327 = vmatprep.subr.mxu0 0.0
    %1328 = vmatpush1.msra.mxu0 0.0
    %1329 = vmatprep.subr.mxu0 0.0
    %1330 = vmatpush1.msra.mxu0 0.0
    %1331 = vmatprep.subr.mxu0 0.0
    %1332 = vmatpush1.msra.mxu0 0.0
    %1333 = vmatprep.subr.mxu0 0.0
    %1334 = vmatpush1.msra.mxu0 0.0
    %1335 = vmatprep.subr.mxu0 0.0
    %1336 = vmatpush1.msra.mxu0 0.0
    %1337 = vmatprep.subr.mxu0 0.0
    %1338 = vmatpush1.msra.mxu0 0.0
    %1339 = vmatprep.subr.mxu0 0.0
    %1340 = vmatpush1.msra.mxu0 0.0
    %1341 = vmatprep.subr.mxu0 0.0
    %1342 = vmatpush1.msra.mxu0 0.0
    %1343 = vmatprep.subr.mxu0 0.0
    %1344 = vmatpush1.msra.mxu0 0.0
    %1345 = vmatprep.subr.mxu0 0.0
    %1346 = vmatpush1.msra.mxu0 0.0
    %1347 = vmatprep.subr.mxu0 0.0
    %1348 = vmatpush1.msra.mxu0 0.0
    %1349 = vmatprep.subr.mxu0 0.0
    %1350 = vmatpush1.msra.mxu0 0.0
    %1351 = vmatprep.subr.mxu0 0.0
    %1352 = vmatpush1.msra.mxu0 0.0
    %1353 = vmatprep.subr.mxu0 0.0
    %1354 = vmatpush1.msra.mxu0 0.0
    %1355 = vmatprep.subr.mxu0 0.0
    %1356 = vmatpush1.msra.mxu0 0.0
    %1357 = vmatprep.subr.mxu0 0.0
    %1358 = vmatpush1.msra.mxu0 0.0
    %1359 = vmatprep.subr.mxu0 0.0
    %1360 = vmatpush1.msra.mxu0 0.0
    %1361 = vmatprep.subr.mxu0 0.0
    %1362 = vmatpush1.msra.mxu0 0.0
    %1363 = vmatprep.subr.mxu0 0.0
    %1364 = vmatpush1.msra.mxu0 0.0
    %1365 = vmatprep.subr.mxu0 0.0
    %1366 = vmatpush1.msra.mxu0 0.0
    %1367 = vmatprep.subr.mxu0 0.0
    %1368 = vmatpush1.msra.mxu0 0.0
    %1369 = vmatprep.subr.mxu0 0.0
    %1370 = vmatpush1.msra.mxu0 0.0
    %1371 = vmatprep.subr.mxu0 0.0
    %1372 = vmatpush1.msra.mxu0 0.0
    %1373 = vmatprep.subr.mxu0 0.0
    %1374 = vmatpush1.msra.mxu0 0.0
    %1375 = vmatprep.subr.mxu0 0.0
    %1376 = vmatpush1.msra.mxu0 0.0
    %1377 = vmatprep.subr.mxu0 0.0
    %1378 = vmatpush1.msra.mxu0 0.0
    %1379 = vmatprep.mubr.f32.mxu0 0.0
    %1380 = vmatmul.mubr.f32.gmra.mrb[0].mxu0 %v266
    %v1381 = vpop.f32.mrb[0].mxu0
    %v1382 = vadd.f32 %v262, %v1381
    %v1383 = vpop.f32.mrb[0].mxu0
    %1384 = vdwg.mxu0
    %v1385 = vstv %s1197
    %v1386 = vmul.f32 %v1385, %v1195
    %v1387 = vstv %s1198
    %v1388 = vmul.f32 %v1387, %v1382
    %v1389 = vadd.f32 %v1386, %v1388
    %v1390 = vmax.f32 %v1389, -1.0
    %v1391 = vmin.f32 %v1390, 1.0
    %v1392 = vsub.f32 %v1195, %v1391
    %v1393 = vstv %s984
    %v1394 = vmul.f32 %v1392, %v1393
    %v1395 = vadd.f32 %v1192, %v1394
    %v1396 = vstv %s985
    %v1397 = vmul.f32 %v1396, %v1395
    %v1398 = vadd.f32 %v993, %v1397
    %s1399 = scalar_lea.vmem %s5, 8
    %v1400 = vld [vmem:[%s1399] sm:$0xf]
    %v1401 = vstv %s986
    %v1402 = vmul.f32 %v1401, %v1400
    %v1403 = vadd.f32 %v1398, %v1402
    %s1404 = sld [smem:[#allocation3 + $0x180]]
    %s1405 = sld [smem:[#allocation3 + $0x181]]
    %s1406 = sld [smem:[#allocation3 + $0x182]]
    %s1407 = sld [smem:[#allocation3 + $0x183]]
    %s1408 = sld [smem:[#allocation3 + $0x184]]
    %s1409 = sld [smem:[#allocation3 + $0x185]]
    %v1410 = vmul.f32 %v1403, %v44
    %v1411 = vadd.f32 %v1410, %v43
    %s1412 = scalar_lea.vmem %s4, 12
    %v1413 = vld [vmem:[%s1412] sm:$0xf]
    %v1414 = vstv %s1404
    %v1415 = vmul.f32 %v1414, %v1413
    %v1416 = vadd.f32 %v1411, %v1415
    %s1417 = sld [smem:[#allocation3 + $0x186]]
    %s1418 = sld [smem:[#allocation3 + $0x187]]
    %s1419 = sld [smem:[#allocation3 + $0x188]]
    %s1420 = sld [smem:[#allocation3 + $0x189]]
    %v1421 = vstv %s1417
    %v1422 = vmul.f32 %v1421, %v1416
    %v1423 = vstv %s1420
    %v1424 = vmul.f32 %v49, %v1423
    %v1425 = vmul.f32 %v50, %v1423
    %v1426 = vmul.f32 %v51, %v1423
    %v1427 = vmul.f32 %v52, %v1423
    %v1428 = vadd.f32 %v1424, %v53
    %v1429 = vadd.f32 %v1425, %v54
    %v1430 = vadd.f32 %v1426, %v55
    %v1431 = vadd.f32 %v1427, %v56
    %v1432 = vlaneseq
    %v1433 = vshrl.u32 %v1432, 7
    %v1434 = vsub.s32 0, %v1433
    %v1435 = vrot.slane %v1422, %v1434
    %v1436 = vmul.f32 %v90, %v1435
    %v1437 = vmul.f32 %v95, %v1435
    %v1438 = vmul.f32 %v100, %v1435
    %v1439 = vmul.f32 %v105, %v1435
    %1441 = vset.pattern.permute.xlu0 0
    %1442 = vperm.xlu0 %1441, %v1428
    %v1443 = vpop.permute.xlu0 %1442
    %1446 = vset.pattern.permute.xlu0 0
    %1447 = vperm.xlu0 %1446, %v1429
    %v1448 = vpop.permute.xlu0 %1447
    %1451 = vset.pattern.permute.xlu0 0
    %1452 = vperm.xlu0 %1451, %v1430
    %v1453 = vpop.permute.xlu0 %1452
    %1456 = vset.pattern.permute.xlu0 0
    %1457 = vperm.xlu0 %1456, %v1431
    %v1458 = vpop.permute.xlu0 %1457
    %v1460 = vadd.f32 %v1443, %v1436
    %v1461 = vadd.f32 %v1448, %v1437
    %v1462 = vadd.f32 %v1453, %v1438
    %v1463 = vadd.f32 %v1458, %v1439
    %v1464 = vlaneseq
    %v1465 = vshrl.u32 %v1464, 7
    %v1466 = vsub.s32 1, %v1465
    %v1467 = vrot.slane %v1422, %v1466
    %v1468 = vmul.f32 %v141, %v1467
    %v1469 = vmul.f32 %v145, %v1467
    %v1470 = vmul.f32 %v149, %v1467
    %v1471 = vmul.f32 %v153, %v1467
    %v1472 = vadd.f32 %v1460, %v1468
    %v1473 = vadd.f32 %v1461, %v1469
    %v1474 = vadd.f32 %v1462, %v1470
    %v1475 = vadd.f32 %v1463, %v1471
    %v1476 = vlaneseq
    %v1477 = vshrl.u32 %v1476, 7
    %v1478 = vsub.s32 2, %v1477
    %v1479 = vrot.slane %v1422, %v1478
    %v1480 = vmul.f32 %v169, %v1479
    %v1481 = vmul.f32 %v173, %v1479
    %v1482 = vmul.f32 %v177, %v1479
    %v1483 = vmul.f32 %v181, %v1479
    %v1484 = vadd.f32 %v1472, %v1480
    %v1485 = vadd.f32 %v1473, %v1481
    %v1486 = vadd.f32 %v1474, %v1482
    %v1487 = vadd.f32 %v1475, %v1483
    %v1488 = vlaneseq
    %v1489 = vshrl.u32 %v1488, 7
    %v1490 = vsub.s32 3, %v1489
    %v1491 = vrot.slane %v1422, %v1490
    %v1492 = vmul.f32 %v197, %v1491
    %v1493 = vmul.f32 %v201, %v1491
    %v1494 = vmul.f32 %v205, %v1491
    %v1495 = vmul.f32 %v209, %v1491
    %v1496 = vadd.f32 %v1484, %v1492
    %v1497 = vadd.f32 %v1485, %v1493
    %v1498 = vadd.f32 %v1486, %v1494
    %v1499 = vadd.f32 %v1487, %v1495
    %v1500 = vmul.f32 %v1496, %v1496
    %v1501 = vmul.f32 %v1497, %v1497
    %v1502 = vmul.f32 %v1498, %v1498
    %v1503 = vmul.f32 %v1499, %v1499
    %v1504 = vmul.f32 %v1496, %v1500
    %v1505 = vmul.f32 %v1497, %v1501
    %v1506 = vmul.f32 %v1498, %v1502
    %v1507 = vmul.f32 %v1499, %v1503
    %v1508 = vmul.f32 %v1504, 0.044715
    %v1509 = vmul.f32 %v1505, 0.044715
    %v1510 = vmul.f32 %v1506, 0.044715
    %v1511 = vmul.f32 %v1507, 0.044715
    %v1512 = vadd.f32 %v1496, %v1508
    %v1513 = vadd.f32 %v1497, %v1509
    %v1514 = vadd.f32 %v1498, %v1510
    %v1515 = vadd.f32 %v1499, %v1511
    %v1516 = vmul.f32 %v1512, 0.7978846
    %v1517 = vmul.f32 %v1513, 0.7978846
    %v1518 = vmul.f32 %v1514, 0.7978846
    %v1519 = vmul.f32 %v1515, 0.7978846
    %v1520 = vtanh.pop %v1516
    %v1521 = vtanh.pop %v1517
    %v1522 = vtanh.pop %v1518
    %v1523 = vtanh.pop %v1519
    %v1524 = vadd.f32 %v1520, 1.0
    %v1525 = vadd.f32 %v1521, 1.0
    %v1526 = vadd.f32 %v1522, 1.0
    %v1527 = vadd.f32 %v1523, 1.0
    %v1528 = vmul.f32 %v1524, 0.5
    %v1529 = vmul.f32 %v1525, 0.5
    %v1530 = vmul.f32 %v1526, 0.5
    %v1531 = vmul.f32 %v1527, 0.5
    %v1532 = vmul.f32 %v1496, %v1528
    %v1533 = vmul.f32 %v1497, %v1529
    %v1534 = vmul.f32 %v1498, %v1530
    %v1535 = vmul.f32 %v1499, %v1531
    %1536 = vmatprep.subr.mxu0 0.0
    %1537 = vmatpush1.msra.mxu0 %v1532
    %1538 = vmatprep.subr.mxu0 0.0
    %1539 = vmatpush1.msra.mxu0 %v1533
    %1540 = vmatprep.subr.mxu0 0.0
    %1541 = vmatpush1.msra.mxu0 %v1534
    %1542 = vmatprep.subr.mxu0 0.0
    %1543 = vmatpush1.msra.mxu0 %v1535
    %1544 = vmatprep.subr.mxu0 0.0
    %1545 = vmatpush1.msra.mxu0 0.0
    %1546 = vmatprep.subr.mxu0 0.0
    %1547 = vmatpush1.msra.mxu0 0.0
    %1548 = vmatprep.subr.mxu0 0.0
    %1549 = vmatpush1.msra.mxu0 0.0
    %1550 = vmatprep.subr.mxu0 0.0
    %1551 = vmatpush1.msra.mxu0 0.0
    %1552 = vmatprep.subr.mxu0 0.0
    %1553 = vmatpush1.msra.mxu0 0.0
    %1554 = vmatprep.subr.mxu0 0.0
    %1555 = vmatpush1.msra.mxu0 0.0
    %1556 = vmatprep.subr.mxu0 0.0
    %1557 = vmatpush1.msra.mxu0 0.0
    %1558 = vmatprep.subr.mxu0 0.0
    %1559 = vmatpush1.msra.mxu0 0.0
    %1560 = vmatprep.subr.mxu0 0.0
    %1561 = vmatpush1.msra.mxu0 0.0
    %1562 = vmatprep.subr.mxu0 0.0
    %1563 = vmatpush1.msra.mxu0 0.0
    %1564 = vmatprep.subr.mxu0 0.0
    %1565 = vmatpush1.msra.mxu0 0.0
    %1566 = vmatprep.subr.mxu0 0.0
    %1567 = vmatpush1.msra.mxu0 0.0
    %1568 = vmatprep.subr.mxu0 0.0
    %1569 = vmatpush1.msra.mxu0 0.0
    %1570 = vmatprep.subr.mxu0 0.0
    %1571 = vmatpush1.msra.mxu0 0.0
    %1572 = vmatprep.subr.mxu0 0.0
    %1573 = vmatpush1.msra.mxu0 0.0
    %1574 = vmatprep.subr.mxu0 0.0
    %1575 = vmatpush1.msra.mxu0 0.0
    %1576 = vmatprep.subr.mxu0 0.0
    %1577 = vmatpush1.msra.mxu0 0.0
    %1578 = vmatprep.subr.mxu0 0.0
    %1579 = vmatpush1.msra.mxu0 0.0
    %1580 = vmatprep.subr.mxu0 0.0
    %1581 = vmatpush1.msra.mxu0 0.0
    %1582 = vmatprep.subr.mxu0 0.0
    %1583 = vmatpush1.msra.mxu0 0.0
    %1584 = vmatprep.subr.mxu0 0.0
    %1585 = vmatpush1.msra.mxu0 0.0
    %1586 = vmatprep.subr.mxu0 0.0
    %1587 = vmatpush1.msra.mxu0 0.0
    %1588 = vmatprep.subr.mxu0 0.0
    %1589 = vmatpush1.msra.mxu0 0.0
    %1590 = vmatprep.subr.mxu0 0.0
    %1591 = vmatpush1.msra.mxu0 0.0
    %1592 = vmatprep.subr.mxu0 0.0
    %1593 = vmatpush1.msra.mxu0 0.0
    %1594 = vmatprep.subr.mxu0 0.0
    %1595 = vmatpush1.msra.mxu0 0.0
    %1596 = vmatprep.subr.mxu0 0.0
    %1597 = vmatpush1.msra.mxu0 0.0
    %1598 = vmatprep.subr.mxu0 0.0
    %1599 = vmatpush1.msra.mxu0 0.0
    %1600 = vmatprep.mubr.f32.mxu0 0.0
    %1601 = vmatmul.mubr.f32.gmra.mrb[0].mxu0 %v266
    %v1602 = vpop.f32.mrb[0].mxu0
    %v1603 = vadd.f32 %v262, %v1602
    %v1604 = vpop.f32.mrb[0].mxu0
    %1605 = vdwg.mxu0
    %v1606 = vstv %s1418
    %v1607 = vmul.f32 %v1606, %v1416
    %v1608 = vstv %s1419
    %v1609 = vmul.f32 %v1608, %v1603
    %v1610 = vadd.f32 %v1607, %v1609
    %v1611 = vmax.f32 %v1610, -1.0
    %v1612 = vmin.f32 %v1611, 1.0
    %v1613 = vsub.f32 %v1416, %v1612
    %v1614 = vstv %s1405
    %v1615 = vmul.f32 %v1613, %v1614
    %v1616 = vstv %s1406
    %v1617 = vmul.f32 %v1616, %v1615
    %v1618 = vadd.f32 %v1416, %v1617
    %s1619 = sld [smem:[#allocation3 + $0x18a]]
    %s1620 = sld [smem:[#allocation3 + $0x18b]]
    %s1621 = sld [smem:[#allocation3 + $0x18c]]
    %s1622 = sld [smem:[#allocation3 + $0x18d]]
    %v1623 = vstv %s1619
    %v1624 = vmul.f32 %v1623, %v1618
    %v1625 = vstv %s1622
    %v1626 = vmul.f32 %v49, %v1625
    %v1627 = vmul.f32 %v50, %v1625
    %v1628 = vmul.f32 %v51, %v1625
    %v1629 = vmul.f32 %v52, %v1625
    %v1630 = vadd.f32 %v1626, %v53
    %v1631 = vadd.f32 %v1627, %v54
    %v1632 = vadd.f32 %v1628, %v55
    %v1633 = vadd.f32 %v1629, %v56
    %v1634 = vlaneseq
    %v1635 = vshrl.u32 %v1634, 7
    %v1636 = vsub.s32 0, %v1635
    %v1637 = vrot.slane %v1624, %v1636
    %v1638 = vmul.f32 %v90, %v1637
    %v1639 = vmul.f32 %v95, %v1637
    %v1640 = vmul.f32 %v100, %v1637
    %v1641 = vmul.f32 %v105, %v1637
    %1643 = vset.pattern.permute.xlu0 0
    %1644 = vperm.xlu0 %1643, %v1630
    %v1645 = vpop.permute.xlu0 %1644
    %1648 = vset.pattern.permute.xlu0 0
    %1649 = vperm.xlu0 %1648, %v1631
    %v1650 = vpop.permute.xlu0 %1649
    %1653 = vset.pattern.permute.xlu0 0
    %1654 = vperm.xlu0 %1653, %v1632
    %v1655 = vpop.permute.xlu0 %1654
    %1658 = vset.pattern.permute.xlu0 0
    %1659 = vperm.xlu0 %1658, %v1633
    %v1660 = vpop.permute.xlu0 %1659
    %v1662 = vadd.f32 %v1645, %v1638
    %v1663 = vadd.f32 %v1650, %v1639
    %v1664 = vadd.f32 %v1655, %v1640
    %v1665 = vadd.f32 %v1660, %v1641
    %v1666 = vlaneseq
    %v1667 = vshrl.u32 %v1666, 7
    %v1668 = vsub.s32 1, %v1667
    %v1669 = vrot.slane %v1624, %v1668
    %v1670 = vmul.f32 %v141, %v1669
    %v1671 = vmul.f32 %v145, %v1669
    %v1672 = vmul.f32 %v149, %v1669
    %v1673 = vmul.f32 %v153, %v1669
    %v1674 = vadd.f32 %v1662, %v1670
    %v1675 = vadd.f32 %v1663, %v1671
    %v1676 = vadd.f32 %v1664, %v1672
    %v1677 = vadd.f32 %v1665, %v1673
    %v1678 = vlaneseq
    %v1679 = vshrl.u32 %v1678, 7
    %v1680 = vsub.s32 2, %v1679
    %v1681 = vrot.slane %v1624, %v1680
    %v1682 = vmul.f32 %v169, %v1681
    %v1683 = vmul.f32 %v173, %v1681
    %v1684 = vmul.f32 %v177, %v1681
    %v1685 = vmul.f32 %v181, %v1681
    %v1686 = vadd.f32 %v1674, %v1682
    %v1687 = vadd.f32 %v1675, %v1683
    %v1688 = vadd.f32 %v1676, %v1684
    %v1689 = vadd.f32 %v1677, %v1685
    %v1690 = vlaneseq
    %v1691 = vshrl.u32 %v1690, 7
    %v1692 = vsub.s32 3, %v1691
    %v1693 = vrot.slane %v1624, %v1692
    %v1694 = vmul.f32 %v197, %v1693
    %v1695 = vmul.f32 %v201, %v1693
    %v1696 = vmul.f32 %v205, %v1693
    %v1697 = vmul.f32 %v209, %v1693
    %v1698 = vadd.f32 %v1686, %v1694
    %v1699 = vadd.f32 %v1687, %v1695
    %v1700 = vadd.f32 %v1688, %v1696
    %v1701 = vadd.f32 %v1689, %v1697
    %v1702 = vmul.f32 %v1698, %v1698
    %v1703 = vmul.f32 %v1699, %v1699
    %v1704 = vmul.f32 %v1700, %v1700
    %v1705 = vmul.f32 %v1701, %v1701
    %v1706 = vmul.f32 %v1698, %v1702
    %v1707 = vmul.f32 %v1699, %v1703
    %v1708 = vmul.f32 %v1700, %v1704
    %v1709 = vmul.f32 %v1701, %v1705
    %v1710 = vmul.f32 %v1706, 0.044715
    %v1711 = vmul.f32 %v1707, 0.044715
    %v1712 = vmul.f32 %v1708, 0.044715
    %v1713 = vmul.f32 %v1709, 0.044715
    %v1714 = vadd.f32 %v1698, %v1710
    %v1715 = vadd.f32 %v1699, %v1711
    %v1716 = vadd.f32 %v1700, %v1712
    %v1717 = vadd.f32 %v1701, %v1713
    %v1718 = vmul.f32 %v1714, 0.7978846
    %v1719 = vmul.f32 %v1715, 0.7978846
    %v1720 = vmul.f32 %v1716, 0.7978846
    %v1721 = vmul.f32 %v1717, 0.7978846
    %v1722 = vtanh.pop %v1718
    %v1723 = vtanh.pop %v1719
    %v1724 = vtanh.pop %v1720
    %v1725 = vtanh.pop %v1721
    %v1726 = vadd.f32 %v1722, 1.0
    %v1727 = vadd.f32 %v1723, 1.0
    %v1728 = vadd.f32 %v1724, 1.0
    %v1729 = vadd.f32 %v1725, 1.0
    %v1730 = vmul.f32 %v1726, 0.5
    %v1731 = vmul.f32 %v1727, 0.5
    %v1732 = vmul.f32 %v1728, 0.5
    %v1733 = vmul.f32 %v1729, 0.5
    %v1734 = vmul.f32 %v1698, %v1730
    %v1735 = vmul.f32 %v1699, %v1731
    %v1736 = vmul.f32 %v1700, %v1732
    %v1737 = vmul.f32 %v1701, %v1733
    %1738 = vmatprep.subr.mxu0 0.0
    %1739 = vmatpush1.msra.mxu0 %v1734
    %1740 = vmatprep.subr.mxu0 0.0
    %1741 = vmatpush1.msra.mxu0 %v1735
    %1742 = vmatprep.subr.mxu0 0.0
    %1743 = vmatpush1.msra.mxu0 %v1736
    %1744 = vmatprep.subr.mxu0 0.0
    %1745 = vmatpush1.msra.mxu0 %v1737
    %1746 = vmatprep.subr.mxu0 0.0
    %1747 = vmatpush1.msra.mxu0 0.0
    %1748 = vmatprep.subr.mxu0 0.0
    %1749 = vmatpush1.msra.mxu0 0.0
    %1750 = vmatprep.subr.mxu0 0.0
    %1751 = vmatpush1.msra.mxu0 0.0
    %1752 = vmatprep.subr.mxu0 0.0
    %1753 = vmatpush1.msra.mxu0 0.0
    %1754 = vmatprep.subr.mxu0 0.0
    %1755 = vmatpush1.msra.mxu0 0.0
    %1756 = vmatprep.subr.mxu0 0.0
    %1757 = vmatpush1.msra.mxu0 0.0
    %1758 = vmatprep.subr.mxu0 0.0
    %1759 = vmatpush1.msra.mxu0 0.0
    %1760 = vmatprep.subr.mxu0 0.0
    %1761 = vmatpush1.msra.mxu0 0.0
    %1762 = vmatprep.subr.mxu0 0.0
    %1763 = vmatpush1.msra.mxu0 0.0
    %1764 = vmatprep.subr.mxu0 0.0
    %1765 = vmatpush1.msra.mxu0 0.0
    %1766 = vmatprep.subr.mxu0 0.0
    %1767 = vmatpush1.msra.mxu0 0.0
    %1768 = vmatprep.subr.mxu0 0.0
    %1769 = vmatpush1.msra.mxu0 0.0
    %1770 = vmatprep.subr.mxu0 0.0
    %1771 = vmatpush1.msra.mxu0 0.0
    %1772 = vmatprep.subr.mxu0 0.0
    %1773 = vmatpush1.msra.mxu0 0.0
    %1774 = vmatprep.subr.mxu0 0.0
    %1775 = vmatpush1.msra.mxu0 0.0
    %1776 = vmatprep.subr.mxu0 0.0
    %1777 = vmatpush1.msra.mxu0 0.0
    %1778 = vmatprep.subr.mxu0 0.0
    %1779 = vmatpush1.msra.mxu0 0.0
    %1780 = vmatprep.subr.mxu0 0.0
    %1781 = vmatpush1.msra.mxu0 0.0
    %1782 = vmatprep.subr.mxu0 0.0
    %1783 = vmatpush1.msra.mxu0 0.0
    %1784 = vmatprep.subr.mxu0 0.0
    %1785 = vmatpush1.msra.mxu0 0.0
    %1786 = vmatprep.subr.mxu0 0.0
    %1787 = vmatpush1.msra.mxu0 0.0
    %1788 = vmatprep.subr.mxu0 0.0
    %1789 = vmatpush1.msra.mxu0 0.0
    %1790 = vmatprep.subr.mxu0 0.0
    %1791 = vmatpush1.msra.mxu0 0.0
    %1792 = vmatprep.subr.mxu0 0.0
    %1793 = vmatpush1.msra.mxu0 0.0
    %1794 = vmatprep.subr.mxu0 0.0
    %1795 = vmatpush1.msra.mxu0 0.0
    %1796 = vmatprep.subr.mxu0 0.0
    %1797 = vmatpush1.msra.mxu0 0.0
    %1798 = vmatprep.subr.mxu0 0.0
    %1799 = vmatpush1.msra.mxu0 0.0
    %1800 = vmatprep.subr.mxu0 0.0
    %1801 = vmatpush1.msra.mxu0 0.0
    %1802 = vmatprep.mubr.f32.mxu0 0.0
    %1803 = vmatmul.mubr.f32.gmra.mrb[0].mxu0 %v266
    %v1804 = vpop.f32.mrb[0].mxu0
    %v1805 = vadd.f32 %v262, %v1804
    %v1806 = vpop.f32.mrb[0].mxu0
    %1807 = vdwg.mxu0
    %v1808 = vstv %s1620
    %v1809 = vmul.f32 %v1808, %v1618
    %v1810 = vstv %s1621
    %v1811 = vmul.f32 %v1810, %v1805
    %v1812 = vadd.f32 %v1809, %v1811
    %v1813 = vmax.f32 %v1812, -1.0
    %v1814 = vmin.f32 %v1813, 1.0
    %v1815 = vsub.f32 %v1618, %v1814
    %v1816 = vstv %s1407
    %v1817 = vmul.f32 %v1815, %v1816
    %v1818 = vadd.f32 %v1615, %v1817
    %v1819 = vstv %s1408
    %v1820 = vmul.f32 %v1819, %v1818
    %v1821 = vadd.f32 %v1416, %v1820
    %s1822 = scalar_lea.vmem %s5, 12
    %v1823 = vld [vmem:[%s1822] sm:$0xf]
    %v1824 = vstv %s1409
    %v1825 = vmul.f32 %v1824, %v1823
    %v1826 = vadd.f32 %v1821, %v1825
    %s1827 = sld [smem:[#allocation3 + $0x200]]
    %s1828 = sld [smem:[#allocation3 + $0x201]]
    %s1829 = sld [smem:[#allocation3 + $0x202]]
    %s1830 = sld [smem:[#allocation3 + $0x203]]
    %s1831 = sld [smem:[#allocation3 + $0x204]]
    %s1832 = sld [smem:[#allocation3 + $0x205]]
    %v1833 = vmul.f32 %v1826, %v44
    %v1834 = vadd.f32 %v1833, %v43
    %s1835 = scalar_lea.vmem %s4, 16
    %v1836 = vld [vmem:[%s1835] sm:$0xf]
    %v1837 = vstv %s1827
    %v1838 = vmul.f32 %v1837, %v1836
    %v1839 = vadd.f32 %v1834, %v1838
    %s1840 = sld [smem:[#allocation3 + $0x206]]
    %s1841 = sld [smem:[#allocation3 + $0x207]]
    %s1842 = sld [smem:[#allocation3 + $0x208]]
    %s1843 = sld [smem:[#allocation3 + $0x209]]
    %v1844 = vstv %s1840
    %v1845 = vmul.f32 %v1844, %v1839
    %v1846 = vstv %s1843
    %v1847 = vmul.f32 %v49, %v1846
    %v1848 = vmul.f32 %v50, %v1846
    %v1849 = vmul.f32 %v51, %v1846
    %v1850 = vmul.f32 %v52, %v1846
    %v1851 = vadd.f32 %v1847, %v53
    %v1852 = vadd.f32 %v1848, %v54
    %v1853 = vadd.f32 %v1849, %v55
    %v1854 = vadd.f32 %v1850, %v56
    %v1855 = vlaneseq
    %v1856 = vshrl.u32 %v1855, 7
    %v1857 = vsub.s32 0, %v1856
    %v1858 = vrot.slane %v1845, %v1857
    %v1859 = vmul.f32 %v90, %v1858
    %v1860 = vmul.f32 %v95, %v1858
    %v1861 = vmul.f32 %v100, %v1858
    %v1862 = vmul.f32 %v105, %v1858
    %1864 = vset.pattern.permute.xlu0 0
    %1865 = vperm.xlu0 %1864, %v1851
    %v1866 = vpop.permute.xlu0 %1865
    %1869 = vset.pattern.permute.xlu0 0
    %1870 = vperm.xlu0 %1869, %v1852
    %v1871 = vpop.permute.xlu0 %1870
    %1874 = vset.pattern.permute.xlu0 0
    %1875 = vperm.xlu0 %1874, %v1853
    %v1876 = vpop.permute.xlu0 %1875
    %1879 = vset.pattern.permute.xlu0 0
    %1880 = vperm.xlu0 %1879, %v1854
    %v1881 = vpop.permute.xlu0 %1880
    %v1883 = vadd.f32 %v1866, %v1859
    %v1884 = vadd.f32 %v1871, %v1860
    %v1885 = vadd.f32 %v1876, %v1861
    %v1886 = vadd.f32 %v1881, %v1862
    %v1887 = vlaneseq
    %v1888 = vshrl.u32 %v1887, 7
    %v1889 = vsub.s32 1, %v1888
    %v1890 = vrot.slane %v1845, %v1889
    %v1891 = vmul.f32 %v141, %v1890
    %v1892 = vmul.f32 %v145, %v1890
    %v1893 = vmul.f32 %v149, %v1890
    %v1894 = vmul.f32 %v153, %v1890
    %v1895 = vadd.f32 %v1883, %v1891
    %v1896 = vadd.f32 %v1884, %v1892
    %v1897 = vadd.f32 %v1885, %v1893
    %v1898 = vadd.f32 %v1886, %v1894
    %v1899 = vlaneseq
    %v1900 = vshrl.u32 %v1899, 7
    %v1901 = vsub.s32 2, %v1900
    %v1902 = vrot.slane %v1845, %v1901
    %v1903 = vmul.f32 %v169, %v1902
    %v1904 = vmul.f32 %v173, %v1902
    %v1905 = vmul.f32 %v177, %v1902
    %v1906 = vmul.f32 %v181, %v1902
    %v1907 = vadd.f32 %v1895, %v1903
    %v1908 = vadd.f32 %v1896, %v1904
    %v1909 = vadd.f32 %v1897, %v1905
    %v1910 = vadd.f32 %v1898, %v1906
    %v1911 = vlaneseq
    %v1912 = vshrl.u32 %v1911, 7
    %v1913 = vsub.s32 3, %v1912
    %v1914 = vrot.slane %v1845, %v1913
    %v1915 = vmul.f32 %v197, %v1914
    %v1916 = vmul.f32 %v201, %v1914
    %v1917 = vmul.f32 %v205, %v1914
    %v1918 = vmul.f32 %v209, %v1914
    %v1919 = vadd.f32 %v1907, %v1915
    %v1920 = vadd.f32 %v1908, %v1916
    %v1921 = vadd.f32 %v1909, %v1917
    %v1922 = vadd.f32 %v1910, %v1918
    %v1923 = vmul.f32 %v1919, %v1919
    %v1924 = vmul.f32 %v1920, %v1920
    %v1925 = vmul.f32 %v1921, %v1921
    %v1926 = vmul.f32 %v1922, %v1922
    %v1927 = vmul.f32 %v1919, %v1923
    %v1928 = vmul.f32 %v1920, %v1924
    %v1929 = vmul.f32 %v1921, %v1925
    %v1930 = vmul.f32 %v1922, %v1926
    %v1931 = vmul.f32 %v1927, 0.044715
    %v1932 = vmul.f32 %v1928, 0.044715
    %v1933 = vmul.f32 %v1929, 0.044715
    %v1934 = vmul.f32 %v1930, 0.044715
    %v1935 = vadd.f32 %v1919, %v1931
    %v1936 = vadd.f32 %v1920, %v1932
    %v1937 = vadd.f32 %v1921, %v1933
    %v1938 = vadd.f32 %v1922, %v1934
    %v1939 = vmul.f32 %v1935, 0.7978846
    %v1940 = vmul.f32 %v1936, 0.7978846
    %v1941 = vmul.f32 %v1937, 0.7978846
    %v1942 = vmul.f32 %v1938, 0.7978846
    %v1943 = vtanh.pop %v1939
    %v1944 = vtanh.pop %v1940
    %v1945 = vtanh.pop %v1941
    %v1946 = vtanh.pop %v1942
    %v1947 = vadd.f32 %v1943, 1.0
    %v1948 = vadd.f32 %v1944, 1.0
    %v1949 = vadd.f32 %v1945, 1.0
    %v1950 = vadd.f32 %v1946, 1.0
    %v1951 = vmul.f32 %v1947, 0.5
    %v1952 = vmul.f32 %v1948, 0.5
    %v1953 = vmul.f32 %v1949, 0.5
    %v1954 = vmul.f32 %v1950, 0.5
    %v1955 = vmul.f32 %v1919, %v1951
    %v1956 = vmul.f32 %v1920, %v1952
    %v1957 = vmul.f32 %v1921, %v1953
    %v1958 = vmul.f32 %v1922, %v1954
    %1959 = vmatprep.subr.mxu0 0.0
    %1960 = vmatpush1.msra.mxu0 %v1955
    %1961 = vmatprep.subr.mxu0 0.0
    %1962 = vmatpush1.msra.mxu0 %v1956
    %1963 = vmatprep.subr.mxu0 0.0
    %1964 = vmatpush1.msra.mxu0 %v1957
    %1965 = vmatprep.subr.mxu0 0.0
    %1966 = vmatpush1.msra.mxu0 %v1958
    %1967 = vmatprep.subr.mxu0 0.0
    %1968 = vmatpush1.msra.mxu0 0.0
    %1969 = vmatprep.subr.mxu0 0.0
    %1970 = vmatpush1.msra.mxu0 0.0
    %1971 = vmatprep.subr.mxu0 0.0
    %1972 = vmatpush1.msra.mxu0 0.0
    %1973 = vmatprep.subr.mxu0 0.0
    %1974 = vmatpush1.msra.mxu0 0.0
    %1975 = vmatprep.subr.mxu0 0.0
    %1976 = vmatpush1.msra.mxu0 0.0
    %1977 = vmatprep.subr.mxu0 0.0
    %1978 = vmatpush1.msra.mxu0 0.0
    %1979 = vmatprep.subr.mxu0 0.0
    %1980 = vmatpush1.msra.mxu0 0.0
    %1981 = vmatprep.subr.mxu0 0.0
    %1982 = vmatpush1.msra.mxu0 0.0
    %1983 = vmatprep.subr.mxu0 0.0
    %1984 = vmatpush1.msra.mxu0 0.0
    %1985 = vmatprep.subr.mxu0 0.0
    %1986 = vmatpush1.msra.mxu0 0.0
    %1987 = vmatprep.subr.mxu0 0.0
    %1988 = vmatpush1.msra.mxu0 0.0
    %1989 = vmatprep.subr.mxu0 0.0
    %1990 = vmatpush1.msra.mxu0 0.0
    %1991 = vmatprep.subr.mxu0 0.0
    %1992 = vmatpush1.msra.mxu0 0.0
    %1993 = vmatprep.subr.mxu0 0.0
    %1994 = vmatpush1.msra.mxu0 0.0
    %1995 = vmatprep.subr.mxu0 0.0
    %1996 = vmatpush1.msra.mxu0 0.0
    %1997 = vmatprep.subr.mxu0 0.0
    %1998 = vmatpush1.msra.mxu0 0.0
    %1999 = vmatprep.subr.mxu0 0.0
    %2000 = vmatpush1.msra.mxu0 0.0
    %2001 = vmatprep.subr.mxu0 0.0
    %2002 = vmatpush1.msra.mxu0 0.0
    %2003 = vmatprep.subr.mxu0 0.0
    %2004 = vmatpush1.msra.mxu0 0.0
    %2005 = vmatprep.subr.mxu0 0.0
    %2006 = vmatpush1.msra.mxu0 0.0
    %2007 = vmatprep.subr.mxu0 0.0
    %2008 = vmatpush1.msra.mxu0 0.0
    %2009 = vmatprep.subr.mxu0 0.0
    %2010 = vmatpush1.msra.mxu0 0.0
    %2011 = vmatprep.subr.mxu0 0.0
    %2012 = vmatpush1.msra.mxu0 0.0
    %2013 = vmatprep.subr.mxu0 0.0
    %2014 = vmatpush1.msra.mxu0 0.0
    %2015 = vmatprep.subr.mxu0 0.0
    %2016 = vmatpush1.msra.mxu0 0.0
    %2017 = vmatprep.subr.mxu0 0.0
    %2018 = vmatpush1.msra.mxu0 0.0
    %2019 = vmatprep.subr.mxu0 0.0
    %2020 = vmatpush1.msra.mxu0 0.0
    %2021 = vmatprep.subr.mxu0 0.0
    %2022 = vmatpush1.msra.mxu0 0.0
    %2023 = vmatprep.mubr.f32.mxu0 0.0
    %2024 = vmatmul.mubr.f32.gmra.mrb[0].mxu0 %v266
    %v2025 = vpop.f32.mrb[0].mxu0
    %v2026 = vadd.f32 %v262, %v2025
    %v2027 = vpop.f32.mrb[0].mxu0
    %2028 = vdwg.mxu0
    %v2029 = vstv %s1841
    %v2030 = vmul.f32 %v2029, %v1839
    %v2031 = vstv %s1842
    %v2032 = vmul.f32 %v2031, %v2026
    %v2033 = vadd.f32 %v2030, %v2032
    %v2034 = vmax.f32 %v2033, -1.0
    %v2035 = vmin.f32 %v2034, 1.0
    %v2036 = vsub.f32 %v1839, %v2035
    %v2037 = vstv %s1828
    %v2038 = vmul.f32 %v2036, %v2037
    %v2039 = vstv %s1829
    %v2040 = vmul.f32 %v2039, %v2038
    %v2041 = vadd.f32 %v1839, %v2040
    %s2042 = sld [smem:[#allocation3 + $0x20a]]
    %s2043 = sld [smem:[#allocation3 + $0x20b]]
    %s2044 = sld [smem:[#allocation3 + $0x20c]]
    %s2045 = sld [smem:[#allocation3 + $0x20d]]
    %v2046 = vstv %s2042
    %v2047 = vmul.f32 %v2046, %v2041
    %v2048 = vstv %s2045
    %v2049 = vmul.f32 %v49, %v2048
    %v2050 = vmul.f32 %v50, %v2048
    %v2051 = vmul.f32 %v51, %v2048
    %v2052 = vmul.f32 %v52, %v2048
    %v2053 = vadd.f32 %v2049, %v53
    %v2054 = vadd.f32 %v2050, %v54
    %v2055 = vadd.f32 %v2051, %v55
    %v2056 = vadd.f32 %v2052, %v56
    %v2057 = vlaneseq
    %v2058 = vshrl.u32 %v2057, 7
    %v2059 = vsub.s32 0, %v2058
    %v2060 = vrot.slane %v2047, %v2059
    %v2061 = vmul.f32 %v90, %v2060
    %v2062 = vmul.f32 %v95, %v2060
    %v2063 = vmul.f32 %v100, %v2060
    %v2064 = vmul.f32 %v105, %v2060
    %2066 = vset.pattern.permute.xlu0 0
    %2067 = vperm.xlu0 %2066, %v2053
    %v2068 = vpop.permute.xlu0 %2067
    %2071 = vset.pattern.permute.xlu0 0
    %2072 = vperm.xlu0 %2071, %v2054
    %v2073 = vpop.permute.xlu0 %2072
    %2076 = vset.pattern.permute.xlu0 0
    %2077 = vperm.xlu0 %2076, %v2055
    %v2078 = vpop.permute.xlu0 %2077
    %2081 = vset.pattern.permute.xlu0 0
    %2082 = vperm.xlu0 %2081, %v2056
    %v2083 = vpop.permute.xlu0 %2082
    %v2085 = vadd.f32 %v2068, %v2061
    %v2086 = vadd.f32 %v2073, %v2062
    %v2087 = vadd.f32 %v2078, %v2063
    %v2088 = vadd.f32 %v2083, %v2064
    %v2089 = vlaneseq
    %v2090 = vshrl.u32 %v2089, 7
    %v2091 = vsub.s32 1, %v2090
    %v2092 = vrot.slane %v2047, %v2091
    %v2093 = vmul.f32 %v141, %v2092
    %v2094 = vmul.f32 %v145, %v2092
    %v2095 = vmul.f32 %v149, %v2092
    %v2096 = vmul.f32 %v153, %v2092
    %v2097 = vadd.f32 %v2085, %v2093
    %v2098 = vadd.f32 %v2086, %v2094
    %v2099 = vadd.f32 %v2087, %v2095
    %v2100 = vadd.f32 %v2088, %v2096
    %v2101 = vlaneseq
    %v2102 = vshrl.u32 %v2101, 7
    %v2103 = vsub.s32 2, %v2102
    %v2104 = vrot.slane %v2047, %v2103
    %v2105 = vmul.f32 %v169, %v2104
    %v2106 = vmul.f32 %v173, %v2104
    %v2107 = vmul.f32 %v177, %v2104
    %v2108 = vmul.f32 %v181, %v2104
    %v2109 = vadd.f32 %v2097, %v2105
    %v2110 = vadd.f32 %v2098, %v2106
    %v2111 = vadd.f32 %v2099, %v2107
    %v2112 = vadd.f32 %v2100, %v2108
    %v2113 = vlaneseq
    %v2114 = vshrl.u32 %v2113, 7
    %v2115 = vsub.s32 3, %v2114
    %v2116 = vrot.slane %v2047, %v2115
    %v2117 = vmul.f32 %v197, %v2116
    %v2118 = vmul.f32 %v201, %v2116
    %v2119 = vmul.f32 %v205, %v2116
    %v2120 = vmul.f32 %v209, %v2116
    %v2121 = vadd.f32 %v2109, %v2117
    %v2122 = vadd.f32 %v2110, %v2118
    %v2123 = vadd.f32 %v2111, %v2119
    %v2124 = vadd.f32 %v2112, %v2120
    %v2125 = vmul.f32 %v2121, %v2121
    %v2126 = vmul.f32 %v2122, %v2122
    %v2127 = vmul.f32 %v2123, %v2123
    %v2128 = vmul.f32 %v2124, %v2124
    %v2129 = vmul.f32 %v2121, %v2125
    %v2130 = vmul.f32 %v2122, %v2126
    %v2131 = vmul.f32 %v2123, %v2127
    %v2132 = vmul.f32 %v2124, %v2128
    %v2133 = vmul.f32 %v2129, 0.044715
    %v2134 = vmul.f32 %v2130, 0.044715
    %v2135 = vmul.f32 %v2131, 0.044715
    %v2136 = vmul.f32 %v2132, 0.044715
    %v2137 = vadd.f32 %v2121, %v2133
    %v2138 = vadd.f32 %v2122, %v2134
    %v2139 = vadd.f32 %v2123, %v2135
    %v2140 = vadd.f32 %v2124, %v2136
    %v2141 = vmul.f32 %v2137, 0.7978846
    %v2142 = vmul.f32 %v2138, 0.7978846
    %v2143 = vmul.f32 %v2139, 0.7978846
    %v2144 = vmul.f32 %v2140, 0.7978846
    %v2145 = vtanh.pop %v2141
    %v2146 = vtanh.pop %v2142
    %v2147 = vtanh.pop %v2143
    %v2148 = vtanh.pop %v2144
    %v2149 = vadd.f32 %v2145, 1.0
    %v2150 = vadd.f32 %v2146, 1.0
    %v2151 = vadd.f32 %v2147, 1.0
    %v2152 = vadd.f32 %v2148, 1.0
    %v2153 = vmul.f32 %v2149, 0.5
    %v2154 = vmul.f32 %v2150, 0.5
    %v2155 = vmul.f32 %v2151, 0.5
    %v2156 = vmul.f32 %v2152, 0.5
    %v2157 = vmul.f32 %v2121, %v2153
    %v2158 = vmul.f32 %v2122, %v2154
    %v2159 = vmul.f32 %v2123, %v2155
    %v2160 = vmul.f32 %v2124, %v2156
    %2161 = vmatprep.subr.mxu0 0.0
    %2162 = vmatpush1.msra.mxu0 %v2157
    %2163 = vmatprep.subr.mxu0 0.0
    %2164 = vmatpush1.msra.mxu0 %v2158
    %2165 = vmatprep.subr.mxu0 0.0
    %2166 = vmatpush1.msra.mxu0 %v2159
    %2167 = vmatprep.subr.mxu0 0.0
    %2168 = vmatpush1.msra.mxu0 %v2160
    %2169 = vmatprep.subr.mxu0 0.0
    %2170 = vmatpush1.msra.mxu0 0.0
    %2171 = vmatprep.subr.mxu0 0.0
    %2172 = vmatpush1.msra.mxu0 0.0
    %2173 = vmatprep.subr.mxu0 0.0
    %2174 = vmatpush1.msra.mxu0 0.0
    %2175 = vmatprep.subr.mxu0 0.0
    %2176 = vmatpush1.msra.mxu0 0.0
    %2177 = vmatprep.subr.mxu0 0.0
    %2178 = vmatpush1.msra.mxu0 0.0
    %2179 = vmatprep.subr.mxu0 0.0
    %2180 = vmatpush1.msra.mxu0 0.0
    %2181 = vmatprep.subr.mxu0 0.0
    %2182 = vmatpush1.msra.mxu0 0.0
    %2183 = vmatprep.subr.mxu0 0.0
    %2184 = vmatpush1.msra.mxu0 0.0
    %2185 = vmatprep.subr.mxu0 0.0
    %2186 = vmatpush1.msra.mxu0 0.0
    %2187 = vmatprep.subr.mxu0 0.0
    %2188 = vmatpush1.msra.mxu0 0.0
    %2189 = vmatprep.subr.mxu0 0.0
    %2190 = vmatpush1.msra.mxu0 0.0
    %2191 = vmatprep.subr.mxu0 0.0
    %2192 = vmatpush1.msra.mxu0 0.0
    %2193 = vmatprep.subr.mxu0 0.0
    %2194 = vmatpush1.msra.mxu0 0.0
    %2195 = vmatprep.subr.mxu0 0.0
    %2196 = vmatpush1.msra.mxu0 0.0
    %2197 = vmatprep.subr.mxu0 0.0
    %2198 = vmatpush1.msra.mxu0 0.0
    %2199 = vmatprep.subr.mxu0 0.0
    %2200 = vmatpush1.msra.mxu0 0.0
    %2201 = vmatprep.subr.mxu0 0.0
    %2202 = vmatpush1.msra.mxu0 0.0
    %2203 = vmatprep.subr.mxu0 0.0
    %2204 = vmatpush1.msra.mxu0 0.0
    %2205 = vmatprep.subr.mxu0 0.0
    %2206 = vmatpush1.msra.mxu0 0.0
    %2207 = vmatprep.subr.mxu0 0.0
    %2208 = vmatpush1.msra.mxu0 0.0
    %2209 = vmatprep.subr.mxu0 0.0
    %2210 = vmatpush1.msra.mxu0 0.0
    %2211 = vmatprep.subr.mxu0 0.0
    %2212 = vmatpush1.msra.mxu0 0.0
    %2213 = vmatprep.subr.mxu0 0.0
    %2214 = vmatpush1.msra.mxu0 0.0
    %2215 = vmatprep.subr.mxu0 0.0
    %2216 = vmatpush1.msra.mxu0 0.0
    %2217 = vmatprep.subr.mxu0 0.0
    %2218 = vmatpush1.msra.mxu0 0.0
    %2219 = vmatprep.subr.mxu0 0.0
    %2220 = vmatpush1.msra.mxu0 0.0
    %2221 = vmatprep.subr.mxu0 0.0
    %2222 = vmatpush1.msra.mxu0 0.0
    %2223 = vmatprep.subr.mxu0 0.0
    %2224 = vmatpush1.msra.mxu0 0.0
    %2225 = vmatprep.mubr.f32.mxu0 0.0
    %2226 = vmatmul.mubr.f32.gmra.mrb[0].mxu0 %v266
    %v2227 = vpop.f32.mrb[0].mxu0
    %v2228 = vadd.f32 %v262, %v2227
    %v2229 = vpop.f32.mrb[0].mxu0
    %2230 = vdwg.mxu0
    %v2231 = vstv %s2043
    %v2232 = vmul.f32 %v2231, %v2041
    %v2233 = vstv %s2044
    %v2234 = vmul.f32 %v2233, %v2228
    %v2235 = vadd.f32 %v2232, %v2234
    %v2236 = vmax.f32 %v2235, -1.0
    %v2237 = vmin.f32 %v2236, 1.0
    %v2238 = vsub.f32 %v2041, %v2237
    %v2239 = vstv %s1830
    %v2240 = vmul.f32 %v2238, %v2239
    %v2241 = vadd.f32 %v2038, %v2240
    %v2242 = vstv %s1831
    %v2243 = vmul.f32 %v2242, %v2241
    %v2244 = vadd.f32 %v1839, %v2243
    %s2245 = scalar_lea.vmem %s5, 16
    %v2246 = vld [vmem:[%s2245] sm:$0xf]
    %v2247 = vstv %s1832
    %v2248 = vmul.f32 %v2247, %v2246
    %v2249 = vadd.f32 %v2244, %v2248
    %s2250 = sld [smem:[#allocation3 + $0x280]]
    %s2251 = sld [smem:[#allocation3 + $0x281]]
    %s2252 = sld [smem:[#allocation3 + $0x282]]
    %s2253 = sld [smem:[#allocation3 + $0x283]]
    %s2254 = sld [smem:[#allocation3 + $0x284]]
    %s2255 = sld [smem:[#allocation3 + $0x285]]
    %v2256 = vmul.f32 %v2249, %v44
    %v2257 = vadd.f32 %v2256, %v43
    %s2258 = scalar_lea.vmem %s4, 20
    %v2259 = vld [vmem:[%s2258] sm:$0xf]
    %v2260 = vstv %s2250
    %v2261 = vmul.f32 %v2260, %v2259
    %v2262 = vadd.f32 %v2257, %v2261
    %s2263 = sld [smem:[#allocation3 + $0x286]]
    %s2264 = sld [smem:[#allocation3 + $0x287]]
    %s2265 = sld [smem:[#allocation3 + $0x288]]
    %s2266 = sld [smem:[#allocation3 + $0x289]]
    %v2267 = vstv %s2263
    %v2268 = vmul.f32 %v2267, %v2262
    %v2269 = vstv %s2266
    %v2270 = vmul.f32 %v49, %v2269
    %v2271 = vmul.f32 %v50, %v2269
    %v2272 = vmul.f32 %v51, %v2269
    %v2273 = vmul.f32 %v52, %v2269
    %v2274 = vadd.f32 %v2270, %v53
    %v2275 = vadd.f32 %v2271, %v54
    %v2276 = vadd.f32 %v2272, %v55
    %v2277 = vadd.f32 %v2273, %v56
    %v2278 = vlaneseq
    %v2279 = vshrl.u32 %v2278, 7
    %v2280 = vsub.s32 0, %v2279
    %v2281 = vrot.slane %v2268, %v2280
    %v2282 = vmul.f32 %v90, %v2281
    %v2283 = vmul.f32 %v95, %v2281
    %v2284 = vmul.f32 %v100, %v2281
    %v2285 = vmul.f32 %v105, %v2281
    %2287 = vset.pattern.permute.xlu0 0
    %2288 = vperm.xlu0 %2287, %v2274
    %v2289 = vpop.permute.xlu0 %2288
    %2292 = vset.pattern.permute.xlu0 0
    %2293 = vperm.xlu0 %2292, %v2275
    %v2294 = vpop.permute.xlu0 %2293
    %2297 = vset.pattern.permute.xlu0 0
    %2298 = vperm.xlu0 %2297, %v2276
    %v2299 = vpop.permute.xlu0 %2298
    %2302 = vset.pattern.permute.xlu0 0
    %2303 = vperm.xlu0 %2302, %v2277
    %v2304 = vpop.permute.xlu0 %2303
    %v2306 = vadd.f32 %v2289, %v2282
    %v2307 = vadd.f32 %v2294, %v2283
    %v2308 = vadd.f32 %v2299, %v2284
    %v2309 = vadd.f32 %v2304, %v2285
    %v2310 = vlaneseq
    %v2311 = vshrl.u32 %v2310, 7
    %v2312 = vsub.s32 1, %v2311
    %v2313 = vrot.slane %v2268, %v2312
    %v2314 = vmul.f32 %v141, %v2313
    %v2315 = vmul.f32 %v145, %v2313
    %v2316 = vmul.f32 %v149, %v2313
    %v2317 = vmul.f32 %v153, %v2313
    %v2318 = vadd.f32 %v2306, %v2314
    %v2319 = vadd.f32 %v2307, %v2315
    %v2320 = vadd.f32 %v2308, %v2316
    %v2321 = vadd.f32 %v2309, %v2317
    %v2322 = vlaneseq
    %v2323 = vshrl.u32 %v2322, 7
    %v2324 = vsub.s32 2, %v2323
    %v2325 = vrot.slane %v2268, %v2324
    %v2326 = vmul.f32 %v169, %v2325
    %v2327 = vmul.f32 %v173, %v2325
    %v2328 = vmul.f32 %v177, %v2325
    %v2329 = vmul.f32 %v181, %v2325
    %v2330 = vadd.f32 %v2318, %v2326
    %v2331 = vadd.f32 %v2319, %v2327
    %v2332 = vadd.f32 %v2320, %v2328
    %v2333 = vadd.f32 %v2321, %v2329
    %v2334 = vlaneseq
    %v2335 = vshrl.u32 %v2334, 7
    %v2336 = vsub.s32 3, %v2335
    %v2337 = vrot.slane %v2268, %v2336
    %v2338 = vmul.f32 %v197, %v2337
    %v2339 = vmul.f32 %v201, %v2337
    %v2340 = vmul.f32 %v205, %v2337
    %v2341 = vmul.f32 %v209, %v2337
    %v2342 = vadd.f32 %v2330, %v2338
    %v2343 = vadd.f32 %v2331, %v2339
    %v2344 = vadd.f32 %v2332, %v2340
    %v2345 = vadd.f32 %v2333, %v2341
    %v2346 = vmul.f32 %v2342, %v2342
    %v2347 = vmul.f32 %v2343, %v2343
    %v2348 = vmul.f32 %v2344, %v2344
    %v2349 = vmul.f32 %v2345, %v2345
    %v2350 = vmul.f32 %v2342, %v2346
    %v2351 = vmul.f32 %v2343, %v2347
    %v2352 = vmul.f32 %v2344, %v2348
    %v2353 = vmul.f32 %v2345, %v2349
    %v2354 = vmul.f32 %v2350, 0.044715
    %v2355 = vmul.f32 %v2351, 0.044715
    %v2356 = vmul.f32 %v2352, 0.044715
    %v2357 = vmul.f32 %v2353, 0.044715
    %v2358 = vadd.f32 %v2342, %v2354
    %v2359 = vadd.f32 %v2343, %v2355
    %v2360 = vadd.f32 %v2344, %v2356
    %v2361 = vadd.f32 %v2345, %v2357
    %v2362 = vmul.f32 %v2358, 0.7978846
    %v2363 = vmul.f32 %v2359, 0.7978846
    %v2364 = vmul.f32 %v2360, 0.7978846
    %v2365 = vmul.f32 %v2361, 0.7978846
    %v2366 = vtanh.pop %v2362
    %v2367 = vtanh.pop %v2363
    %v2368 = vtanh.pop %v2364
    %v2369 = vtanh.pop %v2365
    %v2370 = vadd.f32 %v2366, 1.0
    %v2371 = vadd.f32 %v2367, 1.0
    %v2372 = vadd.f32 %v2368, 1.0
    %v2373 = vadd.f32 %v2369, 1.0
    %v2374 = vmul.f32 %v2370, 0.5
    %v2375 = vmul.f32 %v2371, 0.5
    %v2376 = vmul.f32 %v2372, 0.5
    %v2377 = vmul.f32 %v2373, 0.5
    %v2378 = vmul.f32 %v2342, %v2374
    %v2379 = vmul.f32 %v2343, %v2375
    %v2380 = vmul.f32 %v2344, %v2376
    %v2381 = vmul.f32 %v2345, %v2377
    %2382 = vmatprep.subr.mxu0 0.0
    %2383 = vmatpush1.msra.mxu0 %v2378
    %2384 = vmatprep.subr.mxu0 0.0
    %2385 = vmatpush1.msra.mxu0 %v2379
    %2386 = vmatprep.subr.mxu0 0.0
    %2387 = vmatpush1.msra.mxu0 %v2380
    %2388 = vmatprep.subr.mxu0 0.0
    %2389 = vmatpush1.msra.mxu0 %v2381
    %2390 = vmatprep.subr.mxu0 0.0
    %2391 = vmatpush1.msra.mxu0 0.0
    %2392 = vmatprep.subr.mxu0 0.0
    %2393 = vmatpush1.msra.mxu0 0.0
    %2394 = vmatprep.subr.mxu0 0.0
    %2395 = vmatpush1.msra.mxu0 0.0
    %2396 = vmatprep.subr.mxu0 0.0
    %2397 = vmatpush1.msra.mxu0 0.0
    %2398 = vmatprep.subr.mxu0 0.0
    %2399 = vmatpush1.msra.mxu0 0.0
    %2400 = vmatprep.subr.mxu0 0.0
    %2401 = vmatpush1.msra.mxu0 0.0
    %2402 = vmatprep.subr.mxu0 0.0
    %2403 = vmatpush1.msra.mxu0 0.0
    %2404 = vmatprep.subr.mxu0 0.0
    %2405 = vmatpush1.msra.mxu0 0.0
    %2406 = vmatprep.subr.mxu0 0.0
    %2407 = vmatpush1.msra.mxu0 0.0
    %2408 = vmatprep.subr.mxu0 0.0
    %2409 = vmatpush1.msra.mxu0 0.0
    %2410 = vmatprep.subr.mxu0 0.0
    %2411 = vmatpush1.msra.mxu0 0.0
    %2412 = vmatprep.subr.mxu0 0.0
    %2413 = vmatpush1.msra.mxu0 0.0
    %2414 = vmatprep.subr.mxu0 0.0
    %2415 = vmatpush1.msra.mxu0 0.0
    %2416 = vmatprep.subr.mxu0 0.0
    %2417 = vmatpush1.msra.mxu0 0.0
    %2418 = vmatprep.subr.mxu0 0.0
    %2419 = vmatpush1.msra.mxu0 0.0
    %2420 = vmatprep.subr.mxu0 0.0
    %2421 = vmatpush1.msra.mxu0 0.0
    %2422 = vmatprep.subr.mxu0 0.0
    %2423 = vmatpush1.msra.mxu0 0.0
    %2424 = vmatprep.subr.mxu0 0.0
    %2425 = vmatpush1.msra.mxu0 0.0
    %2426 = vmatprep.subr.mxu0 0.0
    %2427 = vmatpush1.msra.mxu0 0.0
    %2428 = vmatprep.subr.mxu0 0.0
    %2429 = vmatpush1.msra.mxu0 0.0
    %2430 = vmatprep.subr.mxu0 0.0
    %2431 = vmatpush1.msra.mxu0 0.0
    %2432 = vmatprep.subr.mxu0 0.0
    %2433 = vmatpush1.msra.mxu0 0.0
    %2434 = vmatprep.subr.mxu0 0.0
    %2435 = vmatpush1.msra.mxu0 0.0
    %2436 = vmatprep.subr.mxu0 0.0
    %2437 = vmatpush1.msra.mxu0 0.0
    %2438 = vmatprep.subr.mxu0 0.0
    %2439 = vmatpush1.msra.mxu0 0.0
    %2440 = vmatprep.subr.mxu0 0.0
    %2441 = vmatpush1.msra.mxu0 0.0
    %2442 = vmatprep.subr.mxu0 0.0
    %2443 = vmatpush1.msra.mxu0 0.0
    %2444 = vmatprep.subr.mxu0 0.0
    %2445 = vmatpush1.msra.mxu0 0.0
    %2446 = vmatprep.mubr.f32.mxu0 0.0
    %2447 = vmatmul.mubr.f32.gmra.mrb[0].mxu0 %v266
    %v2448 = vpop.f32.mrb[0].mxu0
    %v2449 = vadd.f32 %v262, %v2448
    %v2450 = vpop.f32.mrb[0].mxu0
    %2451 = vdwg.mxu0
    %v2452 = vstv %s2264
    %v2453 = vmul.f32 %v2452, %v2262
    %v2454 = vstv %s2265
    %v2455 = vmul.f32 %v2454, %v2449
    %v2456 = vadd.f32 %v2453, %v2455
    %v2457 = vmax.f32 %v2456, -1.0
    %v2458 = vmin.f32 %v2457, 1.0
    %v2459 = vsub.f32 %v2262, %v2458
    %v2460 = vstv %s2251
    %v2461 = vmul.f32 %v2459, %v2460
    %v2462 = vstv %s2252
    %v2463 = vmul.f32 %v2462, %v2461
    %v2464 = vadd.f32 %v2262, %v2463
    %s2465 = sld [smem:[#allocation3 + $0x28a]]
    %s2466 = sld [smem:[#allocation3 + $0x28b]]
    %s2467 = sld [smem:[#allocation3 + $0x28c]]
    %s2468 = sld [smem:[#allocation3 + $0x28d]]
    %v2469 = vstv %s2465
    %v2470 = vmul.f32 %v2469, %v2464
    %v2471 = vstv %s2468
    %v2472 = vmul.f32 %v49, %v2471
    %v2473 = vmul.f32 %v50, %v2471
    %v2474 = vmul.f32 %v51, %v2471
    %v2475 = vmul.f32 %v52, %v2471
    %v2476 = vadd.f32 %v2472, %v53
    %v2477 = vadd.f32 %v2473, %v54
    %v2478 = vadd.f32 %v2474, %v55
    %v2479 = vadd.f32 %v2475, %v56
    %v2480 = vlaneseq
    %v2481 = vshrl.u32 %v2480, 7
    %v2482 = vsub.s32 0, %v2481
    %v2483 = vrot.slane %v2470, %v2482
    %v2484 = vmul.f32 %v90, %v2483
    %v2485 = vmul.f32 %v95, %v2483
    %v2486 = vmul.f32 %v100, %v2483
    %v2487 = vmul.f32 %v105, %v2483
    %2489 = vset.pattern.permute.xlu0 0
    %2490 = vperm.xlu0 %2489, %v2476
    %v2491 = vpop.permute.xlu0 %2490
    %2494 = vset.pattern.permute.xlu0 0
    %2495 = vperm.xlu0 %2494, %v2477
    %v2496 = vpop.permute.xlu0 %2495
    %2499 = vset.pattern.permute.xlu0 0
    %2500 = vperm.xlu0 %2499, %v2478
    %v2501 = vpop.permute.xlu0 %2500
    %2504 = vset.pattern.permute.xlu0 0
    %2505 = vperm.xlu0 %2504, %v2479
    %v2506 = vpop.permute.xlu0 %2505
    %v2508 = vadd.f32 %v2491, %v2484
    %v2509 = vadd.f32 %v2496, %v2485
    %v2510 = vadd.f32 %v2501, %v2486
    %v2511 = vadd.f32 %v2506, %v2487
    %v2512 = vlaneseq
    %v2513 = vshrl.u32 %v2512, 7
    %v2514 = vsub.s32 1, %v2513
    %v2515 = vrot.slane %v2470, %v2514
    %v2516 = vmul.f32 %v141, %v2515
    %v2517 = vmul.f32 %v145, %v2515
    %v2518 = vmul.f32 %v149, %v2515
    %v2519 = vmul.f32 %v153, %v2515
    %v2520 = vadd.f32 %v2508, %v2516
    %v2521 = vadd.f32 %v2509, %v2517
    %v2522 = vadd.f32 %v2510, %v2518
    %v2523 = vadd.f32 %v2511, %v2519
    %v2524 = vlaneseq
    %v2525 = vshrl.u32 %v2524, 7
    %v2526 = vsub.s32 2, %v2525
    %v2527 = vrot.slane %v2470, %v2526
    %v2528 = vmul.f32 %v169, %v2527
    %v2529 = vmul.f32 %v173, %v2527
    %v2530 = vmul.f32 %v177, %v2527
    %v2531 = vmul.f32 %v181, %v2527
    %v2532 = vadd.f32 %v2520, %v2528
    %v2533 = vadd.f32 %v2521, %v2529
    %v2534 = vadd.f32 %v2522, %v2530
    %v2535 = vadd.f32 %v2523, %v2531
    %v2536 = vlaneseq
    %v2537 = vshrl.u32 %v2536, 7
    %v2538 = vsub.s32 3, %v2537
    %v2539 = vrot.slane %v2470, %v2538
    %v2540 = vmul.f32 %v197, %v2539
    %v2541 = vmul.f32 %v201, %v2539
    %v2542 = vmul.f32 %v205, %v2539
    %v2543 = vmul.f32 %v209, %v2539
    %v2544 = vadd.f32 %v2532, %v2540
    %v2545 = vadd.f32 %v2533, %v2541
    %v2546 = vadd.f32 %v2534, %v2542
    %v2547 = vadd.f32 %v2535, %v2543
    %v2548 = vmul.f32 %v2544, %v2544
    %v2549 = vmul.f32 %v2545, %v2545
    %v2550 = vmul.f32 %v2546, %v2546
    %v2551 = vmul.f32 %v2547, %v2547
    %v2552 = vmul.f32 %v2544, %v2548
    %v2553 = vmul.f32 %v2545, %v2549
    %v2554 = vmul.f32 %v2546, %v2550
    %v2555 = vmul.f32 %v2547, %v2551
    %v2556 = vmul.f32 %v2552, 0.044715
    %v2557 = vmul.f32 %v2553, 0.044715
    %v2558 = vmul.f32 %v2554, 0.044715
    %v2559 = vmul.f32 %v2555, 0.044715
    %v2560 = vadd.f32 %v2544, %v2556
    %v2561 = vadd.f32 %v2545, %v2557
    %v2562 = vadd.f32 %v2546, %v2558
    %v2563 = vadd.f32 %v2547, %v2559
    %v2564 = vmul.f32 %v2560, 0.7978846
    %v2565 = vmul.f32 %v2561, 0.7978846
    %v2566 = vmul.f32 %v2562, 0.7978846
    %v2567 = vmul.f32 %v2563, 0.7978846
    %v2568 = vtanh.pop %v2564
    %v2569 = vtanh.pop %v2565
    %v2570 = vtanh.pop %v2566
    %v2571 = vtanh.pop %v2567
    %v2572 = vadd.f32 %v2568, 1.0
    %v2573 = vadd.f32 %v2569, 1.0
    %v2574 = vadd.f32 %v2570, 1.0
    %v2575 = vadd.f32 %v2571, 1.0
    %v2576 = vmul.f32 %v2572, 0.5
    %v2577 = vmul.f32 %v2573, 0.5
    %v2578 = vmul.f32 %v2574, 0.5
    %v2579 = vmul.f32 %v2575, 0.5
    %v2580 = vmul.f32 %v2544, %v2576
    %v2581 = vmul.f32 %v2545, %v2577
    %v2582 = vmul.f32 %v2546, %v2578
    %v2583 = vmul.f32 %v2547, %v2579
    %2584 = vmatprep.subr.mxu0 0.0
    %2585 = vmatpush1.msra.mxu0 %v2580
    %2586 = vmatprep.subr.mxu0 0.0
    %2587 = vmatpush1.msra.mxu0 %v2581
    %2588 = vmatprep.subr.mxu0 0.0
    %2589 = vmatpush1.msra.mxu0 %v2582
    %2590 = vmatprep.subr.mxu0 0.0
    %2591 = vmatpush1.msra.mxu0 %v2583
    %2592 = vmatprep.subr.mxu0 0.0
    %2593 = vmatpush1.msra.mxu0 0.0
    %2594 = vmatprep.subr.mxu0 0.0
    %2595 = vmatpush1.msra.mxu0 0.0
    %2596 = vmatprep.subr.mxu0 0.0
    %2597 = vmatpush1.msra.mxu0 0.0
    %2598 = vmatprep.subr.mxu0 0.0
    %2599 = vmatpush1.msra.mxu0 0.0
    %2600 = vmatprep.subr.mxu0 0.0
    %2601 = vmatpush1.msra.mxu0 0.0
    %2602 = vmatprep.subr.mxu0 0.0
    %2603 = vmatpush1.msra.mxu0 0.0
    %2604 = vmatprep.subr.mxu0 0.0
    %2605 = vmatpush1.msra.mxu0 0.0
    %2606 = vmatprep.subr.mxu0 0.0
    %2607 = vmatpush1.msra.mxu0 0.0
    %2608 = vmatprep.subr.mxu0 0.0
    %2609 = vmatpush1.msra.mxu0 0.0
    %2610 = vmatprep.subr.mxu0 0.0
    %2611 = vmatpush1.msra.mxu0 0.0
    %2612 = vmatprep.subr.mxu0 0.0
    %2613 = vmatpush1.msra.mxu0 0.0
    %2614 = vmatprep.subr.mxu0 0.0
    %2615 = vmatpush1.msra.mxu0 0.0
    %2616 = vmatprep.subr.mxu0 0.0
    %2617 = vmatpush1.msra.mxu0 0.0
    %2618 = vmatprep.subr.mxu0 0.0
    %2619 = vmatpush1.msra.mxu0 0.0
    %2620 = vmatprep.subr.mxu0 0.0
    %2621 = vmatpush1.msra.mxu0 0.0
    %2622 = vmatprep.subr.mxu0 0.0
    %2623 = vmatpush1.msra.mxu0 0.0
    %2624 = vmatprep.subr.mxu0 0.0
    %2625 = vmatpush1.msra.mxu0 0.0
    %2626 = vmatprep.subr.mxu0 0.0
    %2627 = vmatpush1.msra.mxu0 0.0
    %2628 = vmatprep.subr.mxu0 0.0
    %2629 = vmatpush1.msra.mxu0 0.0
    %2630 = vmatprep.subr.mxu0 0.0
    %2631 = vmatpush1.msra.mxu0 0.0
    %2632 = vmatprep.subr.mxu0 0.0
    %2633 = vmatpush1.msra.mxu0 0.0
    %2634 = vmatprep.subr.mxu0 0.0
    %2635 = vmatpush1.msra.mxu0 0.0
    %2636 = vmatprep.subr.mxu0 0.0
    %2637 = vmatpush1.msra.mxu0 0.0
    %2638 = vmatprep.subr.mxu0 0.0
    %2639 = vmatpush1.msra.mxu0 0.0
    %2640 = vmatprep.subr.mxu0 0.0
    %2641 = vmatpush1.msra.mxu0 0.0
    %2642 = vmatprep.subr.mxu0 0.0
    %2643 = vmatpush1.msra.mxu0 0.0
    %2644 = vmatprep.subr.mxu0 0.0
    %2645 = vmatpush1.msra.mxu0 0.0
    %2646 = vmatprep.subr.mxu0 0.0
    %2647 = vmatpush1.msra.mxu0 0.0
    %2648 = vmatprep.mubr.f32.mxu0 0.0
    %2649 = vmatmul.mubr.f32.gmra.mrb[0].mxu0 %v266
    %v2650 = vpop.f32.mrb[0].mxu0
    %v2651 = vadd.f32 %v262, %v2650
    %v2652 = vpop.f32.mrb[0].mxu0
    %2653 = vdwg.mxu0
    %v2654 = vstv %s2466
    %v2655 = vmul.f32 %v2654, %v2464
    %v2656 = vstv %s2467
    %v2657 = vmul.f32 %v2656, %v2651
    %v2658 = vadd.f32 %v2655, %v2657
    %v2659 = vmax.f32 %v2658, -1.0
    %v2660 = vmin.f32 %v2659, 1.0
    %v2661 = vsub.f32 %v2464, %v2660
    %v2662 = vstv %s2253
    %v2663 = vmul.f32 %v2661, %v2662
    %v2664 = vadd.f32 %v2461, %v2663
    %v2665 = vstv %s2254
    %v2666 = vmul.f32 %v2665, %v2664
    %v2667 = vadd.f32 %v2262, %v2666
    %s2668 = scalar_lea.vmem %s5, 20
    %v2669 = vld [vmem:[%s2668] sm:$0xf]
    %v2670 = vstv %s2255
    %v2671 = vmul.f32 %v2670, %v2669
    %v2672 = vadd.f32 %v2667, %v2671
    %v2673 = vmax.f32 %v2672, -1.0
    %v2674 = vmin.f32 %v2673, 1.0
    %v2675 = vmul.f32 %v2674, %v44
    %v2676 = vadd.f32 %v2675, %v43
    %vm2677 = vcmask 257024
    %2678 = vst.msk [vmem:[#allocation4] sm:$0xf] %vm2677, %v2676
    // Predicated region
    $region42: #{tpu_custom_call.1} parent=1 // pred_check
      _
    $region43: #{tpu_custom_call.1} parent=1 // pred_check_branch
      %2680 = sbr.rel (0) target = $region45
    $region44: #{tpu_custom_call.1} parent=1 // pred_region
      %s2682 = ssub.s32 64, 64
      %2683 = vsyncadd [#allocation5], %s2682
      %s2685 = sshll.u32 [#allocation4], 4
      %s2686 = int_to_ptr.vmem [resolvable:$true] %s2685
      %2688 = dma.vmem_to_hbm [thread:$0]  %s2686, 64, %s11, [#allocation5]
    $region45: #{tpu_custom_call.1} parent=1 // pred_fallthru
      _
    // Predicated region
    $region46: #{tpu_custom_call.1} parent=1 // pred_check
      _
    $region47: #{tpu_custom_call.1} parent=1 // pred_check_branch
      %2690 = sbr.rel (0) target = $region49
    $region48: #{tpu_custom_call.1} parent=1 // pred_region
      %2691 = dma.done [#allocation5], 64
    $region49: #{tpu_custom_call.1} parent=1 // pred_fallthru
      _
    %2692 = vsyncpa [#allocation5], 1

</llo_original>
